<compile_context>
chip_gen: v7x
topology: tpu7x:2x2x1
jax: 0.10.0
libtpu: 0.0.40
codegen_flags: <defaults>
</compile_context>

<pallas_src>
import functools
import math

import jax
import jax.numpy as jnp
from jax.experimental import pallas as pl
from jax.experimental.pallas import tpu as pltpu

# ----------------------------- model hyper-parameters (small demo sizes) -----------------
K_MER = 1
VOCAB = 4 ** K_MER + 3          # = 7, as in the PyTorch module
D_MODEL = 32
NHEAD = 4
HEAD_DIM = D_MODEL // NHEAD
NUM_LAYERS = 2
DIM_FF = 64
CNN_CHANNELS = 16
KERNEL_SIZES = [3, 3]
MAX_SEN_LEN = 8                  # total sequence length after cat(src1, src2)
SEQ_HALF = MAX_SEN_LEN // 2
BATCH = 2
LN_EPS = 1e-5
BN_EPS = 1e-5

F32 = jnp.float32
BF16 = jnp.bfloat16
_VMEM = pl.BlockSpec(memory_space=pltpu.MemorySpace.VMEM)


# ----------------------------------- in-kernel helpers -----------------------------------
def _gelu_exact(x):
    # Exact (erf-based) GELU, matching F.gelu default.
    # TODO(synk): lax.erf has no guaranteed Mosaic lowering, so erf is evaluated with the
    # Abramowitz & Stegun 7.1.26 polynomial (|err| < 1.5e-7, i.e. exact at f32 precision).
    z = x * (1.0 / math.sqrt(2.0))
    sign = jnp.where(z < 0.0, -1.0, 1.0)
    az = jnp.abs(z)
    t = 1.0 / (1.0 + 0.3275911 * az)
    poly = ((((1.061405429 * t - 1.453152027) * t + 1.421413741) * t
             - 0.284496736) * t + 0.254829592) * t
    erf = sign * (1.0 - poly * jnp.exp(-az * az))
    return 0.5 * x * (1.0 + erf)


def _layer_norm(y, g, b):
    mu = jnp.mean(y, axis=-1, keepdims=True)
    var = jnp.mean((y - mu) * (y - mu), axis=-1, keepdims=True)
    return (y - mu) * jax.lax.rsqrt(var + LN_EPS) * g + b


# ----------------------------------- the fused kernel ------------------------------------
def _fused_forward_kernel(
        x_ref,
        wqkv_ref, bqkv_ref, wo_ref, bo_ref,
        w1_ref, b1_ref, w2_ref, b2_ref,
        ln1g_ref, ln1b_ref, ln2g_ref, ln2b_ref,
        normg_ref, normb_ref,
        *rest,
        S, B, H, Dh, num_layers, ksizes):
    nk = len(ksizes)
    conv_w = rest[:nk]                       # each ref: (K, E, C) folded-BN conv weight, bf16
    conv_b = rest[nk:2 * nk]                 # each ref: (1, C)    folded-BN conv bias, f32
    fcw_ref, fcb_ref, o_ref = rest[2 * nk:]

    D = x_ref.shape[1]
    SB = S * B
    scale = 1.0 / math.sqrt(Dh)

    x = x_ref[...]                           # (S*B, D) f32 embedded + pos-encoded input

    # attention batch mask built in-kernel: row r = s*B + b attends only to same-batch keys
    rid = jax.lax.broadcasted_iota(jnp.int32, (SB, SB), 0)
    cid = jax.lax.broadcasted_iota(jnp.int32, (SB, SB), 1)
    bias = jnp.where((rid % B) == (cid % B), 0.0, -1e30).astype(F32)

    # ---------------- transformer encoder (post-norm layers, statically unrolled) --------
    for l in range(num_layers):
        qkv = jnp.dot(x.astype(BF16), wqkv_ref[l],
                      preferred_element_type=F32) + bqkv_ref[l]        # (S*B, 3D) f32

        heads = []
        for h in range(H):                   # static head loop — no per-head grid steps
            hs = h * Dh
            qh = qkv[:, hs:hs + Dh].astype(BF16)
            kh = qkv[:, D + hs:D + hs + Dh].astype(BF16)
            vh = qkv[:, 2 * D + hs:2 * D + hs + Dh].astype(BF16)
            # full (S*B, S*B) scores; cross-batch pairs masked by `bias`
            s = jax.lax.dot_general(qh, kh, (((1,), (1,)), ((), ())),
                                    preferred_element_type=F32) * scale + bias
            m = jnp.max(s, axis=-1, keepdims=True)
            p = jnp.exp(s - m)
            p = p / jnp.sum(p, axis=-1, keepdims=True)                 # exact softmax
            heads.append(jnp.dot(p.astype(BF16), vh,
                                 preferred_element_type=F32))          # (S*B, Dh) f32
        # concat heads once, single full out-projection matmul (K = D contraction)
        o_cat = jnp.concatenate(heads, axis=-1)                        # (S*B, D) f32
        attn = jnp.dot(o_cat.astype(BF16), wo_ref[l],
                       preferred_element_type=F32) + bo_ref[l]

        x = _layer_norm(x + attn, ln1g_ref[l], ln1b_ref[l])            # residual + LN1
        hdn = jnp.maximum(
            jnp.dot(x.astype(BF16), w1_ref[l], preferred_element_type=F32) + b1_ref[l],
            0.0)
        ff = jnp.dot(hdn.astype(BF16), w2_ref[l],
                     preferred_element_type=F32) + b2_ref[l]
        x = _layer_norm(x + ff, ln2g_ref[l], ln2b_ref[l])              # residual + LN2

    x = _layer_norm(x, normg_ref[...], normb_ref[...])                 # encoder_norm (f32)

    # -------- CNN head: Conv1d(+folded BN) + ReLU + MaxPool per kernel size, GELU + fc ---
    # All in registers: static value slices of `x`; no VMEM scratch round-trips.
    xb = x.astype(BF16)                                                # cast once for taps
    fcw = fcw_ref[...]                                                 # (C*nk, 1) bf16
    out = jnp.zeros((B, 1), F32)
    fc_off = 0
    for ci, K in enumerate(ksizes):
        C = conv_w[ci].shape[-1]
        Lout = S - K + 1
        LB = Lout * B
        wk = conv_w[ci][...]                                           # (K, E, C) bf16
        # conv as K matmuls over (Lout*B, E) static windows of the row-major activations
        acc = jnp.zeros((LB, C), F32)
        for j in range(K):
            acc = acc + jnp.dot(xb[j * B:j * B + LB, :], wk[j],
                                preferred_element_type=F32)
        y = jnp.maximum(acc + conv_b[ci][...], 0.0)                    # (Lout*B, C) f32
        # MaxPool1d over Lout, done on the in-register value
        pooled = y[0:B, :]
        for l2 in range(1, Lout):
            pooled = jnp.maximum(pooled, y[l2 * B:(l2 + 1) * B, :])
        g = _gelu_exact(pooled)                                        # (B, C) f32
        # fc(concat(feats)) == sum_ci gelu(feat_ci) @ fc_w[off:off+C, :]
        out = out + jnp.dot(g.astype(BF16), fcw[fc_off:fc_off + C, :],
                            preferred_element_type=F32)
        fc_off += C

    o_ref[...] = out + fcb_ref[...]                                    # (B, 1)


# ----------------------------------- parameters ------------------------------------------
def make_pos_encoding(max_len, d_model):
    den = jnp.exp(-jnp.arange(0, d_model, 2, dtype=jnp.float32)
                  * (math.log(10000.0) / d_model))
    pos = jnp.arange(max_len, dtype=jnp.float32)[:, None]
    pe = jnp.zeros((max_len, d_model), jnp.float32)
    pe = pe.at[:, 0::2].set(jnp.sin(pos * den))
    pe = pe.at[:, 1::2].set(jnp.cos(pos * den))
    return pe[:, None, :]                                              # (max_len, 1, d_model)


POS_ENCODING = make_pos_encoding(MAX_SEN_LEN, D_MODEL)


def init_params(key):
    """Raw parameters in PyTorch layout (weights (out, in), convs (C, E, K))."""
    keys = iter(jax.random.split(key, 128))
    nrm = lambda shape, s=0.02: (s * jax.random.normal(next(keys), shape)).astype(jnp.float32)
    zeros = lambda shape: jnp.zeros(shape, jnp.float32)
    ones = lambda shape: jnp.ones(shape, jnp.float32)

    params = {"embedding": nrm((VOCAB, D_MODEL), 1.0)}                 # nn.Embedding ~ N(0,1)
    layers = []
    for _ in range(NUM_LAYERS):
        layers.append(dict(
            in_proj_w=nrm((3 * D_MODEL, D_MODEL)), in_proj_b=zeros((3 * D_MODEL,)),
            out_proj_w=nrm((D_MODEL, D_MODEL)), out_proj_b=zeros((D_MODEL,)),
            lin1_w=nrm((DIM_FF, D_MODEL)), lin1_b=zeros((DIM_FF,)),
            lin2_w=nrm((D_MODEL, DIM_FF)), lin2_b=zeros((D_MODEL,)),
            ln1_g=ones((D_MODEL,)), ln1_b=zeros((D_MODEL,)),
            ln2_g=ones((D_MODEL,)), ln2_b=zeros((D_MODEL,)),
        ))
    params["layers"] = layers
    params["norm_g"] = ones((D_MODEL,))
    params["norm_b"] = zeros((D_MODEL,))
    convs = []
    for k in KERNEL_SIZES:
        convs.append(dict(
            w=nrm((CNN_CHANNELS, D_MODEL, k), 0.05), b=zeros((CNN_CHANNELS,)),
            bn_g=ones((CNN_CHANNELS,)), bn_b=zeros((CNN_CHANNELS,)),
            bn_mean=zeros((CNN_CHANNELS,)), bn_var=ones((CNN_CHANNELS,)),
        ))
    params["convs"] = convs
    params["fc_w"] = nrm((1, CNN_CHANNELS * len(KERNEL_SIZES)))
    params["fc_b"] = zeros((1,))
    return params


def prepare_fused_params(params):
    """One-time weight prep: transpose to matmul layout, stack layers, fold eval-BN,
    cast matmul weights to bf16 (biases / LN params stay f32)."""
    stack = lambda f: jnp.stack([f(lp) for lp in params["layers"]])
    bf = lambda a: a.astype(BF16)
    fused = dict(
        embedding=params["embedding"],
        wqkv=bf(stack(lambda lp: lp["in_proj_w"].T)),                  # (L, D, 3D) bf16
        bqkv=stack(lambda lp: lp["in_proj_b"].reshape(1, -1)),         # (L, 1, 3D) f32
        wo=bf(stack(lambda lp: lp["out_proj_w"].T)),                   # (L, D, D)  bf16
        bo=stack(lambda lp: lp["out_proj_b"].reshape(1, -1)),
        w1=bf(stack(lambda lp: lp["lin1_w"].T)),                       # (L, D, FF) bf16
        b1=stack(lambda lp: lp["lin1_b"].reshape(1, -1)),
        w2=bf(stack(lambda lp: lp["lin2_w"].T)),                       # (L, FF, D) bf16
        b2=stack(lambda lp: lp["lin2_b"].reshape(1, -1)),
        ln1g=stack(lambda lp: lp["ln1_g"].reshape(1, -1)),
        ln1b=stack(lambda lp: lp["ln1_b"].reshape(1, -1)),
        ln2g=stack(lambda lp: lp["ln2_g"].reshape(1, -1)),
        ln2b=stack(lambda lp: lp["ln2_b"].reshape(1, -1)),
        normg=params["norm_g"].reshape(1, -1),
        normb=params["norm_b"].reshape(1, -1),
        fcw=bf(params["fc_w"].T),                                      # (C*nk, 1) bf16
        fcb=params["fc_b"].reshape(1, 1),
    )
    conv_w, conv_b = [], []
    for c in params["convs"]:
        scale = c["bn_g"] * jax.lax.rsqrt(c["bn_var"] + BN_EPS)        # fold eval BatchNorm
        wf = c["w"] * scale[:, None, None]                             # (C, E, K)
        bfold = (c["b"] - c["bn_mean"]) * scale + c["bn_b"]            # (C,)
        conv_w.append(bf(jnp.transpose(wf, (2, 1, 0))))                # (K, E, C) bf16
        conv_b.append(bfold.reshape(1, -1))                            # (1, C)    f32
    fused["conv_w"] = conv_w
    fused["conv_b"] = conv_b
    return fused


# ----------------------------------- forward pass ----------------------------------------
def kl_model_plus_forward(fused, src1, src2):
    # src1, src2: (SEQ_HALF, BATCH) int32 token ids
    src = jnp.concatenate([src1, src2], axis=0)                        # torch.cat(dim=0)
    S, B = src.shape
    # TODO(synk): embedding gather + positional-encoding add stay in XLA glue (data-
    # dependent gather); everything downstream runs in the single fused Pallas kernel.
    emb = fused["embedding"][src] * math.sqrt(D_MODEL)                 # TokenEmbedding
    x = emb + POS_ENCODING[:S]                                         # PositionalEncoding
    x2d = x.reshape(S * B, D_MODEL).astype(jnp.float32)                # row = s*B + b

    args = [x2d,
            fused["wqkv"], fused["bqkv"], fused["wo"], fused["bo"],
            fused["w1"], fused["b1"], fused["w2"], fused["b2"],
            fused["ln1g"], fused["ln1b"], fused["ln2g"], fused["ln2b"],
            fused["normg"], fused["normb"],
            *fused["conv_w"], *fused["conv_b"],
            fused["fcw"], fused["fcb"]]

    ksizes = tuple(int(w.shape[0]) for w in fused["conv_w"])
    kern = functools.partial(
        _fused_forward_kernel, S=int(S), B=int(B), H=NHEAD, Dh=HEAD_DIM,
        num_layers=int(fused["wqkv"].shape[0]), ksizes=ksizes)

    return pl.pallas_call(
        kern,
        out_shape=jax.ShapeDtypeStruct((B, 1), jnp.float32),
        in_specs=[_VMEM] * len(args),
        out_specs=_VMEM,
    )(*args)


# --------------------------------------- main ---------------------------------------------
if __name__ == "__main__":
    key = jax.random.PRNGKey(0)
    k1, k2, kp = jax.random.split(key, 3)
    src1 = jax.random.randint(k1, (SEQ_HALF, BATCH), 0, VOCAB, dtype=jnp.int32)
    src2 = jax.random.randint(k2, (SEQ_HALF, BATCH), 0, VOCAB, dtype=jnp.int32)
    params = init_params(kp)
    fused = prepare_fused_params(params)      # one-time transpose / stack / BN fold / bf16

    out = jax.jit(kl_model_plus_forward)(fused, src1, src2)
    out = jax.block_until_ready(out)
    assert out.shape == (BATCH, 1) and out.dtype == jnp.float32
    assert bool(jnp.all(jnp.isfinite(out)))
    print("KERNEL_OK")
</pallas_src>

<mosaic_0001>
module attributes {stable_mosaic.version = 11 : i64} {
  func.func @_fused_forward_kernel(%arg0: memref<16x32xf32, #tpu.memory_space<vmem>>, %arg1: memref<2x32x96xbf16, #tpu.memory_space<vmem>>, %arg2: memref<2x1x96xf32, #tpu.memory_space<vmem>>, %arg3: memref<2x32x32xbf16, #tpu.memory_space<vmem>>, %arg4: memref<2x1x32xf32, #tpu.memory_space<vmem>>, %arg5: memref<2x32x64xbf16, #tpu.memory_space<vmem>>, %arg6: memref<2x1x64xf32, #tpu.memory_space<vmem>>, %arg7: memref<2x64x32xbf16, #tpu.memory_space<vmem>>, %arg8: memref<2x1x32xf32, #tpu.memory_space<vmem>>, %arg9: memref<2x1x32xf32, #tpu.memory_space<vmem>>, %arg10: memref<2x1x32xf32, #tpu.memory_space<vmem>>, %arg11: memref<2x1x32xf32, #tpu.memory_space<vmem>>, %arg12: memref<2x1x32xf32, #tpu.memory_space<vmem>>, %arg13: memref<1x32xf32, #tpu.memory_space<vmem>>, %arg14: memref<1x32xf32, #tpu.memory_space<vmem>>, %arg15: memref<3x32x16xbf16, #tpu.memory_space<vmem>>, %arg16: memref<3x32x16xbf16, #tpu.memory_space<vmem>>, %arg17: memref<1x16xf32, #tpu.memory_space<vmem>>, %arg18: memref<1x16xf32, #tpu.memory_space<vmem>>, %arg19: memref<32x1xbf16, #tpu.memory_space<vmem>>, %arg20: memref<1x1xf32, #tpu.memory_space<vmem>>, %arg21: memref<2x1xf32, #tpu.memory_space<vmem>>) attributes {dimension_semantics = [], scalar_prefetch = 0 : i64, scratch_operands = 0 : i64, tpu.core_type = #tpu.core_type<tc>} {
    %c0 = arith.constant 0 : index
    %c0_0 = arith.constant 0 : index
    %0 = vector.load %arg0[%c0, %c0_0] : memref<16x32xf32, #tpu.memory_space<vmem>>, vector<16x32xf32>
    %1 = tpu.iota {dimensions = array<i32: 0>} : vector<16x16xi32>
    %2 = tpu.iota {dimensions = array<i32: 1>} : vector<16x16xi32>
    %c2_i32 = arith.constant 2 : i32
    %c0_i32 = arith.constant 0 : i32
    %3 = arith.cmpi eq, %c2_i32, %c0_i32 : i32
    %c1_i32 = arith.constant 1 : i32
    %4 = arith.select %3, %c1_i32, %c2_i32 : i32
    %5 = vector.broadcast %4 : i32 to vector<16x16xi32>
    %6 = arith.remsi %1, %5 : vector<16x16xi32>
    %c0_i32_1 = arith.constant 0 : i32
    %7 = vector.broadcast %c0_i32_1 : i32 to vector<16x16xi32>
    %8 = arith.cmpi ne, %6, %7 : vector<16x16xi32>
    %c0_i32_2 = arith.constant 0 : i32
    %9 = vector.broadcast %c0_i32_2 : i32 to vector<16x16xi32>
    %10 = arith.cmpi slt, %6, %9 : vector<16x16xi32>
    %c0_i32_3 = arith.constant 0 : i32
    %11 = arith.cmpi slt, %4, %c0_i32_3 : i32
    %12 = vector.broadcast %11 : i1 to vector<16x16xi1>
    %13 = vector.broadcast %12 : vector<16x16xi1> to vector<16x16xi1>
    %14 = arith.xori %10, %13 : vector<16x16xi1>
    %15 = arith.andi %14, %8 : vector<16x16xi1>
    %16 = vector.broadcast %4 : i32 to vector<16x16xi32>
    %17 = arith.addi %6, %16 : vector<16x16xi32>
    %18 = arith.select %15, %17, %6 : vector<16x16xi1>, vector<16x16xi32>
    %c2_i32_4 = arith.constant 2 : i32
    %c0_i32_5 = arith.constant 0 : i32
    %19 = arith.cmpi eq, %c2_i32_4, %c0_i32_5 : i32
    %c1_i32_6 = arith.constant 1 : i32
    %20 = arith.select %19, %c1_i32_6, %c2_i32_4 : i32
    %21 = vector.broadcast %20 : i32 to vector<16x16xi32>
    %22 = arith.remsi %2, %21 : vector<16x16xi32>
    %c0_i32_7 = arith.constant 0 : i32
    %23 = vector.broadcast %c0_i32_7 : i32 to vector<16x16xi32>
    %24 = arith.cmpi ne, %22, %23 : vector<16x16xi32>
    %c0_i32_8 = arith.constant 0 : i32
    %25 = vector.broadcast %c0_i32_8 : i32 to vector<16x16xi32>
    %26 = arith.cmpi slt, %22, %25 : vector<16x16xi32>
    %c0_i32_9 = arith.constant 0 : i32
    %27 = arith.cmpi slt, %20, %c0_i32_9 : i32
    %28 = vector.broadcast %27 : i1 to vector<16x16xi1>
    %29 = vector.broadcast %28 : vector<16x16xi1> to vector<16x16xi1>
    %30 = arith.xori %26, %29 : vector<16x16xi1>
    %31 = arith.andi %30, %24 : vector<16x16xi1>
    %32 = vector.broadcast %20 : i32 to vector<16x16xi32>
    %33 = arith.addi %22, %32 : vector<16x16xi32>
    %34 = arith.select %31, %33, %22 : vector<16x16xi1>, vector<16x16xi32>
    %35 = arith.cmpi eq, %18, %34 : vector<16x16xi32>
    %cst = arith.constant 0.000000e+00 : f32
    %cst_10 = arith.constant -1.000000e+30 : f32
    %36 = vector.broadcast %cst : f32 to vector<16x16xf32>
    %37 = vector.broadcast %cst_10 : f32 to vector<16x16xf32>
    %38 = arith.select %35, %36, %37 : vector<16x16xi1>, vector<16x16xf32>
    %39 = arith.truncf %0 : vector<16x32xf32> to vector<16x32xbf16>
    %c0_11 = arith.constant 0 : index
    %c0_12 = arith.constant 0 : index
    %c0_13 = arith.constant 0 : index
    %40 = vector.load %arg1[%c0_11, %c0_12, %c0_13] : memref<2x32x96xbf16, #tpu.memory_space<vmem>>, vector<1x32x96xbf16>
    %41 = vector.shape_cast %40 : vector<1x32x96xbf16> to vector<32x96xbf16>
    %cst_14 = arith.constant dense<0.000000e+00> : vector<16x96xf32>
    %42 = tpu.matmul %39, %41, %cst_14 {dimension_numbers = #tpu.dot_dimension_numbers<[1], [0], [0], [1], [0, 0, 1, 1], [], []>} : vector<16x32xbf16>, vector<32x96xbf16>, vector<16x96xf32> -> vector<16x96xf32>
    %c0_15 = arith.constant 0 : index
    %c0_16 = arith.constant 0 : index
    %c0_17 = arith.constant 0 : index
    %43 = vector.load %arg2[%c0_15, %c0_16, %c0_17] : memref<2x1x96xf32, #tpu.memory_space<vmem>>, vector<1x1x96xf32>
    %44 = vector.shape_cast %43 : vector<1x1x96xf32> to vector<1x96xf32>
    %45 = vector.broadcast %44 : vector<1x96xf32> to vector<16x96xf32>
    %46 = arith.addf %42, %45 : vector<16x96xf32>
    %47 = vector.extract_strided_slice %46 {offsets = [0, 0], sizes = [16, 8], strides = [1, 1]} : vector<16x96xf32> to vector<16x8xf32>
    %48 = arith.truncf %47 : vector<16x8xf32> to vector<16x8xbf16>
    %49 = vector.extract_strided_slice %46 {offsets = [0, 32], sizes = [16, 8], strides = [1, 1]} : vector<16x96xf32> to vector<16x8xf32>
    %50 = arith.truncf %49 : vector<16x8xf32> to vector<16x8xbf16>
    %51 = vector.extract_strided_slice %46 {offsets = [0, 64], sizes = [16, 8], strides = [1, 1]} : vector<16x96xf32> to vector<16x8xf32>
    %52 = arith.truncf %51 : vector<16x8xf32> to vector<16x8xbf16>
    %cst_18 = arith.constant dense<0.000000e+00> : vector<16x16xf32>
    %53 = tpu.matmul %48, %50, %cst_18 {dimension_numbers = #tpu.dot_dimension_numbers<[1], [1], [0], [0], [0, 0, 1, 0], [], []>} : vector<16x8xbf16>, vector<16x8xbf16>, vector<16x16xf32> -> vector<16x16xf32>
    %cst_19 = arith.constant 0.353553385 : f32
    %54 = vector.broadcast %cst_19 : f32 to vector<16x16xf32>
    %55 = arith.mulf %53, %54 : vector<16x16xf32>
    %56 = arith.addf %55, %38 : vector<16x16xf32>
    %cst_20 = arith.constant dense<0xFF800000> : vector<16xf32>
    %57 = vector.multi_reduction <maximumf>, %56, %cst_20 [1] : vector<16x16xf32> to vector<16xf32>
    %58 = vector.shape_cast %57 : vector<16xf32> to vector<16x1xf32>
    %59 = vector.broadcast %58 : vector<16x1xf32> to vector<16x16xf32>
    %60 = arith.subf %56, %59 : vector<16x16xf32>
    %61 = math.exp %60 : vector<16x16xf32>
    %cst_21 = arith.constant dense<0.000000e+00> : vector<16xf32>
    %62 = vector.multi_reduction <add>, %61, %cst_21 [1] : vector<16x16xf32> to vector<16xf32>
    %63 = vector.shape_cast %62 : vector<16xf32> to vector<16x1xf32>
    %64 = vector.broadcast %63 : vector<16x1xf32> to vector<16x16xf32>
    %65 = arith.divf %61, %64 : vector<16x16xf32>
    %66 = arith.truncf %65 : vector<16x16xf32> to vector<16x16xbf16>
    %cst_22 = arith.constant dense<0.000000e+00> : vector<16x8xf32>
    %67 = tpu.matmul %66, %52, %cst_22 {dimension_numbers = #tpu.dot_dimension_numbers<[1], [0], [0], [1], [0, 0, 1, 1], [], []>} : vector<16x16xbf16>, vector<16x8xbf16>, vector<16x8xf32> -> vector<16x8xf32>
    %68 = vector.extract_strided_slice %46 {offsets = [0, 8], sizes = [16, 8], strides = [1, 1]} : vector<16x96xf32> to vector<16x8xf32>
    %69 = arith.truncf %68 : vector<16x8xf32> to vector<16x8xbf16>
    %70 = vector.extract_strided_slice %46 {offsets = [0, 40], sizes = [16, 8], strides = [1, 1]} : vector<16x96xf32> to vector<16x8xf32>
    %71 = arith.truncf %70 : vector<16x8xf32> to vector<16x8xbf16>
    %72 = vector.extract_strided_slice %46 {offsets = [0, 72], sizes = [16, 8], strides = [1, 1]} : vector<16x96xf32> to vector<16x8xf32>
    %73 = arith.truncf %72 : vector<16x8xf32> to vector<16x8xbf16>
    %cst_23 = arith.constant dense<0.000000e+00> : vector<16x16xf32>
    %74 = tpu.matmul %69, %71, %cst_23 {dimension_numbers = #tpu.dot_dimension_numbers<[1], [1], [0], [0], [0, 0, 1, 0], [], []>} : vector<16x8xbf16>, vector<16x8xbf16>, vector<16x16xf32> -> vector<16x16xf32>
    %cst_24 = arith.constant 0.353553385 : f32
    %75 = vector.broadcast %cst_24 : f32 to vector<16x16xf32>
    %76 = arith.mulf %74, %75 : vector<16x16xf32>
    %77 = arith.addf %76, %38 : vector<16x16xf32>
    %cst_25 = arith.constant dense<0xFF800000> : vector<16xf32>
    %78 = vector.multi_reduction <maximumf>, %77, %cst_25 [1] : vector<16x16xf32> to vector<16xf32>
    %79 = vector.shape_cast %78 : vector<16xf32> to vector<16x1xf32>
    %80 = vector.broadcast %79 : vector<16x1xf32> to vector<16x16xf32>
    %81 = arith.subf %77, %80 : vector<16x16xf32>
    %82 = math.exp %81 : vector<16x16xf32>
    %cst_26 = arith.constant dense<0.000000e+00> : vector<16xf32>
    %83 = vector.multi_reduction <add>, %82, %cst_26 [1] : vector<16x16xf32> to vector<16xf32>
    %84 = vector.shape_cast %83 : vector<16xf32> to vector<16x1xf32>
    %85 = vector.broadcast %84 : vector<16x1xf32> to vector<16x16xf32>
    %86 = arith.divf %82, %85 : vector<16x16xf32>
    %87 = arith.truncf %86 : vector<16x16xf32> to vector<16x16xbf16>
    %cst_27 = arith.constant dense<0.000000e+00> : vector<16x8xf32>
    %88 = tpu.matmul %87, %73, %cst_27 {dimension_numbers = #tpu.dot_dimension_numbers<[1], [0], [0], [1], [0, 0, 1, 1], [], []>} : vector<16x16xbf16>, vector<16x8xbf16>, vector<16x8xf32> -> vector<16x8xf32>
    %89 = vector.extract_strided_slice %46 {offsets = [0, 16], sizes = [16, 8], strides = [1, 1]} : vector<16x96xf32> to vector<16x8xf32>
    %90 = arith.truncf %89 : vector<16x8xf32> to vector<16x8xbf16>
    %91 = vector.extract_strided_slice %46 {offsets = [0, 48], sizes = [16, 8], strides = [1, 1]} : vector<16x96xf32> to vector<16x8xf32>
    %92 = arith.truncf %91 : vector<16x8xf32> to vector<16x8xbf16>
    %93 = vector.extract_strided_slice %46 {offsets = [0, 80], sizes = [16, 8], strides = [1, 1]} : vector<16x96xf32> to vector<16x8xf32>
    %94 = arith.truncf %93 : vector<16x8xf32> to vector<16x8xbf16>
    %cst_28 = arith.constant dense<0.000000e+00> : vector<16x16xf32>
    %95 = tpu.matmul %90, %92, %cst_28 {dimension_numbers = #tpu.dot_dimension_numbers<[1], [1], [0], [0], [0, 0, 1, 0], [], []>} : vector<16x8xbf16>, vector<16x8xbf16>, vector<16x16xf32> -> vector<16x16xf32>
    %cst_29 = arith.constant 0.353553385 : f32
    %96 = vector.broadcast %cst_29 : f32 to vector<16x16xf32>
    %97 = arith.mulf %95, %96 : vector<16x16xf32>
    %98 = arith.addf %97, %38 : vector<16x16xf32>
    %cst_30 = arith.constant dense<0xFF800000> : vector<16xf32>
    %99 = vector.multi_reduction <maximumf>, %98, %cst_30 [1] : vector<16x16xf32> to vector<16xf32>
    %100 = vector.shape_cast %99 : vector<16xf32> to vector<16x1xf32>
    %101 = vector.broadcast %100 : vector<16x1xf32> to vector<16x16xf32>
    %102 = arith.subf %98, %101 : vector<16x16xf32>
    %103 = math.exp %102 : vector<16x16xf32>
    %cst_31 = arith.constant dense<0.000000e+00> : vector<16xf32>
    %104 = vector.multi_reduction <add>, %103, %cst_31 [1] : vector<16x16xf32> to vector<16xf32>
    %105 = vector.shape_cast %104 : vector<16xf32> to vector<16x1xf32>
    %106 = vector.broadcast %105 : vector<16x1xf32> to vector<16x16xf32>
    %107 = arith.divf %103, %106 : vector<16x16xf32>
    %108 = arith.truncf %107 : vector<16x16xf32> to vector<16x16xbf16>
    %cst_32 = arith.constant dense<0.000000e+00> : vector<16x8xf32>
    %109 = tpu.matmul %108, %94, %cst_32 {dimension_numbers = #tpu.dot_dimension_numbers<[1], [0], [0], [1], [0, 0, 1, 1], [], []>} : vector<16x16xbf16>, vector<16x8xbf16>, vector<16x8xf32> -> vector<16x8xf32>
    %110 = vector.extract_strided_slice %46 {offsets = [0, 24], sizes = [16, 8], strides = [1, 1]} : vector<16x96xf32> to vector<16x8xf32>
    %111 = arith.truncf %110 : vector<16x8xf32> to vector<16x8xbf16>
    %112 = vector.extract_strided_slice %46 {offsets = [0, 56], sizes = [16, 8], strides = [1, 1]} : vector<16x96xf32> to vector<16x8xf32>
    %113 = arith.truncf %112 : vector<16x8xf32> to vector<16x8xbf16>
    %114 = vector.extract_strided_slice %46 {offsets = [0, 88], sizes = [16, 8], strides = [1, 1]} : vector<16x96xf32> to vector<16x8xf32>
    %115 = arith.truncf %114 : vector<16x8xf32> to vector<16x8xbf16>
    %cst_33 = arith.constant dense<0.000000e+00> : vector<16x16xf32>
    %116 = tpu.matmul %111, %113, %cst_33 {dimension_numbers = #tpu.dot_dimension_numbers<[1], [1], [0], [0], [0, 0, 1, 0], [], []>} : vector<16x8xbf16>, vector<16x8xbf16>, vector<16x16xf32> -> vector<16x16xf32>
    %cst_34 = arith.constant 0.353553385 : f32
    %117 = vector.broadcast %cst_34 : f32 to vector<16x16xf32>
    %118 = arith.mulf %116, %117 : vector<16x16xf32>
    %119 = arith.addf %118, %38 : vector<16x16xf32>
    %cst_35 = arith.constant dense<0xFF800000> : vector<16xf32>
    %120 = vector.multi_reduction <maximumf>, %119, %cst_35 [1] : vector<16x16xf32> to vector<16xf32>
    %121 = vector.shape_cast %120 : vector<16xf32> to vector<16x1xf32>
    %122 = vector.broadcast %121 : vector<16x1xf32> to vector<16x16xf32>
    %123 = arith.subf %119, %122 : vector<16x16xf32>
    %124 = math.exp %123 : vector<16x16xf32>
    %cst_36 = arith.constant dense<0.000000e+00> : vector<16xf32>
    %125 = vector.multi_reduction <add>, %124, %cst_36 [1] : vector<16x16xf32> to vector<16xf32>
    %126 = vector.shape_cast %125 : vector<16xf32> to vector<16x1xf32>
    %127 = vector.broadcast %126 : vector<16x1xf32> to vector<16x16xf32>
    %128 = arith.divf %124, %127 : vector<16x16xf32>
    %129 = arith.truncf %128 : vector<16x16xf32> to vector<16x16xbf16>
    %cst_37 = arith.constant dense<0.000000e+00> : vector<16x8xf32>
    %130 = tpu.matmul %129, %115, %cst_37 {dimension_numbers = #tpu.dot_dimension_numbers<[1], [0], [0], [1], [0, 0, 1, 1], [], []>} : vector<16x16xbf16>, vector<16x8xbf16>, vector<16x8xf32> -> vector<16x8xf32>
    %131 = tpu.concatenate %67, %88, %109, %130 in 1 : vector<16x8xf32>, vector<16x8xf32>, vector<16x8xf32>, vector<16x8xf32> -> vector<16x32xf32>
    %132 = arith.truncf %131 : vector<16x32xf32> to vector<16x32xbf16>
    %c0_38 = arith.constant 0 : index
    %c0_39 = arith.constant 0 : index
    %c0_40 = arith.constant 0 : index
    %133 = vector.load %arg3[%c0_38, %c0_39, %c0_40] : memref<2x32x32xbf16, #tpu.memory_space<vmem>>, vector<1x32x32xbf16>
    %134 = vector.shape_cast %133 : vector<1x32x32xbf16> to vector<32x32xbf16>
    %cst_41 = arith.constant dense<0.000000e+00> : vector<16x32xf32>
    %135 = tpu.matmul %132, %134, %cst_41 {dimension_numbers = #tpu.dot_dimension_numbers<[1], [0], [0], [1], [0, 0, 1, 1], [], []>} : vector<16x32xbf16>, vector<32x32xbf16>, vector<16x32xf32> -> vector<16x32xf32>
    %c0_42 = arith.constant 0 : index
    %c0_43 = arith.constant 0 : index
    %c0_44 = arith.constant 0 : index
    %136 = vector.load %arg4[%c0_42, %c0_43, %c0_44] : memref<2x1x32xf32, #tpu.memory_space<vmem>>, vector<1x1x32xf32>
    %137 = vector.shape_cast %136 : vector<1x1x32xf32> to vector<1x32xf32>
    %138 = vector.broadcast %137 : vector<1x32xf32> to vector<16x32xf32>
    %139 = arith.addf %135, %138 : vector<16x32xf32>
    %140 = arith.addf %0, %139 : vector<16x32xf32>
    %c0_45 = arith.constant 0 : index
    %c0_46 = arith.constant 0 : index
    %c0_47 = arith.constant 0 : index
    %141 = vector.load %arg9[%c0_45, %c0_46, %c0_47] : memref<2x1x32xf32, #tpu.memory_space<vmem>>, vector<1x1x32xf32>
    %142 = vector.shape_cast %141 : vector<1x1x32xf32> to vector<1x32xf32>
    %c0_48 = arith.constant 0 : index
    %c0_49 = arith.constant 0 : index
    %c0_50 = arith.constant 0 : index
    %143 = vector.load %arg10[%c0_48, %c0_49, %c0_50] : memref<2x1x32xf32, #tpu.memory_space<vmem>>, vector<1x1x32xf32>
    %144 = vector.shape_cast %143 : vector<1x1x32xf32> to vector<1x32xf32>
    %cst_51 = arith.constant dense<0.000000e+00> : vector<16xf32>
    %145 = vector.multi_reduction <add>, %140, %cst_51 [1] : vector<16x32xf32> to vector<16xf32>
    %146 = vector.shape_cast %145 : vector<16xf32> to vector<16x1xf32>
    %cst_52 = arith.constant 3.200000e+01 : f32
    %147 = vector.broadcast %cst_52 : f32 to vector<16x1xf32>
    %148 = arith.divf %146, %147 : vector<16x1xf32>
    %149 = vector.broadcast %148 : vector<16x1xf32> to vector<16x32xf32>
    %150 = arith.subf %140, %149 : vector<16x32xf32>
    %151 = vector.broadcast %148 : vector<16x1xf32> to vector<16x32xf32>
    %152 = arith.subf %140, %151 : vector<16x32xf32>
    %153 = arith.mulf %150, %152 : vector<16x32xf32>
    %cst_53 = arith.constant dense<0.000000e+00> : vector<16xf32>
    %154 = vector.multi_reduction <add>, %153, %cst_53 [1] : vector<16x32xf32> to vector<16xf32>
    %155 = vector.shape_cast %154 : vector<16xf32> to vector<16x1xf32>
    %cst_54 = arith.constant 3.200000e+01 : f32
    %156 = vector.broadcast %cst_54 : f32 to vector<16x1xf32>
    %157 = arith.divf %155, %156 : vector<16x1xf32>
    %158 = vector.broadcast %148 : vector<16x1xf32> to vector<16x32xf32>
    %159 = arith.subf %140, %158 : vector<16x32xf32>
    %cst_55 = arith.constant 9.99999974E-6 : f32
    %160 = vector.broadcast %cst_55 : f32 to vector<16x1xf32>
    %161 = arith.addf %157, %160 : vector<16x1xf32>
    %162 = math.rsqrt %161 : vector<16x1xf32>
    %163 = vector.broadcast %162 : vector<16x1xf32> to vector<16x32xf32>
    %164 = arith.mulf %159, %163 : vector<16x32xf32>
    %165 = vector.broadcast %142 : vector<1x32xf32> to vector<16x32xf32>
    %166 = arith.mulf %164, %165 : vector<16x32xf32>
    %167 = vector.broadcast %144 : vector<1x32xf32> to vector<16x32xf32>
    %168 = arith.addf %166, %167 : vector<16x32xf32>
    %169 = arith.truncf %168 : vector<16x32xf32> to vector<16x32xbf16>
    %c0_56 = arith.constant 0 : index
    %c0_57 = arith.constant 0 : index
    %c0_58 = arith.constant 0 : index
    %170 = vector.load %arg5[%c0_56, %c0_57, %c0_58] : memref<2x32x64xbf16, #tpu.memory_space<vmem>>, vector<1x32x64xbf16>
    %171 = vector.shape_cast %170 : vector<1x32x64xbf16> to vector<32x64xbf16>
    %cst_59 = arith.constant dense<0.000000e+00> : vector<16x64xf32>
    %172 = tpu.matmul %169, %171, %cst_59 {dimension_numbers = #tpu.dot_dimension_numbers<[1], [0], [0], [1], [0, 0, 1, 1], [], []>} : vector<16x32xbf16>, vector<32x64xbf16>, vector<16x64xf32> -> vector<16x64xf32>
    %c0_60 = arith.constant 0 : index
    %c0_61 = arith.constant 0 : index
    %c0_62 = arith.constant 0 : index
    %173 = vector.load %arg6[%c0_60, %c0_61, %c0_62] : memref<2x1x64xf32, #tpu.memory_space<vmem>>, vector<1x1x64xf32>
    %174 = vector.shape_cast %173 : vector<1x1x64xf32> to vector<1x64xf32>
    %175 = vector.broadcast %174 : vector<1x64xf32> to vector<16x64xf32>
    %176 = arith.addf %172, %175 : vector<16x64xf32>
    %cst_63 = arith.constant 0.000000e+00 : f32
    %177 = vector.broadcast %cst_63 : f32 to vector<16x64xf32>
    %178 = arith.maximumf %176, %177 : vector<16x64xf32>
    %179 = arith.truncf %178 : vector<16x64xf32> to vector<16x64xbf16>
    %c0_64 = arith.constant 0 : index
    %c0_65 = arith.constant 0 : index
    %c0_66 = arith.constant 0 : index
    %180 = vector.load %arg7[%c0_64, %c0_65, %c0_66] : memref<2x64x32xbf16, #tpu.memory_space<vmem>>, vector<1x64x32xbf16>
    %181 = vector.shape_cast %180 : vector<1x64x32xbf16> to vector<64x32xbf16>
    %cst_67 = arith.constant dense<0.000000e+00> : vector<16x32xf32>
    %182 = tpu.matmul %179, %181, %cst_67 {dimension_numbers = #tpu.dot_dimension_numbers<[1], [0], [0], [1], [0, 0, 1, 1], [], []>} : vector<16x64xbf16>, vector<64x32xbf16>, vector<16x32xf32> -> vector<16x32xf32>
    %c0_68 = arith.constant 0 : index
    %c0_69 = arith.constant 0 : index
    %c0_70 = arith.constant 0 : index
    %183 = vector.load %arg8[%c0_68, %c0_69, %c0_70] : memref<2x1x32xf32, #tpu.memory_space<vmem>>, vector<1x1x32xf32>
    %184 = vector.shape_cast %183 : vector<1x1x32xf32> to vector<1x32xf32>
    %185 = vector.broadcast %184 : vector<1x32xf32> to vector<16x32xf32>
    %186 = arith.addf %182, %185 : vector<16x32xf32>
    %187 = arith.addf %168, %186 : vector<16x32xf32>
    %c0_71 = arith.constant 0 : index
    %c0_72 = arith.constant 0 : index
    %c0_73 = arith.constant 0 : index
    %188 = vector.load %arg11[%c0_71, %c0_72, %c0_73] : memref<2x1x32xf32, #tpu.memory_space<vmem>>, vector<1x1x32xf32>
    %189 = vector.shape_cast %188 : vector<1x1x32xf32> to vector<1x32xf32>
    %c0_74 = arith.constant 0 : index
    %c0_75 = arith.constant 0 : index
    %c0_76 = arith.constant 0 : index
    %190 = vector.load %arg12[%c0_74, %c0_75, %c0_76] : memref<2x1x32xf32, #tpu.memory_space<vmem>>, vector<1x1x32xf32>
    %191 = vector.shape_cast %190 : vector<1x1x32xf32> to vector<1x32xf32>
    %cst_77 = arith.constant dense<0.000000e+00> : vector<16xf32>
    %192 = vector.multi_reduction <add>, %187, %cst_77 [1] : vector<16x32xf32> to vector<16xf32>
    %193 = vector.shape_cast %192 : vector<16xf32> to vector<16x1xf32>
    %cst_78 = arith.constant 3.200000e+01 : f32
    %194 = vector.broadcast %cst_78 : f32 to vector<16x1xf32>
    %195 = arith.divf %193, %194 : vector<16x1xf32>
    %196 = vector.broadcast %195 : vector<16x1xf32> to vector<16x32xf32>
    %197 = arith.subf %187, %196 : vector<16x32xf32>
    %198 = vector.broadcast %195 : vector<16x1xf32> to vector<16x32xf32>
    %199 = arith.subf %187, %198 : vector<16x32xf32>
    %200 = arith.mulf %197, %199 : vector<16x32xf32>
    %cst_79 = arith.constant dense<0.000000e+00> : vector<16xf32>
    %201 = vector.multi_reduction <add>, %200, %cst_79 [1] : vector<16x32xf32> to vector<16xf32>
    %202 = vector.shape_cast %201 : vector<16xf32> to vector<16x1xf32>
    %cst_80 = arith.constant 3.200000e+01 : f32
    %203 = vector.broadcast %cst_80 : f32 to vector<16x1xf32>
    %204 = arith.divf %202, %203 : vector<16x1xf32>
    %205 = vector.broadcast %195 : vector<16x1xf32> to vector<16x32xf32>
    %206 = arith.subf %187, %205 : vector<16x32xf32>
    %cst_81 = arith.constant 9.99999974E-6 : f32
    %207 = vector.broadcast %cst_81 : f32 to vector<16x1xf32>
    %208 = arith.addf %204, %207 : vector<16x1xf32>
    %209 = math.rsqrt %208 : vector<16x1xf32>
    %210 = vector.broadcast %209 : vector<16x1xf32> to vector<16x32xf32>
    %211 = arith.mulf %206, %210 : vector<16x32xf32>
    %212 = vector.broadcast %189 : vector<1x32xf32> to vector<16x32xf32>
    %213 = arith.mulf %211, %212 : vector<16x32xf32>
    %214 = vector.broadcast %191 : vector<1x32xf32> to vector<16x32xf32>
    %215 = arith.addf %213, %214 : vector<16x32xf32>
    %216 = arith.truncf %215 : vector<16x32xf32> to vector<16x32xbf16>
    %c1 = arith.constant 1 : index
    %c0_82 = arith.constant 0 : index
    %c0_83 = arith.constant 0 : index
    %217 = vector.load %arg1[%c1, %c0_82, %c0_83] : memref<2x32x96xbf16, #tpu.memory_space<vmem>>, vector<1x32x96xbf16>
    %218 = vector.shape_cast %217 : vector<1x32x96xbf16> to vector<32x96xbf16>
    %cst_84 = arith.constant dense<0.000000e+00> : vector<16x96xf32>
    %219 = tpu.matmul %216, %218, %cst_84 {dimension_numbers = #tpu.dot_dimension_numbers<[1], [0], [0], [1], [0, 0, 1, 1], [], []>} : vector<16x32xbf16>, vector<32x96xbf16>, vector<16x96xf32> -> vector<16x96xf32>
    %c1_85 = arith.constant 1 : index
    %c0_86 = arith.constant 0 : index
    %c0_87 = arith.constant 0 : index
    %220 = vector.load %arg2[%c1_85, %c0_86, %c0_87] : memref<2x1x96xf32, #tpu.memory_space<vmem>>, vector<1x1x96xf32>
    %221 = vector.shape_cast %220 : vector<1x1x96xf32> to vector<1x96xf32>
    %222 = vector.broadcast %221 : vector<1x96xf32> to vector<16x96xf32>
    %223 = arith.addf %219, %222 : vector<16x96xf32>
    %224 = vector.extract_strided_slice %223 {offsets = [0, 0], sizes = [16, 8], strides = [1, 1]} : vector<16x96xf32> to vector<16x8xf32>
    %225 = arith.truncf %224 : vector<16x8xf32> to vector<16x8xbf16>
    %226 = vector.extract_strided_slice %223 {offsets = [0, 32], sizes = [16, 8], strides = [1, 1]} : vector<16x96xf32> to vector<16x8xf32>
    %227 = arith.truncf %226 : vector<16x8xf32> to vector<16x8xbf16>
    %228 = vector.extract_strided_slice %223 {offsets = [0, 64], sizes = [16, 8], strides = [1, 1]} : vector<16x96xf32> to vector<16x8xf32>
    %229 = arith.truncf %228 : vector<16x8xf32> to vector<16x8xbf16>
    %cst_88 = arith.constant dense<0.000000e+00> : vector<16x16xf32>
    %230 = tpu.matmul %225, %227, %cst_88 {dimension_numbers = #tpu.dot_dimension_numbers<[1], [1], [0], [0], [0, 0, 1, 0], [], []>} : vector<16x8xbf16>, vector<16x8xbf16>, vector<16x16xf32> -> vector<16x16xf32>
    %cst_89 = arith.constant 0.353553385 : f32
    %231 = vector.broadcast %cst_89 : f32 to vector<16x16xf32>
    %232 = arith.mulf %230, %231 : vector<16x16xf32>
    %233 = arith.addf %232, %38 : vector<16x16xf32>
    %cst_90 = arith.constant dense<0xFF800000> : vector<16xf32>
    %234 = vector.multi_reduction <maximumf>, %233, %cst_90 [1] : vector<16x16xf32> to vector<16xf32>
    %235 = vector.shape_cast %234 : vector<16xf32> to vector<16x1xf32>
    %236 = vector.broadcast %235 : vector<16x1xf32> to vector<16x16xf32>
    %237 = arith.subf %233, %236 : vector<16x16xf32>
    %238 = math.exp %237 : vector<16x16xf32>
    %cst_91 = arith.constant dense<0.000000e+00> : vector<16xf32>
    %239 = vector.multi_reduction <add>, %238, %cst_91 [1] : vector<16x16xf32> to vector<16xf32>
    %240 = vector.shape_cast %239 : vector<16xf32> to vector<16x1xf32>
    %241 = vector.broadcast %240 : vector<16x1xf32> to vector<16x16xf32>
    %242 = arith.divf %238, %241 : vector<16x16xf32>
    %243 = arith.truncf %242 : vector<16x16xf32> to vector<16x16xbf16>
    %cst_92 = arith.constant dense<0.000000e+00> : vector<16x8xf32>
    %244 = tpu.matmul %243, %229, %cst_92 {dimension_numbers = #tpu.dot_dimension_numbers<[1], [0], [0], [1], [0, 0, 1, 1], [], []>} : vector<16x16xbf16>, vector<16x8xbf16>, vector<16x8xf32> -> vector<16x8xf32>
    %245 = vector.extract_strided_slice %223 {offsets = [0, 8], sizes = [16, 8], strides = [1, 1]} : vector<16x96xf32> to vector<16x8xf32>
    %246 = arith.truncf %245 : vector<16x8xf32> to vector<16x8xbf16>
    %247 = vector.extract_strided_slice %223 {offsets = [0, 40], sizes = [16, 8], strides = [1, 1]} : vector<16x96xf32> to vector<16x8xf32>
    %248 = arith.truncf %247 : vector<16x8xf32> to vector<16x8xbf16>
    %249 = vector.extract_strided_slice %223 {offsets = [0, 72], sizes = [16, 8], strides = [1, 1]} : vector<16x96xf32> to vector<16x8xf32>
    %250 = arith.truncf %249 : vector<16x8xf32> to vector<16x8xbf16>
    %cst_93 = arith.constant dense<0.000000e+00> : vector<16x16xf32>
    %251 = tpu.matmul %246, %248, %cst_93 {dimension_numbers = #tpu.dot_dimension_numbers<[1], [1], [0], [0], [0, 0, 1, 0], [], []>} : vector<16x8xbf16>, vector<16x8xbf16>, vector<16x16xf32> -> vector<16x16xf32>
    %cst_94 = arith.constant 0.353553385 : f32
    %252 = vector.broadcast %cst_94 : f32 to vector<16x16xf32>
    %253 = arith.mulf %251, %252 : vector<16x16xf32>
    %254 = arith.addf %253, %38 : vector<16x16xf32>
    %cst_95 = arith.constant dense<0xFF800000> : vector<16xf32>
    %255 = vector.multi_reduction <maximumf>, %254, %cst_95 [1] : vector<16x16xf32> to vector<16xf32>
    %256 = vector.shape_cast %255 : vector<16xf32> to vector<16x1xf32>
    %257 = vector.broadcast %256 : vector<16x1xf32> to vector<16x16xf32>
    %258 = arith.subf %254, %257 : vector<16x16xf32>
    %259 = math.exp %258 : vector<16x16xf32>
    %cst_96 = arith.constant dense<0.000000e+00> : vector<16xf32>
    %260 = vector.multi_reduction <add>, %259, %cst_96 [1] : vector<16x16xf32> to vector<16xf32>
    %261 = vector.shape_cast %260 : vector<16xf32> to vector<16x1xf32>
    %262 = vector.broadcast %261 : vector<16x1xf32> to vector<16x16xf32>
    %263 = arith.divf %259, %262 : vector<16x16xf32>
    %264 = arith.truncf %263 : vector<16x16xf32> to vector<16x16xbf16>
    %cst_97 = arith.constant dense<0.000000e+00> : vector<16x8xf32>
    %265 = tpu.matmul %264, %250, %cst_97 {dimension_numbers = #tpu.dot_dimension_numbers<[1], [0], [0], [1], [0, 0, 1, 1], [], []>} : vector<16x16xbf16>, vector<16x8xbf16>, vector<16x8xf32> -> vector<16x8xf32>
    %266 = vector.extract_strided_slice %223 {offsets = [0, 16], sizes = [16, 8], strides = [1, 1]} : vector<16x96xf32> to vector<16x8xf32>
    %267 = arith.truncf %266 : vector<16x8xf32> to vector<16x8xbf16>
    %268 = vector.extract_strided_slice %223 {offsets = [0, 48], sizes = [16, 8], strides = [1, 1]} : vector<16x96xf32> to vector<16x8xf32>
    %269 = arith.truncf %268 : vector<16x8xf32> to vector<16x8xbf16>
    %270 = vector.extract_strided_slice %223 {offsets = [0, 80], sizes = [16, 8], strides = [1, 1]} : vector<16x96xf32> to vector<16x8xf32>
    %271 = arith.truncf %270 : vector<16x8xf32> to vector<16x8xbf16>
    %cst_98 = arith.constant dense<0.000000e+00> : vector<16x16xf32>
    %272 = tpu.matmul %267, %269, %cst_98 {dimension_numbers = #tpu.dot_dimension_numbers<[1], [1], [0], [0], [0, 0, 1, 0], [], []>} : vector<16x8xbf16>, vector<16x8xbf16>, vector<16x16xf32> -> vector<16x16xf32>
    %cst_99 = arith.constant 0.353553385 : f32
    %273 = vector.broadcast %cst_99 : f32 to vector<16x16xf32>
    %274 = arith.mulf %272, %273 : vector<16x16xf32>
    %275 = arith.addf %274, %38 : vector<16x16xf32>
    %cst_100 = arith.constant dense<0xFF800000> : vector<16xf32>
    %276 = vector.multi_reduction <maximumf>, %275, %cst_100 [1] : vector<16x16xf32> to vector<16xf32>
    %277 = vector.shape_cast %276 : vector<16xf32> to vector<16x1xf32>
    %278 = vector.broadcast %277 : vector<16x1xf32> to vector<16x16xf32>
    %279 = arith.subf %275, %278 : vector<16x16xf32>
    %280 = math.exp %279 : vector<16x16xf32>
    %cst_101 = arith.constant dense<0.000000e+00> : vector<16xf32>
    %281 = vector.multi_reduction <add>, %280, %cst_101 [1] : vector<16x16xf32> to vector<16xf32>
    %282 = vector.shape_cast %281 : vector<16xf32> to vector<16x1xf32>
    %283 = vector.broadcast %282 : vector<16x1xf32> to vector<16x16xf32>
    %284 = arith.divf %280, %283 : vector<16x16xf32>
    %285 = arith.truncf %284 : vector<16x16xf32> to vector<16x16xbf16>
    %cst_102 = arith.constant dense<0.000000e+00> : vector<16x8xf32>
    %286 = tpu.matmul %285, %271, %cst_102 {dimension_numbers = #tpu.dot_dimension_numbers<[1], [0], [0], [1], [0, 0, 1, 1], [], []>} : vector<16x16xbf16>, vector<16x8xbf16>, vector<16x8xf32> -> vector<16x8xf32>
    %287 = vector.extract_strided_slice %223 {offsets = [0, 24], sizes = [16, 8], strides = [1, 1]} : vector<16x96xf32> to vector<16x8xf32>
    %288 = arith.truncf %287 : vector<16x8xf32> to vector<16x8xbf16>
    %289 = vector.extract_strided_slice %223 {offsets = [0, 56], sizes = [16, 8], strides = [1, 1]} : vector<16x96xf32> to vector<16x8xf32>
    %290 = arith.truncf %289 : vector<16x8xf32> to vector<16x8xbf16>
    %291 = vector.extract_strided_slice %223 {offsets = [0, 88], sizes = [16, 8], strides = [1, 1]} : vector<16x96xf32> to vector<16x8xf32>
    %292 = arith.truncf %291 : vector<16x8xf32> to vector<16x8xbf16>
    %cst_103 = arith.constant dense<0.000000e+00> : vector<16x16xf32>
    %293 = tpu.matmul %288, %290, %cst_103 {dimension_numbers = #tpu.dot_dimension_numbers<[1], [1], [0], [0], [0, 0, 1, 0], [], []>} : vector<16x8xbf16>, vector<16x8xbf16>, vector<16x16xf32> -> vector<16x16xf32>
    %cst_104 = arith.constant 0.353553385 : f32
    %294 = vector.broadcast %cst_104 : f32 to vector<16x16xf32>
    %295 = arith.mulf %293, %294 : vector<16x16xf32>
    %296 = arith.addf %295, %38 : vector<16x16xf32>
    %cst_105 = arith.constant dense<0xFF800000> : vector<16xf32>
    %297 = vector.multi_reduction <maximumf>, %296, %cst_105 [1] : vector<16x16xf32> to vector<16xf32>
    %298 = vector.shape_cast %297 : vector<16xf32> to vector<16x1xf32>
    %299 = vector.broadcast %298 : vector<16x1xf32> to vector<16x16xf32>
    %300 = arith.subf %296, %299 : vector<16x16xf32>
    %301 = math.exp %300 : vector<16x16xf32>
    %cst_106 = arith.constant dense<0.000000e+00> : vector<16xf32>
    %302 = vector.multi_reduction <add>, %301, %cst_106 [1] : vector<16x16xf32> to vector<16xf32>
    %303 = vector.shape_cast %302 : vector<16xf32> to vector<16x1xf32>
    %304 = vector.broadcast %303 : vector<16x1xf32> to vector<16x16xf32>
    %305 = arith.divf %301, %304 : vector<16x16xf32>
    %306 = arith.truncf %305 : vector<16x16xf32> to vector<16x16xbf16>
    %cst_107 = arith.constant dense<0.000000e+00> : vector<16x8xf32>
    %307 = tpu.matmul %306, %292, %cst_107 {dimension_numbers = #tpu.dot_dimension_numbers<[1], [0], [0], [1], [0, 0, 1, 1], [], []>} : vector<16x16xbf16>, vector<16x8xbf16>, vector<16x8xf32> -> vector<16x8xf32>
    %308 = tpu.concatenate %244, %265, %286, %307 in 1 : vector<16x8xf32>, vector<16x8xf32>, vector<16x8xf32>, vector<16x8xf32> -> vector<16x32xf32>
    %309 = arith.truncf %308 : vector<16x32xf32> to vector<16x32xbf16>
    %c1_108 = arith.constant 1 : index
    %c0_109 = arith.constant 0 : index
    %c0_110 = arith.constant 0 : index
    %310 = vector.load %arg3[%c1_108, %c0_109, %c0_110] : memref<2x32x32xbf16, #tpu.memory_space<vmem>>, vector<1x32x32xbf16>
    %311 = vector.shape_cast %310 : vector<1x32x32xbf16> to vector<32x32xbf16>
    %cst_111 = arith.constant dense<0.000000e+00> : vector<16x32xf32>
    %312 = tpu.matmul %309, %311, %cst_111 {dimension_numbers = #tpu.dot_dimension_numbers<[1], [0], [0], [1], [0, 0, 1, 1], [], []>} : vector<16x32xbf16>, vector<32x32xbf16>, vector<16x32xf32> -> vector<16x32xf32>
    %c1_112 = arith.constant 1 : index
    %c0_113 = arith.constant 0 : index
    %c0_114 = arith.constant 0 : index
    %313 = vector.load %arg4[%c1_112, %c0_113, %c0_114] : memref<2x1x32xf32, #tpu.memory_space<vmem>>, vector<1x1x32xf32>
    %314 = vector.shape_cast %313 : vector<1x1x32xf32> to vector<1x32xf32>
    %315 = vector.broadcast %314 : vector<1x32xf32> to vector<16x32xf32>
    %316 = arith.addf %312, %315 : vector<16x32xf32>
    %317 = arith.addf %215, %316 : vector<16x32xf32>
    %c1_115 = arith.constant 1 : index
    %c0_116 = arith.constant 0 : index
    %c0_117 = arith.constant 0 : index
    %318 = vector.load %arg9[%c1_115, %c0_116, %c0_117] : memref<2x1x32xf32, #tpu.memory_space<vmem>>, vector<1x1x32xf32>
    %319 = vector.shape_cast %318 : vector<1x1x32xf32> to vector<1x32xf32>
    %c1_118 = arith.constant 1 : index
    %c0_119 = arith.constant 0 : index
    %c0_120 = arith.constant 0 : index
    %320 = vector.load %arg10[%c1_118, %c0_119, %c0_120] : memref<2x1x32xf32, #tpu.memory_space<vmem>>, vector<1x1x32xf32>
    %321 = vector.shape_cast %320 : vector<1x1x32xf32> to vector<1x32xf32>
    %cst_121 = arith.constant dense<0.000000e+00> : vector<16xf32>
    %322 = vector.multi_reduction <add>, %317, %cst_121 [1] : vector<16x32xf32> to vector<16xf32>
    %323 = vector.shape_cast %322 : vector<16xf32> to vector<16x1xf32>
    %cst_122 = arith.constant 3.200000e+01 : f32
    %324 = vector.broadcast %cst_122 : f32 to vector<16x1xf32>
    %325 = arith.divf %323, %324 : vector<16x1xf32>
    %326 = vector.broadcast %325 : vector<16x1xf32> to vector<16x32xf32>
    %327 = arith.subf %317, %326 : vector<16x32xf32>
    %328 = vector.broadcast %325 : vector<16x1xf32> to vector<16x32xf32>
    %329 = arith.subf %317, %328 : vector<16x32xf32>
    %330 = arith.mulf %327, %329 : vector<16x32xf32>
    %cst_123 = arith.constant dense<0.000000e+00> : vector<16xf32>
    %331 = vector.multi_reduction <add>, %330, %cst_123 [1] : vector<16x32xf32> to vector<16xf32>
    %332 = vector.shape_cast %331 : vector<16xf32> to vector<16x1xf32>
    %cst_124 = arith.constant 3.200000e+01 : f32
    %333 = vector.broadcast %cst_124 : f32 to vector<16x1xf32>
    %334 = arith.divf %332, %333 : vector<16x1xf32>
    %335 = vector.broadcast %325 : vector<16x1xf32> to vector<16x32xf32>
    %336 = arith.subf %317, %335 : vector<16x32xf32>
    %cst_125 = arith.constant 9.99999974E-6 : f32
    %337 = vector.broadcast %cst_125 : f32 to vector<16x1xf32>
    %338 = arith.addf %334, %337 : vector<16x1xf32>
    %339 = math.rsqrt %338 : vector<16x1xf32>
    %340 = vector.broadcast %339 : vector<16x1xf32> to vector<16x32xf32>
    %341 = arith.mulf %336, %340 : vector<16x32xf32>
    %342 = vector.broadcast %319 : vector<1x32xf32> to vector<16x32xf32>
    %343 = arith.mulf %341, %342 : vector<16x32xf32>
    %344 = vector.broadcast %321 : vector<1x32xf32> to vector<16x32xf32>
    %345 = arith.addf %343, %344 : vector<16x32xf32>
    %346 = arith.truncf %345 : vector<16x32xf32> to vector<16x32xbf16>
    %c1_126 = arith.constant 1 : index
    %c0_127 = arith.constant 0 : index
    %c0_128 = arith.constant 0 : index
    %347 = vector.load %arg5[%c1_126, %c0_127, %c0_128] : memref<2x32x64xbf16, #tpu.memory_space<vmem>>, vector<1x32x64xbf16>
    %348 = vector.shape_cast %347 : vector<1x32x64xbf16> to vector<32x64xbf16>
    %cst_129 = arith.constant dense<0.000000e+00> : vector<16x64xf32>
    %349 = tpu.matmul %346, %348, %cst_129 {dimension_numbers = #tpu.dot_dimension_numbers<[1], [0], [0], [1], [0, 0, 1, 1], [], []>} : vector<16x32xbf16>, vector<32x64xbf16>, vector<16x64xf32> -> vector<16x64xf32>
    %c1_130 = arith.constant 1 : index
    %c0_131 = arith.constant 0 : index
    %c0_132 = arith.constant 0 : index
    %350 = vector.load %arg6[%c1_130, %c0_131, %c0_132] : memref<2x1x64xf32, #tpu.memory_space<vmem>>, vector<1x1x64xf32>
    %351 = vector.shape_cast %350 : vector<1x1x64xf32> to vector<1x64xf32>
    %352 = vector.broadcast %351 : vector<1x64xf32> to vector<16x64xf32>
    %353 = arith.addf %349, %352 : vector<16x64xf32>
    %cst_133 = arith.constant 0.000000e+00 : f32
    %354 = vector.broadcast %cst_133 : f32 to vector<16x64xf32>
    %355 = arith.maximumf %353, %354 : vector<16x64xf32>
    %356 = arith.truncf %355 : vector<16x64xf32> to vector<16x64xbf16>
    %c1_134 = arith.constant 1 : index
    %c0_135 = arith.constant 0 : index
    %c0_136 = arith.constant 0 : index
    %357 = vector.load %arg7[%c1_134, %c0_135, %c0_136] : memref<2x64x32xbf16, #tpu.memory_space<vmem>>, vector<1x64x32xbf16>
    %358 = vector.shape_cast %357 : vector<1x64x32xbf16> to vector<64x32xbf16>
    %cst_137 = arith.constant dense<0.000000e+00> : vector<16x32xf32>
    %359 = tpu.matmul %356, %358, %cst_137 {dimension_numbers = #tpu.dot_dimension_numbers<[1], [0], [0], [1], [0, 0, 1, 1], [], []>} : vector<16x64xbf16>, vector<64x32xbf16>, vector<16x32xf32> -> vector<16x32xf32>
    %c1_138 = arith.constant 1 : index
    %c0_139 = arith.constant 0 : index
    %c0_140 = arith.constant 0 : index
    %360 = vector.load %arg8[%c1_138, %c0_139, %c0_140] : memref<2x1x32xf32, #tpu.memory_space<vmem>>, vector<1x1x32xf32>
    %361 = vector.shape_cast %360 : vector<1x1x32xf32> to vector<1x32xf32>
    %362 = vector.broadcast %361 : vector<1x32xf32> to vector<16x32xf32>
    %363 = arith.addf %359, %362 : vector<16x32xf32>
    %364 = arith.addf %345, %363 : vector<16x32xf32>
    %c1_141 = arith.constant 1 : index
    %c0_142 = arith.constant 0 : index
    %c0_143 = arith.constant 0 : index
    %365 = vector.load %arg11[%c1_141, %c0_142, %c0_143] : memref<2x1x32xf32, #tpu.memory_space<vmem>>, vector<1x1x32xf32>
    %366 = vector.shape_cast %365 : vector<1x1x32xf32> to vector<1x32xf32>
    %c1_144 = arith.constant 1 : index
    %c0_145 = arith.constant 0 : index
    %c0_146 = arith.constant 0 : index
    %367 = vector.load %arg12[%c1_144, %c0_145, %c0_146] : memref<2x1x32xf32, #tpu.memory_space<vmem>>, vector<1x1x32xf32>
    %368 = vector.shape_cast %367 : vector<1x1x32xf32> to vector<1x32xf32>
    %cst_147 = arith.constant dense<0.000000e+00> : vector<16xf32>
    %369 = vector.multi_reduction <add>, %364, %cst_147 [1] : vector<16x32xf32> to vector<16xf32>
    %370 = vector.shape_cast %369 : vector<16xf32> to vector<16x1xf32>
    %cst_148 = arith.constant 3.200000e+01 : f32
    %371 = vector.broadcast %cst_148 : f32 to vector<16x1xf32>
    %372 = arith.divf %370, %371 : vector<16x1xf32>
    %373 = vector.broadcast %372 : vector<16x1xf32> to vector<16x32xf32>
    %374 = arith.subf %364, %373 : vector<16x32xf32>
    %375 = vector.broadcast %372 : vector<16x1xf32> to vector<16x32xf32>
    %376 = arith.subf %364, %375 : vector<16x32xf32>
    %377 = arith.mulf %374, %376 : vector<16x32xf32>
    %cst_149 = arith.constant dense<0.000000e+00> : vector<16xf32>
    %378 = vector.multi_reduction <add>, %377, %cst_149 [1] : vector<16x32xf32> to vector<16xf32>
    %379 = vector.shape_cast %378 : vector<16xf32> to vector<16x1xf32>
    %cst_150 = arith.constant 3.200000e+01 : f32
    %380 = vector.broadcast %cst_150 : f32 to vector<16x1xf32>
    %381 = arith.divf %379, %380 : vector<16x1xf32>
    %382 = vector.broadcast %372 : vector<16x1xf32> to vector<16x32xf32>
    %383 = arith.subf %364, %382 : vector<16x32xf32>
    %cst_151 = arith.constant 9.99999974E-6 : f32
    %384 = vector.broadcast %cst_151 : f32 to vector<16x1xf32>
    %385 = arith.addf %381, %384 : vector<16x1xf32>
    %386 = math.rsqrt %385 : vector<16x1xf32>
    %387 = vector.broadcast %386 : vector<16x1xf32> to vector<16x32xf32>
    %388 = arith.mulf %383, %387 : vector<16x32xf32>
    %389 = vector.broadcast %366 : vector<1x32xf32> to vector<16x32xf32>
    %390 = arith.mulf %388, %389 : vector<16x32xf32>
    %391 = vector.broadcast %368 : vector<1x32xf32> to vector<16x32xf32>
    %392 = arith.addf %390, %391 : vector<16x32xf32>
    %c0_152 = arith.constant 0 : index
    %c0_153 = arith.constant 0 : index
    %393 = vector.load %arg13[%c0_152, %c0_153] : memref<1x32xf32, #tpu.memory_space<vmem>>, vector<1x32xf32>
    %c0_154 = arith.constant 0 : index
    %c0_155 = arith.constant 0 : index
    %394 = vector.load %arg14[%c0_154, %c0_155] : memref<1x32xf32, #tpu.memory_space<vmem>>, vector<1x32xf32>
    %cst_156 = arith.constant dense<0.000000e+00> : vector<16xf32>
    %395 = vector.multi_reduction <add>, %392, %cst_156 [1] : vector<16x32xf32> to vector<16xf32>
    %396 = vector.shape_cast %395 : vector<16xf32> to vector<16x1xf32>
    %cst_157 = arith.constant 3.200000e+01 : f32
    %397 = vector.broadcast %cst_157 : f32 to vector<16x1xf32>
    %398 = arith.divf %396, %397 : vector<16x1xf32>
    %399 = vector.broadcast %398 : vector<16x1xf32> to vector<16x32xf32>
    %400 = arith.subf %392, %399 : vector<16x32xf32>
    %401 = vector.broadcast %398 : vector<16x1xf32> to vector<16x32xf32>
    %402 = arith.subf %392, %401 : vector<16x32xf32>
    %403 = arith.mulf %400, %402 : vector<16x32xf32>
    %cst_158 = arith.constant dense<0.000000e+00> : vector<16xf32>
    %404 = vector.multi_reduction <add>, %403, %cst_158 [1] : vector<16x32xf32> to vector<16xf32>
    %405 = vector.shape_cast %404 : vector<16xf32> to vector<16x1xf32>
    %cst_159 = arith.constant 3.200000e+01 : f32
    %406 = vector.broadcast %cst_159 : f32 to vector<16x1xf32>
    %407 = arith.divf %405, %406 : vector<16x1xf32>
    %408 = vector.broadcast %398 : vector<16x1xf32> to vector<16x32xf32>
    %409 = arith.subf %392, %408 : vector<16x32xf32>
    %cst_160 = arith.constant 9.99999974E-6 : f32
    %410 = vector.broadcast %cst_160 : f32 to vector<16x1xf32>
    %411 = arith.addf %407, %410 : vector<16x1xf32>
    %412 = math.rsqrt %411 : vector<16x1xf32>
    %413 = vector.broadcast %412 : vector<16x1xf32> to vector<16x32xf32>
    %414 = arith.mulf %409, %413 : vector<16x32xf32>
    %415 = vector.broadcast %393 : vector<1x32xf32> to vector<16x32xf32>
    %416 = arith.mulf %414, %415 : vector<16x32xf32>
    %417 = vector.broadcast %394 : vector<1x32xf32> to vector<16x32xf32>
    %418 = arith.addf %416, %417 : vector<16x32xf32>
    %419 = arith.truncf %418 : vector<16x32xf32> to vector<16x32xbf16>
    %c0_161 = arith.constant 0 : index
    %c0_162 = arith.constant 0 : index
    %420 = vector.load %arg19[%c0_161, %c0_162] : memref<32x1xbf16, #tpu.memory_space<vmem>>, vector<32x1xbf16>
    %cst_163 = arith.constant 0.000000e+00 : f32
    %421 = vector.broadcast %cst_163 : f32 to vector<2x1xf32>
    %c0_164 = arith.constant 0 : index
    %c0_165 = arith.constant 0 : index
    %c0_166 = arith.constant 0 : index
    %422 = vector.load %arg15[%c0_164, %c0_165, %c0_166] : memref<3x32x16xbf16, #tpu.memory_space<vmem>>, vector<3x32x16xbf16>
    %cst_167 = arith.constant 0.000000e+00 : f32
    %423 = vector.broadcast %cst_167 : f32 to vector<12x16xf32>
    %424 = vector.extract_strided_slice %419 {offsets = [0, 0], sizes = [12, 32], strides = [1, 1]} : vector<16x32xbf16> to vector<12x32xbf16>
    %425 = vector.extract_strided_slice %422 {offsets = [0, 0, 0], sizes = [1, 32, 16], strides = [1, 1, 1]} : vector<3x32x16xbf16> to vector<1x32x16xbf16>
    %426 = vector.shape_cast %425 : vector<1x32x16xbf16> to vector<32x16xbf16>
    %cst_168 = arith.constant dense<0.000000e+00> : vector<12x16xf32>
    %427 = tpu.matmul %424, %426, %cst_168 {dimension_numbers = #tpu.dot_dimension_numbers<[1], [0], [0], [1], [0, 0, 1, 1], [], []>} : vector<12x32xbf16>, vector<32x16xbf16>, vector<12x16xf32> -> vector<12x16xf32>
    %428 = arith.addf %423, %427 : vector<12x16xf32>
    %429 = vector.extract_strided_slice %419 {offsets = [2, 0], sizes = [12, 32], strides = [1, 1]} : vector<16x32xbf16> to vector<12x32xbf16>
    %430 = vector.extract_strided_slice %422 {offsets = [1, 0, 0], sizes = [1, 32, 16], strides = [1, 1, 1]} : vector<3x32x16xbf16> to vector<1x32x16xbf16>
    %431 = vector.shape_cast %430 : vector<1x32x16xbf16> to vector<32x16xbf16>
    %cst_169 = arith.constant dense<0.000000e+00> : vector<12x16xf32>
    %432 = tpu.matmul %429, %431, %cst_169 {dimension_numbers = #tpu.dot_dimension_numbers<[1], [0], [0], [1], [0, 0, 1, 1], [], []>} : vector<12x32xbf16>, vector<32x16xbf16>, vector<12x16xf32> -> vector<12x16xf32>
    %433 = arith.addf %428, %432 : vector<12x16xf32>
    %434 = vector.extract_strided_slice %419 {offsets = [4, 0], sizes = [12, 32], strides = [1, 1]} : vector<16x32xbf16> to vector<12x32xbf16>
    %435 = vector.extract_strided_slice %422 {offsets = [2, 0, 0], sizes = [1, 32, 16], strides = [1, 1, 1]} : vector<3x32x16xbf16> to vector<1x32x16xbf16>
    %436 = vector.shape_cast %435 : vector<1x32x16xbf16> to vector<32x16xbf16>
    %cst_170 = arith.constant dense<0.000000e+00> : vector<12x16xf32>
    %437 = tpu.matmul %434, %436, %cst_170 {dimension_numbers = #tpu.dot_dimension_numbers<[1], [0], [0], [1], [0, 0, 1, 1], [], []>} : vector<12x32xbf16>, vector<32x16xbf16>, vector<12x16xf32> -> vector<12x16xf32>
    %438 = arith.addf %433, %437 : vector<12x16xf32>
    %c0_171 = arith.constant 0 : index
    %c0_172 = arith.constant 0 : index
    %439 = vector.load %arg17[%c0_171, %c0_172] : memref<1x16xf32, #tpu.memory_space<vmem>>, vector<1x16xf32>
    %440 = vector.broadcast %439 : vector<1x16xf32> to vector<12x16xf32>
    %441 = arith.addf %438, %440 : vector<12x16xf32>
    %cst_173 = arith.constant 0.000000e+00 : f32
    %442 = vector.broadcast %cst_173 : f32 to vector<12x16xf32>
    %443 = arith.maximumf %441, %442 : vector<12x16xf32>
    %444 = vector.extract_strided_slice %443 {offsets = [0, 0], sizes = [2, 16], strides = [1, 1]} : vector<12x16xf32> to vector<2x16xf32>
    %445 = vector.extract_strided_slice %443 {offsets = [2, 0], sizes = [2, 16], strides = [1, 1]} : vector<12x16xf32> to vector<2x16xf32>
    %446 = arith.maximumf %444, %445 : vector<2x16xf32>
    %447 = vector.extract_strided_slice %443 {offsets = [4, 0], sizes = [2, 16], strides = [1, 1]} : vector<12x16xf32> to vector<2x16xf32>
    %448 = arith.maximumf %446, %447 : vector<2x16xf32>
    %449 = vector.extract_strided_slice %443 {offsets = [6, 0], sizes = [2, 16], strides = [1, 1]} : vector<12x16xf32> to vector<2x16xf32>
    %450 = arith.maximumf %448, %449 : vector<2x16xf32>
    %451 = vector.extract_strided_slice %443 {offsets = [8, 0], sizes = [2, 16], strides = [1, 1]} : vector<12x16xf32> to vector<2x16xf32>
    %452 = arith.maximumf %450, %451 : vector<2x16xf32>
    %453 = vector.extract_strided_slice %443 {offsets = [10, 0], sizes = [2, 16], strides = [1, 1]} : vector<12x16xf32> to vector<2x16xf32>
    %454 = arith.maximumf %452, %453 : vector<2x16xf32>
    %cst_174 = arith.constant 0.707106769 : f32
    %455 = vector.broadcast %cst_174 : f32 to vector<2x16xf32>
    %456 = arith.mulf %454, %455 : vector<2x16xf32>
    %cst_175 = arith.constant 0.000000e+00 : f32
    %457 = vector.broadcast %cst_175 : f32 to vector<2x16xf32>
    %458 = arith.cmpf olt, %456, %457 : vector<2x16xf32>
    %cst_176 = arith.constant -1.000000e+00 : f32
    %cst_177 = arith.constant 1.000000e+00 : f32
    %459 = vector.broadcast %cst_176 : f32 to vector<2x16xf32>
    %460 = vector.broadcast %cst_177 : f32 to vector<2x16xf32>
    %461 = arith.select %458, %459, %460 : vector<2x16xi1>, vector<2x16xf32>
    %462 = math.absf %456 : vector<2x16xf32>
    %cst_178 = arith.constant 0.327591091 : f32
    %463 = vector.broadcast %cst_178 : f32 to vector<2x16xf32>
    %464 = arith.mulf %463, %462 : vector<2x16xf32>
    %cst_179 = arith.constant 1.000000e+00 : f32
    %465 = vector.broadcast %cst_179 : f32 to vector<2x16xf32>
    %466 = arith.addf %465, %464 : vector<2x16xf32>
    %cst_180 = arith.constant 1.000000e+00 : f32
    %467 = vector.broadcast %cst_180 : f32 to vector<2x16xf32>
    %468 = arith.divf %467, %466 : vector<2x16xf32>
    %cst_181 = arith.constant 1.06140542 : f32
    %469 = vector.broadcast %cst_181 : f32 to vector<2x16xf32>
    %470 = arith.mulf %469, %468 : vector<2x16xf32>
    %cst_182 = arith.constant 1.45315206 : f32
    %471 = vector.broadcast %cst_182 : f32 to vector<2x16xf32>
    %472 = arith.subf %470, %471 : vector<2x16xf32>
    %473 = arith.mulf %472, %468 : vector<2x16xf32>
    %cst_183 = arith.constant 1.42141378 : f32
    %474 = vector.broadcast %cst_183 : f32 to vector<2x16xf32>
    %475 = arith.addf %473, %474 : vector<2x16xf32>
    %476 = arith.mulf %475, %468 : vector<2x16xf32>
    %cst_184 = arith.constant 0.284496725 : f32
    %477 = vector.broadcast %cst_184 : f32 to vector<2x16xf32>
    %478 = arith.subf %476, %477 : vector<2x16xf32>
    %479 = arith.mulf %478, %468 : vector<2x16xf32>
    %cst_185 = arith.constant 0.254829586 : f32
    %480 = vector.broadcast %cst_185 : f32 to vector<2x16xf32>
    %481 = arith.addf %479, %480 : vector<2x16xf32>
    %482 = arith.mulf %481, %468 : vector<2x16xf32>
    %cst_186 = arith.constant 0.000000e+00 : f32
    %483 = vector.broadcast %cst_186 : f32 to vector<2x16xf32>
    %484 = arith.subf %483, %462 : vector<2x16xf32>
    %485 = arith.mulf %484, %462 : vector<2x16xf32>
    %486 = math.exp %485 : vector<2x16xf32>
    %487 = arith.mulf %482, %486 : vector<2x16xf32>
    %cst_187 = arith.constant 1.000000e+00 : f32
    %488 = vector.broadcast %cst_187 : f32 to vector<2x16xf32>
    %489 = arith.subf %488, %487 : vector<2x16xf32>
    %490 = arith.mulf %461, %489 : vector<2x16xf32>
    %cst_188 = arith.constant 5.000000e-01 : f32
    %491 = vector.broadcast %cst_188 : f32 to vector<2x16xf32>
    %492 = arith.mulf %491, %454 : vector<2x16xf32>
    %cst_189 = arith.constant 1.000000e+00 : f32
    %493 = vector.broadcast %cst_189 : f32 to vector<2x16xf32>
    %494 = arith.addf %493, %490 : vector<2x16xf32>
    %495 = arith.mulf %492, %494 : vector<2x16xf32>
    %496 = arith.truncf %495 : vector<2x16xf32> to vector<2x16xbf16>
    %497 = vector.extract_strided_slice %420 {offsets = [0, 0], sizes = [16, 1], strides = [1, 1]} : vector<32x1xbf16> to vector<16x1xbf16>
    %cst_190 = arith.constant dense<0.000000e+00> : vector<2x1xf32>
    %498 = tpu.matmul %496, %497, %cst_190 {dimension_numbers = #tpu.dot_dimension_numbers<[1], [0], [0], [1], [0, 0, 1, 1], [], []>} : vector<2x16xbf16>, vector<16x1xbf16>, vector<2x1xf32> -> vector<2x1xf32>
    %499 = arith.addf %421, %498 : vector<2x1xf32>
    %c0_191 = arith.constant 0 : index
    %c0_192 = arith.constant 0 : index
    %c0_193 = arith.constant 0 : index
    %500 = vector.load %arg16[%c0_191, %c0_192, %c0_193] : memref<3x32x16xbf16, #tpu.memory_space<vmem>>, vector<3x32x16xbf16>
    %cst_194 = arith.constant 0.000000e+00 : f32
    %501 = vector.broadcast %cst_194 : f32 to vector<12x16xf32>
    %502 = vector.extract_strided_slice %419 {offsets = [0, 0], sizes = [12, 32], strides = [1, 1]} : vector<16x32xbf16> to vector<12x32xbf16>
    %503 = vector.extract_strided_slice %500 {offsets = [0, 0, 0], sizes = [1, 32, 16], strides = [1, 1, 1]} : vector<3x32x16xbf16> to vector<1x32x16xbf16>
    %504 = vector.shape_cast %503 : vector<1x32x16xbf16> to vector<32x16xbf16>
    %cst_195 = arith.constant dense<0.000000e+00> : vector<12x16xf32>
    %505 = tpu.matmul %502, %504, %cst_195 {dimension_numbers = #tpu.dot_dimension_numbers<[1], [0], [0], [1], [0, 0, 1, 1], [], []>} : vector<12x32xbf16>, vector<32x16xbf16>, vector<12x16xf32> -> vector<12x16xf32>
    %506 = arith.addf %501, %505 : vector<12x16xf32>
    %507 = vector.extract_strided_slice %419 {offsets = [2, 0], sizes = [12, 32], strides = [1, 1]} : vector<16x32xbf16> to vector<12x32xbf16>
    %508 = vector.extract_strided_slice %500 {offsets = [1, 0, 0], sizes = [1, 32, 16], strides = [1, 1, 1]} : vector<3x32x16xbf16> to vector<1x32x16xbf16>
    %509 = vector.shape_cast %508 : vector<1x32x16xbf16> to vector<32x16xbf16>
    %cst_196 = arith.constant dense<0.000000e+00> : vector<12x16xf32>
    %510 = tpu.matmul %507, %509, %cst_196 {dimension_numbers = #tpu.dot_dimension_numbers<[1], [0], [0], [1], [0, 0, 1, 1], [], []>} : vector<12x32xbf16>, vector<32x16xbf16>, vector<12x16xf32> -> vector<12x16xf32>
    %511 = arith.addf %506, %510 : vector<12x16xf32>
    %512 = vector.extract_strided_slice %419 {offsets = [4, 0], sizes = [12, 32], strides = [1, 1]} : vector<16x32xbf16> to vector<12x32xbf16>
    %513 = vector.extract_strided_slice %500 {offsets = [2, 0, 0], sizes = [1, 32, 16], strides = [1, 1, 1]} : vector<3x32x16xbf16> to vector<1x32x16xbf16>
    %514 = vector.shape_cast %513 : vector<1x32x16xbf16> to vector<32x16xbf16>
    %cst_197 = arith.constant dense<0.000000e+00> : vector<12x16xf32>
    %515 = tpu.matmul %512, %514, %cst_197 {dimension_numbers = #tpu.dot_dimension_numbers<[1], [0], [0], [1], [0, 0, 1, 1], [], []>} : vector<12x32xbf16>, vector<32x16xbf16>, vector<12x16xf32> -> vector<12x16xf32>
    %516 = arith.addf %511, %515 : vector<12x16xf32>
    %c0_198 = arith.constant 0 : index
    %c0_199 = arith.constant 0 : index
    %517 = vector.load %arg18[%c0_198, %c0_199] : memref<1x16xf32, #tpu.memory_space<vmem>>, vector<1x16xf32>
    %518 = vector.broadcast %517 : vector<1x16xf32> to vector<12x16xf32>
    %519 = arith.addf %516, %518 : vector<12x16xf32>
    %cst_200 = arith.constant 0.000000e+00 : f32
    %520 = vector.broadcast %cst_200 : f32 to vector<12x16xf32>
    %521 = arith.maximumf %519, %520 : vector<12x16xf32>
    %522 = vector.extract_strided_slice %521 {offsets = [0, 0], sizes = [2, 16], strides = [1, 1]} : vector<12x16xf32> to vector<2x16xf32>
    %523 = vector.extract_strided_slice %521 {offsets = [2, 0], sizes = [2, 16], strides = [1, 1]} : vector<12x16xf32> to vector<2x16xf32>
    %524 = arith.maximumf %522, %523 : vector<2x16xf32>
    %525 = vector.extract_strided_slice %521 {offsets = [4, 0], sizes = [2, 16], strides = [1, 1]} : vector<12x16xf32> to vector<2x16xf32>
    %526 = arith.maximumf %524, %525 : vector<2x16xf32>
    %527 = vector.extract_strided_slice %521 {offsets = [6, 0], sizes = [2, 16], strides = [1, 1]} : vector<12x16xf32> to vector<2x16xf32>
    %528 = arith.maximumf %526, %527 : vector<2x16xf32>
    %529 = vector.extract_strided_slice %521 {offsets = [8, 0], sizes = [2, 16], strides = [1, 1]} : vector<12x16xf32> to vector<2x16xf32>
    %530 = arith.maximumf %528, %529 : vector<2x16xf32>
    %531 = vector.extract_strided_slice %521 {offsets = [10, 0], sizes = [2, 16], strides = [1, 1]} : vector<12x16xf32> to vector<2x16xf32>
    %532 = arith.maximumf %530, %531 : vector<2x16xf32>
    %cst_201 = arith.constant 0.707106769 : f32
    %533 = vector.broadcast %cst_201 : f32 to vector<2x16xf32>
    %534 = arith.mulf %532, %533 : vector<2x16xf32>
    %cst_202 = arith.constant 0.000000e+00 : f32
    %535 = vector.broadcast %cst_202 : f32 to vector<2x16xf32>
    %536 = arith.cmpf olt, %534, %535 : vector<2x16xf32>
    %cst_203 = arith.constant -1.000000e+00 : f32
    %cst_204 = arith.constant 1.000000e+00 : f32
    %537 = vector.broadcast %cst_203 : f32 to vector<2x16xf32>
    %538 = vector.broadcast %cst_204 : f32 to vector<2x16xf32>
    %539 = arith.select %536, %537, %538 : vector<2x16xi1>, vector<2x16xf32>
    %540 = math.absf %534 : vector<2x16xf32>
    %cst_205 = arith.constant 0.327591091 : f32
    %541 = vector.broadcast %cst_205 : f32 to vector<2x16xf32>
    %542 = arith.mulf %541, %540 : vector<2x16xf32>
    %cst_206 = arith.constant 1.000000e+00 : f32
    %543 = vector.broadcast %cst_206 : f32 to vector<2x16xf32>
    %544 = arith.addf %543, %542 : vector<2x16xf32>
    %cst_207 = arith.constant 1.000000e+00 : f32
    %545 = vector.broadcast %cst_207 : f32 to vector<2x16xf32>
    %546 = arith.divf %545, %544 : vector<2x16xf32>
    %cst_208 = arith.constant 1.06140542 : f32
    %547 = vector.broadcast %cst_208 : f32 to vector<2x16xf32>
    %548 = arith.mulf %547, %546 : vector<2x16xf32>
    %cst_209 = arith.constant 1.45315206 : f32
    %549 = vector.broadcast %cst_209 : f32 to vector<2x16xf32>
    %550 = arith.subf %548, %549 : vector<2x16xf32>
    %551 = arith.mulf %550, %546 : vector<2x16xf32>
    %cst_210 = arith.constant 1.42141378 : f32
    %552 = vector.broadcast %cst_210 : f32 to vector<2x16xf32>
    %553 = arith.addf %551, %552 : vector<2x16xf32>
    %554 = arith.mulf %553, %546 : vector<2x16xf32>
    %cst_211 = arith.constant 0.284496725 : f32
    %555 = vector.broadcast %cst_211 : f32 to vector<2x16xf32>
    %556 = arith.subf %554, %555 : vector<2x16xf32>
    %557 = arith.mulf %556, %546 : vector<2x16xf32>
    %cst_212 = arith.constant 0.254829586 : f32
    %558 = vector.broadcast %cst_212 : f32 to vector<2x16xf32>
    %559 = arith.addf %557, %558 : vector<2x16xf32>
    %560 = arith.mulf %559, %546 : vector<2x16xf32>
    %cst_213 = arith.constant 0.000000e+00 : f32
    %561 = vector.broadcast %cst_213 : f32 to vector<2x16xf32>
    %562 = arith.subf %561, %540 : vector<2x16xf32>
    %563 = arith.mulf %562, %540 : vector<2x16xf32>
    %564 = math.exp %563 : vector<2x16xf32>
    %565 = arith.mulf %560, %564 : vector<2x16xf32>
    %cst_214 = arith.constant 1.000000e+00 : f32
    %566 = vector.broadcast %cst_214 : f32 to vector<2x16xf32>
    %567 = arith.subf %566, %565 : vector<2x16xf32>
    %568 = arith.mulf %539, %567 : vector<2x16xf32>
    %cst_215 = arith.constant 5.000000e-01 : f32
    %569 = vector.broadcast %cst_215 : f32 to vector<2x16xf32>
    %570 = arith.mulf %569, %532 : vector<2x16xf32>
    %cst_216 = arith.constant 1.000000e+00 : f32
    %571 = vector.broadcast %cst_216 : f32 to vector<2x16xf32>
    %572 = arith.addf %571, %568 : vector<2x16xf32>
    %573 = arith.mulf %570, %572 : vector<2x16xf32>
    %574 = arith.truncf %573 : vector<2x16xf32> to vector<2x16xbf16>
    %575 = vector.extract_strided_slice %420 {offsets = [16, 0], sizes = [16, 1], strides = [1, 1]} : vector<32x1xbf16> to vector<16x1xbf16>
    %cst_217 = arith.constant dense<0.000000e+00> : vector<2x1xf32>
    %576 = tpu.matmul %574, %575, %cst_217 {dimension_numbers = #tpu.dot_dimension_numbers<[1], [0], [0], [1], [0, 0, 1, 1], [], []>} : vector<2x16xbf16>, vector<16x1xbf16>, vector<2x1xf32> -> vector<2x1xf32>
    %577 = arith.addf %499, %576 : vector<2x1xf32>
    %c0_218 = arith.constant 0 : index
    %c0_219 = arith.constant 0 : index
    %578 = vector.load %arg20[%c0_218, %c0_219] : memref<1x1xf32, #tpu.memory_space<vmem>>, vector<1x1xf32>
    %579 = vector.broadcast %578 : vector<1x1xf32> to vector<2x1xf32>
    %580 = arith.addf %577, %579 : vector<2x1xf32>
    %c0_220 = arith.constant 0 : index
    %c0_221 = arith.constant 0 : index
    %581 = vector.load %arg21[%c0_220, %c0_221] : memref<2x1xf32, #tpu.memory_space<vmem>>, vector<2x1xf32>
    tpu.vector_store %arg21[%c0_220, %c0_221], %580 {strides = array<i32>} : memref<2x1xf32, #tpu.memory_space<vmem>>, vector<2x1xf32>,
    return
  }
}

</mosaic_0001>

<llo_original>
// kernel: kl_model_plus_forward.1
$region0: #{kl_model_plus_forward.1}
  #allocation0 [shape = 'u32[]', space=smem, size = 0x4, offset = 0x4, fixed_abs, tag = 'smem constant byte address 0x4 - core index']
  #allocation1 [shape = 'u32[144,128]{1,0:T(1,128)}', space=vmem, size = 0x12000, scoped, tag = 'internal scratch']
  #allocation2 [shape = 'f32[1,1]{1,0:T(1,128)S(1)}', space=vmem, size = 0x200, scoped, tag = 'scoped memory for kl_model_plus_forward.1']
  %s0 = inlined_call_operand.vmem [shape: f32[16,32], index: 0, kind: input, shape index: {}]
  %s1 = inlined_call_operand.vmem [shape: bf16[2,32,96], index: 1, kind: input, shape index: {}]
  %s2 = inlined_call_operand.vmem [shape: f32[2,1,96], index: 2, kind: input, shape index: {}]
  %s3 = inlined_call_operand.vmem [shape: bf16[2,32,32], index: 3, kind: input, shape index: {}]
  %s4 = inlined_call_operand.vmem [shape: f32[2,1,32], index: 4, kind: input, shape index: {}]
  %s5 = inlined_call_operand.vmem [shape: bf16[2,32,64], index: 5, kind: input, shape index: {}]
  %s6 = inlined_call_operand.vmem [shape: f32[2,1,64], index: 6, kind: input, shape index: {}]
  %s7 = inlined_call_operand.vmem [shape: bf16[2,64,32], index: 7, kind: input, shape index: {}]
  %s8 = inlined_call_operand.vmem [shape: f32[2,1,32], index: 8, kind: input, shape index: {}]
  %s9 = inlined_call_operand.vmem [shape: f32[2,1,32], index: 9, kind: input, shape index: {}]
  %s10 = inlined_call_operand.vmem [shape: f32[2,1,32], index: 10, kind: input, shape index: {}]
  %s11 = inlined_call_operand.vmem [shape: f32[2,1,32], index: 11, kind: input, shape index: {}]
  %s12 = inlined_call_operand.vmem [shape: f32[2,1,32], index: 12, kind: input, shape index: {}]
  %s13 = inlined_call_operand.vmem [shape: f32[1,32], index: 13, kind: input, shape index: {}]
  %s14 = inlined_call_operand.vmem [shape: f32[1,32], index: 14, kind: input, shape index: {}]
  %s15 = inlined_call_operand.vmem [shape: bf16[3,32,16], index: 15, kind: input, shape index: {}]
  %s16 = inlined_call_operand.vmem [shape: bf16[3,32,16], index: 16, kind: input, shape index: {}]
  %s17 = inlined_call_operand.vmem [shape: f32[1,16], index: 17, kind: input, shape index: {}]
  %s18 = inlined_call_operand.vmem [shape: f32[1,16], index: 18, kind: input, shape index: {}]
  %s19 = inlined_call_operand.vmem [shape: bf16[32,1], index: 19, kind: input, shape index: {}]
  %s20 = inlined_call_operand.<no memory space> [shape: f32[1,1], index: 20, kind: input, shape index: {}]
  %s21 = inlined_call_operand.vmem [shape: f32[2,1], index: 21, kind: output, shape index: {}]
  %s22 = sld [smem:[#allocation0]]
  $region94: #{kl_model_plus_forward.1} parent=0
    _
  %s24 = ssub.s32 1, %s22
  %s25 = scalar_select 0, %s24, %s22
  %v26 = vstv %s20
  %27 = vst [vmem:[#allocation2] sm:$0x1] %v26
  // Predicated region
  $region2: #{kl_model_plus_forward.1} parent=0 // pred_check
    _
  $region3: #{kl_model_plus_forward.1} parent=0 // pred_check_branch
    %29 = sbr.rel (0) target = $region5
  $region4: #{kl_model_plus_forward.1} parent=0 // pred_region
    _
  $region5: #{kl_model_plus_forward.1} parent=0 // pred_fallthru
    _
  // Predicated region
  $region6: #{kl_model_plus_forward.1} parent=0 // pred_check
    _
  $region7: #{kl_model_plus_forward.1} parent=0 // pred_check_branch
    %31 = sbr.rel (0) target = $region9
  $region8: #{kl_model_plus_forward.1} parent=0 // pred_region
    _
  $region9: #{kl_model_plus_forward.1} parent=0 // pred_fallthru
    _
  // Predicated region
  $region10: #{kl_model_plus_forward.1} parent=0 // pred_check
    _
  $region11: #{kl_model_plus_forward.1} parent=0 // pred_check_branch
    %33 = sbr.rel (0) target = $region13
  $region12: #{kl_model_plus_forward.1} parent=0 // pred_region
    _
  $region13: #{kl_model_plus_forward.1} parent=0 // pred_fallthru
    _
  // Predicated region
  $region14: #{kl_model_plus_forward.1} parent=0 // pred_check
    _
  $region15: #{kl_model_plus_forward.1} parent=0 // pred_check_branch
    %35 = sbr.rel (0) target = $region17
  $region16: #{kl_model_plus_forward.1} parent=0 // pred_region
    _
  $region17: #{kl_model_plus_forward.1} parent=0 // pred_fallthru
    _
  // Predicated region
  $region18: #{kl_model_plus_forward.1} parent=0 // pred_check
    _
  $region19: #{kl_model_plus_forward.1} parent=0 // pred_check_branch
    %37 = sbr.rel (0) target = $region21
  $region20: #{kl_model_plus_forward.1} parent=0 // pred_region
    _
  $region21: #{kl_model_plus_forward.1} parent=0 // pred_fallthru
    _
  // Predicated region
  $region22: #{kl_model_plus_forward.1} parent=0 // pred_check
    _
  $region23: #{kl_model_plus_forward.1} parent=0 // pred_check_branch
    %39 = sbr.rel (0) target = $region25
  $region24: #{kl_model_plus_forward.1} parent=0 // pred_region
    _
  $region25: #{kl_model_plus_forward.1} parent=0 // pred_fallthru
    _
  // Predicated region
  $region26: #{kl_model_plus_forward.1} parent=0 // pred_check
    _
  $region27: #{kl_model_plus_forward.1} parent=0 // pred_check_branch
    %41 = sbr.rel (0) target = $region29
  $region28: #{kl_model_plus_forward.1} parent=0 // pred_region
    _
  $region29: #{kl_model_plus_forward.1} parent=0 // pred_fallthru
    _
  // Predicated region
  $region30: #{kl_model_plus_forward.1} parent=0 // pred_check
    _
  $region31: #{kl_model_plus_forward.1} parent=0 // pred_check_branch
    %43 = sbr.rel (0) target = $region33
  $region32: #{kl_model_plus_forward.1} parent=0 // pred_region
    _
  $region33: #{kl_model_plus_forward.1} parent=0 // pred_fallthru
    _
  // Predicated region
  $region34: #{kl_model_plus_forward.1} parent=0 // pred_check
    _
  $region35: #{kl_model_plus_forward.1} parent=0 // pred_check_branch
    %45 = sbr.rel (0) target = $region37
  $region36: #{kl_model_plus_forward.1} parent=0 // pred_region
    _
  $region37: #{kl_model_plus_forward.1} parent=0 // pred_fallthru
    _
  // Predicated region
  $region38: #{kl_model_plus_forward.1} parent=0 // pred_check
    _
  $region39: #{kl_model_plus_forward.1} parent=0 // pred_check_branch
    %47 = sbr.rel (0) target = $region41
  $region40: #{kl_model_plus_forward.1} parent=0 // pred_region
    _
  $region41: #{kl_model_plus_forward.1} parent=0 // pred_fallthru
    _
  // Predicated region
  $region42: #{kl_model_plus_forward.1} parent=0 // pred_check
    _
  $region43: #{kl_model_plus_forward.1} parent=0 // pred_check_branch
    %49 = sbr.rel (0) target = $region45
  $region44: #{kl_model_plus_forward.1} parent=0 // pred_region
    _
  $region45: #{kl_model_plus_forward.1} parent=0 // pred_fallthru
    _
  // Predicated region
  $region46: #{kl_model_plus_forward.1} parent=0 // pred_check
    _
  $region47: #{kl_model_plus_forward.1} parent=0 // pred_check_branch
    %51 = sbr.rel (0) target = $region49
  $region48: #{kl_model_plus_forward.1} parent=0 // pred_region
    _
  $region49: #{kl_model_plus_forward.1} parent=0 // pred_fallthru
    _
  // Predicated region
  $region50: #{kl_model_plus_forward.1} parent=0 // pred_check
    _
  $region51: #{kl_model_plus_forward.1} parent=0 // pred_check_branch
    %53 = sbr.rel (0) target = $region53
  $region52: #{kl_model_plus_forward.1} parent=0 // pred_region
    _
  $region53: #{kl_model_plus_forward.1} parent=0 // pred_fallthru
    _
  // Predicated region
  $region54: #{kl_model_plus_forward.1} parent=0 // pred_check
    _
  $region55: #{kl_model_plus_forward.1} parent=0 // pred_check_branch
    %55 = sbr.rel (0) target = $region57
  $region56: #{kl_model_plus_forward.1} parent=0 // pred_region
    _
  $region57: #{kl_model_plus_forward.1} parent=0 // pred_fallthru
    _
  // Predicated region
  $region58: #{kl_model_plus_forward.1} parent=0 // pred_check
    _
  $region59: #{kl_model_plus_forward.1} parent=0 // pred_check_branch
    %57 = sbr.rel (0) target = $region61
  $region60: #{kl_model_plus_forward.1} parent=0 // pred_region
    _
  $region61: #{kl_model_plus_forward.1} parent=0 // pred_fallthru
    _
  // Predicated region
  $region62: #{kl_model_plus_forward.1} parent=0 // pred_check
    _
  $region63: #{kl_model_plus_forward.1} parent=0 // pred_check_branch
    %59 = sbr.rel (0) target = $region65
  $region64: #{kl_model_plus_forward.1} parent=0 // pred_region
    _
  $region65: #{kl_model_plus_forward.1} parent=0 // pred_fallthru
    _
  // Predicated region
  $region66: #{kl_model_plus_forward.1} parent=0 // pred_check
    _
  $region67: #{kl_model_plus_forward.1} parent=0 // pred_check_branch
    %61 = sbr.rel (0) target = $region69
  $region68: #{kl_model_plus_forward.1} parent=0 // pred_region
    _
  $region69: #{kl_model_plus_forward.1} parent=0 // pred_fallthru
    _
  // Predicated region
  $region70: #{kl_model_plus_forward.1} parent=0 // pred_check
    _
  $region71: #{kl_model_plus_forward.1} parent=0 // pred_check_branch
    %63 = sbr.rel (0) target = $region73
  $region72: #{kl_model_plus_forward.1} parent=0 // pred_region
    _
  $region73: #{kl_model_plus_forward.1} parent=0 // pred_fallthru
    _
  // Predicated region
  $region74: #{kl_model_plus_forward.1} parent=0 // pred_check
    _
  $region75: #{kl_model_plus_forward.1} parent=0 // pred_check_branch
    %65 = sbr.rel (0) target = $region77
  $region76: #{kl_model_plus_forward.1} parent=0 // pred_region
    _
  $region77: #{kl_model_plus_forward.1} parent=0 // pred_fallthru
    _
  // Predicated region
  $region78: #{kl_model_plus_forward.1} parent=0 // pred_check
    _
  $region79: #{kl_model_plus_forward.1} parent=0 // pred_check_branch
    %67 = sbr.rel (0) target = $region81
  $region80: #{kl_model_plus_forward.1} parent=0 // pred_region
    _
  $region81: #{kl_model_plus_forward.1} parent=0 // pred_fallthru
    _
  // Predicated region
  $region82: #{kl_model_plus_forward.1} parent=0 // pred_check
    _
  $region83: #{kl_model_plus_forward.1} parent=0 // pred_check_branch
    %69 = sbr.rel (0) target = $region85
  $region84: #{kl_model_plus_forward.1} parent=0 // pred_region
    _
  $region85: #{kl_model_plus_forward.1} parent=0 // pred_fallthru
    _
  %v71 = vld [vmem:[%s0] sm:$0xff]
  %v72 = vld [vmem:[%s0 + $0x8] sm:$0xff]
  %v73 = vlaneseq
  %v74 = vshrl.u32 %v73, 7
  %v75 = vadd.s32 %v74, 8
  %v76 = vlaneseq
  %v77 = vand.u32 %v76, 127
  %vm78 = vcmp.lt.s32.totalorder %v74, 0
  %v79 = vsub.s32 0, %v74
  %v80 = vsel %vm78, %v79, %v74
  %v81 = vshrl.u32 %v80, 1
  %v82 = vand.u32 %v80, 1
  %v83 = vsub.s32 0, %v82
  %v84 = vsel %vm78, %v83, %v82
  %vm85 = vcmp.lt.s32.totalorder %v75, 0
  %v86 = vsub.s32 0, %v75
  %v87 = vsel %vm85, %v86, %v75
  %v88 = vshrl.u32 %v87, 1
  %v89 = vand.u32 %v87, 1
  %v90 = vsub.s32 0, %v89
  %v91 = vsel %vm85, %v90, %v89
  %vm92 = vcmp.ne.s32.totalorder %v84, 0
  %vm93 = vcmp.ne.s32.totalorder %v91, 0
  %vm94 = vcmp.lt.s32.totalorder %v84, 0
  %vm95 = vcmp.lt.s32.totalorder %v91, 0
  %vm96 = vmand %vm94, %vm92
  %vm97 = vmand %vm95, %vm93
  %v98 = vadd.s32 %v84, 2
  %v99 = vadd.s32 %v91, 2
  %v100 = vsel %vm96, %v98, %v84
  %v101 = vsel %vm97, %v99, %v91
  %vm102 = vcmp.lt.s32.totalorder %v77, 0
  %v103 = vsub.s32 0, %v77
  %v104 = vsel %vm102, %v103, %v77
  %v105 = vshrl.u32 %v104, 1
  %v106 = vand.u32 %v104, 1
  %v107 = vsub.s32 0, %v106
  %v108 = vsel %vm102, %v107, %v106
  %vm109 = vcmp.ne.s32.totalorder %v108, 0
  %vm110 = vcmp.lt.s32.totalorder %v108, 0
  %vm111 = vmand %vm110, %vm109
  %v112 = vadd.s32 %v108, 2
  %v113 = vsel %vm111, %v112, %v108
  %vm114 = vcmp.eq.s32.totalorder %v100, %v113
  %vm115 = vcmp.eq.s32.totalorder %v101, %v113
  %v116 = vsel %vm114, 0.0, -1e+30
  %v117 = vsel %vm115, 0.0, -1e+30
  %v118 = vpack.c.bf16 %v72, %v71
  %v119 = vld [vmem:[%s1] sm:$0xf]
  %v120 = vld [vmem:[%s1 + $0x4] sm:$0xf]
  %v121 = vld [vmem:[%s1 + $0x8] sm:$0xf]
  %v122 = vld [vmem:[%s1 + $0xc] sm:$0xf]
  %v123 = vld [vmem:[%s2] sm:$0x1]
  %v125 = vlaneseq
  %v126 = vshrl.u32 %v125, 7
  %v127 = vsub.s32 0, %v126
  %v128 = vrot.slane %v123, %v127
  %v134 = vunpack.c.l.b16 %v119
  %v135 = vunpack.c.l.b16 %v120
  %v136 = vunpack.c.l.b16 %v121
  %v137 = vunpack.c.l.b16 %v122
  %v138 = vpack.c.b16 %v135, %v134
  %v139 = vpack.c.b16 %v137, %v136
  %vm142 = vcmask 261120
  %v144 = vsel %vm142, %v118, 0
  %146 = vmatprep.subr.bf16.mxu0 0
  %147 = vmatpush1.bf16.msra.mxu0 %v138
  %148 = vmatprep.subr.bf16.mxu0 0
  %149 = vmatpush1.bf16.msra.mxu0 %v139
  %150 = vmatprep.subr.bf16.mxu0 0
  %151 = vmatpush1.bf16.msra.mxu0 0
  %152 = vmatprep.subr.bf16.mxu0 0
  %153 = vmatpush1.bf16.msra.mxu0 0
  %154 = vmatprep.subr.bf16.mxu0 0
  %155 = vmatpush1.bf16.msra.mxu0 0
  %156 = vmatprep.subr.bf16.mxu0 0
  %157 = vmatpush1.bf16.msra.mxu0 0
  %158 = vmatprep.subr.bf16.mxu0 0
  %159 = vmatpush1.bf16.msra.mxu0 0
  %160 = vmatprep.subr.bf16.mxu0 0
  %161 = vmatpush1.bf16.msra.mxu0 0
  %162 = vmatprep.subr.bf16.mxu0 0
  %163 = vmatpush1.bf16.msra.mxu0 0
  %164 = vmatprep.subr.bf16.mxu0 0
  %165 = vmatpush1.bf16.msra.mxu0 0
  %166 = vmatprep.subr.bf16.mxu0 0
  %167 = vmatpush1.bf16.msra.mxu0 0
  %168 = vmatprep.subr.bf16.mxu0 0
  %169 = vmatpush1.bf16.msra.mxu0 0
  %170 = vmatprep.subr.bf16.mxu0 0
  %171 = vmatpush1.bf16.msra.mxu0 0
  %172 = vmatprep.subr.bf16.mxu0 0
  %173 = vmatpush1.bf16.msra.mxu0 0
  %174 = vmatprep.subr.bf16.mxu0 0
  %175 = vmatpush1.bf16.msra.mxu0 0
  %176 = vmatprep.subr.bf16.mxu0 0
  %177 = vmatpush1.bf16.msra.mxu0 0
  %178 = vmatprep.mubr.bf16.mxu0 0
  %179 = vmatmul.mubr.bf16.gmra.mrb[0].mxu0 %v144
  %v180 = vpop.f32.mrb[0].mxu0
  %v181 = vadd.f32 %v128, %v180
  %v182 = vpop.f32.mrb[0].mxu0
  %v183 = vpop.f32.mrb[0].mxu0
  %v184 = vadd.f32 %v128, %v183
  %v185 = vpop.f32.mrb[0].mxu0
  %186 = vdwg.mxu0
  %v187 = vpack.c.bf16 %v184, %v181
  %189 = vrot.lane.b32.xlu0 %v187, 96
  %v190 = vpop.permute.xlu0 %189
  %vm191 = vcmask 64512
  %v193 = vsel %vm191, %v187, 0
  %v196 = vsel %vm191, %v190, 0
  %198 = vmatprep.subr.bf16.mxu0 0
  %199 = vmatpush1.bf16.xpose.msra.mxu0 %v196
  %200 = vmatprep.subr.bf16.mxu0 0
  %201 = vmatpush1.bf16.xpose.msra.mxu0 0
  %202 = vmatprep.subr.bf16.mxu0 0
  %203 = vmatpush1.bf16.xpose.msra.mxu0 0
  %204 = vmatprep.subr.bf16.mxu0 0
  %205 = vmatpush1.bf16.xpose.msra.mxu0 0
  %206 = vmatprep.subr.bf16.mxu0 0
  %207 = vmatpush1.bf16.xpose.msra.mxu0 0
  %208 = vmatprep.subr.bf16.mxu0 0
  %209 = vmatpush1.bf16.xpose.msra.mxu0 0
  %210 = vmatprep.subr.bf16.mxu0 0
  %211 = vmatpush1.bf16.xpose.msra.mxu0 0
  %212 = vmatprep.subr.bf16.mxu0 0
  %213 = vmatpush1.bf16.xpose.msra.mxu0 0
  %214 = vmatprep.subr.bf16.mxu0 0
  %215 = vmatpush1.bf16.xpose.msra.mxu0 0
  %216 = vmatprep.subr.bf16.mxu0 0
  %217 = vmatpush1.bf16.xpose.msra.mxu0 0
  %218 = vmatprep.subr.bf16.mxu0 0
  %219 = vmatpush1.bf16.xpose.msra.mxu0 0
  %220 = vmatprep.subr.bf16.mxu0 0
  %221 = vmatpush1.bf16.xpose.msra.mxu0 0
  %222 = vmatprep.subr.bf16.mxu0 0
  %223 = vmatpush1.bf16.xpose.msra.mxu0 0
  %224 = vmatprep.subr.bf16.mxu0 0
  %225 = vmatpush1.bf16.xpose.msra.mxu0 0
  %226 = vmatprep.subr.bf16.mxu0 0
  %227 = vmatpush1.bf16.xpose.msra.mxu0 0
  %228 = vmatprep.subr.bf16.mxu0 0
  %229 = vmatpush1.bf16.xpose.msra.mxu0 0
  %230 = vmatprep.mubr.bf16.mxu0 0
  %231 = vmatmul.mubr.bf16.gmra.mrb[0].mxu0 %v193
  %v232 = vpop.f32.mrb[0].mxu0
  %v233 = vadd.f32 0.0, %v232
  %v234 = vpop.f32.mrb[0].mxu0
  %v235 = vpop.f32.mrb[0].mxu0
  %v236 = vadd.f32 0.0, %v235
  %v237 = vpop.f32.mrb[0].mxu0
  %238 = vdwg.mxu0
  %v239 = vmul.f32 %v233, 0.35355338
  %v240 = vmul.f32 %v236, 0.35355338
  %v241 = vadd.f32 %v239, %v116
  %v242 = vadd.f32 %v240, %v117
  %vm243 = vcmask 130048
  %v244 = vsel %vm243, %v241, -inf
  %245 = vmax.xlane.f32.xlu0 %v244
  %v246 = vpop.xlane.xlu0 %245
  %v247 = vsel %vm243, %v242, -inf
  %248 = vmax.xlane.f32.xlu0 %v247
  %v249 = vpop.xlane.xlu0 %248
  %v250 = vsub.f32 %v241, %v246
  %v251 = vsub.f32 %v242, %v249
  %v252 = vmul.f32 %v250, 1.442695
  %v253 = vpow.pop %v252
  %v254 = vmul.f32 %v251, 1.442695
  %v255 = vpow.pop %v254
  %v256 = vsel %vm243, %v253, 0.0
  %257 = vadd.xlane.f32.xlu0 %v256
  %v258 = vpop.xlane.xlu0 %257
  %v259 = vsel %vm243, %v255, 0.0
  %260 = vadd.xlane.f32.xlu0 %v259
  %v261 = vpop.xlane.xlu0 %260
  %v262 = vrcp.pop %v258
  %v263 = vmul.f32 %v253, %v262
  %v264 = vrcp.pop %v261
  %v265 = vmul.f32 %v255, %v264
  %v266 = vpack.c.bf16 %v265, %v263
  %267 = vrot.lane.b32.xlu0 %v187, 64
  %v268 = vpop.permute.xlu0 %267
  %v271 = vsel %vm243, %v266, 0
  %273 = vmatprep.subr.bf16.mxu0 0
  %274 = vmatpush1.bf16.msra.mxu0 %v268
  %275 = vmatprep.subr.bf16.mxu0 0
  %276 = vmatpush1.bf16.msra.mxu0 0
  %277 = vmatprep.subr.bf16.mxu0 0
  %278 = vmatpush1.bf16.msra.mxu0 0
  %279 = vmatprep.subr.bf16.mxu0 0
  %280 = vmatpush1.bf16.msra.mxu0 0
  %281 = vmatprep.subr.bf16.mxu0 0
  %282 = vmatpush1.bf16.msra.mxu0 0
  %283 = vmatprep.subr.bf16.mxu0 0
  %284 = vmatpush1.bf16.msra.mxu0 0
  %285 = vmatprep.subr.bf16.mxu0 0
  %286 = vmatpush1.bf16.msra.mxu0 0
  %287 = vmatprep.subr.bf16.mxu0 0
  %288 = vmatpush1.bf16.msra.mxu0 0
  %289 = vmatprep.subr.bf16.mxu0 0
  %290 = vmatpush1.bf16.msra.mxu0 0
  %291 = vmatprep.subr.bf16.mxu0 0
  %292 = vmatpush1.bf16.msra.mxu0 0
  %293 = vmatprep.subr.bf16.mxu0 0
  %294 = vmatpush1.bf16.msra.mxu0 0
  %295 = vmatprep.subr.bf16.mxu0 0
  %296 = vmatpush1.bf16.msra.mxu0 0
  %297 = vmatprep.subr.bf16.mxu0 0
  %298 = vmatpush1.bf16.msra.mxu0 0
  %299 = vmatprep.subr.bf16.mxu0 0
  %300 = vmatpush1.bf16.msra.mxu0 0
  %301 = vmatprep.subr.bf16.mxu0 0
  %302 = vmatpush1.bf16.msra.mxu0 0
  %303 = vmatprep.subr.bf16.mxu0 0
  %304 = vmatpush1.bf16.msra.mxu0 0
  %305 = vmatprep.mubr.bf16.mxu0 0
  %306 = vmatmul.mubr.bf16.gmra.mrb[0].mxu0 %v271
  %v307 = vpop.f32.mrb[0].mxu0
  %v308 = vadd.f32 0.0, %v307
  %v309 = vpop.f32.mrb[0].mxu0
  %v310 = vpop.f32.mrb[0].mxu0
  %v311 = vadd.f32 0.0, %v310
  %v312 = vpop.f32.mrb[0].mxu0
  %313 = vdwg.mxu0
  %314 = vrot.lane.b32.xlu0 %v187, 120
  %v315 = vpop.permute.xlu0 %314
  %316 = vrot.lane.b32.xlu0 %v187, 88
  %v317 = vpop.permute.xlu0 %316
  %v319 = vsel %vm191, %v315, 0
  %v322 = vsel %vm191, %v317, 0
  %324 = vmatprep.subr.bf16.mxu0 0
  %325 = vmatpush1.bf16.xpose.msra.mxu0 %v322
  %326 = vmatprep.subr.bf16.mxu0 0
  %327 = vmatpush1.bf16.xpose.msra.mxu0 0
  %328 = vmatprep.subr.bf16.mxu0 0
  %329 = vmatpush1.bf16.xpose.msra.mxu0 0
  %330 = vmatprep.subr.bf16.mxu0 0
  %331 = vmatpush1.bf16.xpose.msra.mxu0 0
  %332 = vmatprep.subr.bf16.mxu0 0
  %333 = vmatpush1.bf16.xpose.msra.mxu0 0
  %334 = vmatprep.subr.bf16.mxu0 0
  %335 = vmatpush1.bf16.xpose.msra.mxu0 0
  %336 = vmatprep.subr.bf16.mxu0 0
  %337 = vmatpush1.bf16.xpose.msra.mxu0 0
  %338 = vmatprep.subr.bf16.mxu0 0
  %339 = vmatpush1.bf16.xpose.msra.mxu0 0
  %340 = vmatprep.subr.bf16.mxu0 0
  %341 = vmatpush1.bf16.xpose.msra.mxu0 0
  %342 = vmatprep.subr.bf16.mxu0 0
  %343 = vmatpush1.bf16.xpose.msra.mxu0 0
  %344 = vmatprep.subr.bf16.mxu0 0
  %345 = vmatpush1.bf16.xpose.msra.mxu0 0
  %346 = vmatprep.subr.bf16.mxu0 0
  %347 = vmatpush1.bf16.xpose.msra.mxu0 0
  %348 = vmatprep.subr.bf16.mxu0 0
  %349 = vmatpush1.bf16.xpose.msra.mxu0 0
  %350 = vmatprep.subr.bf16.mxu0 0
  %351 = vmatpush1.bf16.xpose.msra.mxu0 0
  %352 = vmatprep.subr.bf16.mxu0 0
  %353 = vmatpush1.bf16.xpose.msra.mxu0 0
  %354 = vmatprep.subr.bf16.mxu0 0
  %355 = vmatpush1.bf16.xpose.msra.mxu0 0
  %356 = vmatprep.mubr.bf16.mxu0 0
  %357 = vmatmul.mubr.bf16.gmra.mrb[0].mxu0 %v319
  %v358 = vpop.f32.mrb[0].mxu0
  %v359 = vadd.f32 0.0, %v358
  %v360 = vpop.f32.mrb[0].mxu0
  %v361 = vpop.f32.mrb[0].mxu0
  %v362 = vadd.f32 0.0, %v361
  %v363 = vpop.f32.mrb[0].mxu0
  %364 = vdwg.mxu0
  %v365 = vmul.f32 %v359, 0.35355338
  %v366 = vmul.f32 %v362, 0.35355338
  %v367 = vadd.f32 %v365, %v116
  %v368 = vadd.f32 %v366, %v117
  %v369 = vsel %vm243, %v367, -inf
  %370 = vmax.xlane.f32.xlu0 %v369
  %v371 = vpop.xlane.xlu0 %370
  %v372 = vsel %vm243, %v368, -inf
  %373 = vmax.xlane.f32.xlu0 %v372
  %v374 = vpop.xlane.xlu0 %373
  %v375 = vsub.f32 %v367, %v371
  %v376 = vsub.f32 %v368, %v374
  %v377 = vmul.f32 %v375, 1.442695
  %v378 = vpow.pop %v377
  %v379 = vmul.f32 %v376, 1.442695
  %v380 = vpow.pop %v379
  %v381 = vsel %vm243, %v378, 0.0
  %382 = vadd.xlane.f32.xlu0 %v381
  %v383 = vpop.xlane.xlu0 %382
  %v384 = vsel %vm243, %v380, 0.0
  %385 = vadd.xlane.f32.xlu0 %v384
  %v386 = vpop.xlane.xlu0 %385
  %v387 = vrcp.pop %v383
  %v388 = vmul.f32 %v378, %v387
  %v389 = vrcp.pop %v386
  %v390 = vmul.f32 %v380, %v389
  %v391 = vpack.c.bf16 %v390, %v388
  %392 = vrot.lane.b32.xlu0 %v187, 56
  %v393 = vpop.permute.xlu0 %392
  %v396 = vsel %vm243, %v391, 0
  %398 = vmatprep.subr.bf16.mxu0 0
  %399 = vmatpush1.bf16.msra.mxu0 %v393
  %400 = vmatprep.subr.bf16.mxu0 0
  %401 = vmatpush1.bf16.msra.mxu0 0
  %402 = vmatprep.subr.bf16.mxu0 0
  %403 = vmatpush1.bf16.msra.mxu0 0
  %404 = vmatprep.subr.bf16.mxu0 0
  %405 = vmatpush1.bf16.msra.mxu0 0
  %406 = vmatprep.subr.bf16.mxu0 0
  %407 = vmatpush1.bf16.msra.mxu0 0
  %408 = vmatprep.subr.bf16.mxu0 0
  %409 = vmatpush1.bf16.msra.mxu0 0
  %410 = vmatprep.subr.bf16.mxu0 0
  %411 = vmatpush1.bf16.msra.mxu0 0
  %412 = vmatprep.subr.bf16.mxu0 0
  %413 = vmatpush1.bf16.msra.mxu0 0
  %414 = vmatprep.subr.bf16.mxu0 0
  %415 = vmatpush1.bf16.msra.mxu0 0
  %416 = vmatprep.subr.bf16.mxu0 0
  %417 = vmatpush1.bf16.msra.mxu0 0
  %418 = vmatprep.subr.bf16.mxu0 0
  %419 = vmatpush1.bf16.msra.mxu0 0
  %420 = vmatprep.subr.bf16.mxu0 0
  %421 = vmatpush1.bf16.msra.mxu0 0
  %422 = vmatprep.subr.bf16.mxu0 0
  %423 = vmatpush1.bf16.msra.mxu0 0
  %424 = vmatprep.subr.bf16.mxu0 0
  %425 = vmatpush1.bf16.msra.mxu0 0
  %426 = vmatprep.subr.bf16.mxu0 0
  %427 = vmatpush1.bf16.msra.mxu0 0
  %428 = vmatprep.subr.bf16.mxu0 0
  %429 = vmatpush1.bf16.msra.mxu0 0
  %430 = vmatprep.mubr.bf16.mxu0 0
  %431 = vmatmul.mubr.bf16.gmra.mrb[0].mxu0 %v396
  %v432 = vpop.f32.mrb[0].mxu0
  %v433 = vadd.f32 0.0, %v432
  %v434 = vpop.f32.mrb[0].mxu0
  %v435 = vpop.f32.mrb[0].mxu0
  %v436 = vadd.f32 0.0, %v435
  %v437 = vpop.f32.mrb[0].mxu0
  %438 = vdwg.mxu0
  %439 = vrot.lane.b32.xlu0 %v187, 112
  %v440 = vpop.permute.xlu0 %439
  %441 = vrot.lane.b32.xlu0 %v187, 80
  %v442 = vpop.permute.xlu0 %441
  %v444 = vsel %vm191, %v440, 0
  %v447 = vsel %vm191, %v442, 0
  %449 = vmatprep.subr.bf16.mxu0 0
  %450 = vmatpush1.bf16.xpose.msra.mxu0 %v447
  %451 = vmatprep.subr.bf16.mxu0 0
  %452 = vmatpush1.bf16.xpose.msra.mxu0 0
  %453 = vmatprep.subr.bf16.mxu0 0
  %454 = vmatpush1.bf16.xpose.msra.mxu0 0
  %455 = vmatprep.subr.bf16.mxu0 0
  %456 = vmatpush1.bf16.xpose.msra.mxu0 0
  %457 = vmatprep.subr.bf16.mxu0 0
  %458 = vmatpush1.bf16.xpose.msra.mxu0 0
  %459 = vmatprep.subr.bf16.mxu0 0
  %460 = vmatpush1.bf16.xpose.msra.mxu0 0
  %461 = vmatprep.subr.bf16.mxu0 0
  %462 = vmatpush1.bf16.xpose.msra.mxu0 0
  %463 = vmatprep.subr.bf16.mxu0 0
  %464 = vmatpush1.bf16.xpose.msra.mxu0 0
  %465 = vmatprep.subr.bf16.mxu0 0
  %466 = vmatpush1.bf16.xpose.msra.mxu0 0
  %467 = vmatprep.subr.bf16.mxu0 0
  %468 = vmatpush1.bf16.xpose.msra.mxu0 0
  %469 = vmatprep.subr.bf16.mxu0 0
  %470 = vmatpush1.bf16.xpose.msra.mxu0 0
  %471 = vmatprep.subr.bf16.mxu0 0
  %472 = vmatpush1.bf16.xpose.msra.mxu0 0
  %473 = vmatprep.subr.bf16.mxu0 0
  %474 = vmatpush1.bf16.xpose.msra.mxu0 0
  %475 = vmatprep.subr.bf16.mxu0 0
  %476 = vmatpush1.bf16.xpose.msra.mxu0 0
  %477 = vmatprep.subr.bf16.mxu0 0
  %478 = vmatpush1.bf16.xpose.msra.mxu0 0
  %479 = vmatprep.subr.bf16.mxu0 0
  %480 = vmatpush1.bf16.xpose.msra.mxu0 0
  %481 = vmatprep.mubr.bf16.mxu0 0
  %482 = vmatmul.mubr.bf16.gmra.mrb[0].mxu0 %v444
  %v483 = vpop.f32.mrb[0].mxu0
  %v484 = vadd.f32 0.0, %v483
  %v485 = vpop.f32.mrb[0].mxu0
  %v486 = vpop.f32.mrb[0].mxu0
  %v487 = vadd.f32 0.0, %v486
  %v488 = vpop.f32.mrb[0].mxu0
  %489 = vdwg.mxu0
  %v490 = vmul.f32 %v484, 0.35355338
  %v491 = vmul.f32 %v487, 0.35355338
  %v492 = vadd.f32 %v490, %v116
  %v493 = vadd.f32 %v491, %v117
  %v494 = vsel %vm243, %v492, -inf
  %495 = vmax.xlane.f32.xlu0 %v494
  %v496 = vpop.xlane.xlu0 %495
  %v497 = vsel %vm243, %v493, -inf
  %498 = vmax.xlane.f32.xlu0 %v497
  %v499 = vpop.xlane.xlu0 %498
  %v500 = vsub.f32 %v492, %v496
  %v501 = vsub.f32 %v493, %v499
  %v502 = vmul.f32 %v500, 1.442695
  %v503 = vpow.pop %v502
  %v504 = vmul.f32 %v501, 1.442695
  %v505 = vpow.pop %v504
  %v506 = vsel %vm243, %v503, 0.0
  %507 = vadd.xlane.f32.xlu0 %v506
  %v508 = vpop.xlane.xlu0 %507
  %v509 = vsel %vm243, %v505, 0.0
  %510 = vadd.xlane.f32.xlu0 %v509
  %v511 = vpop.xlane.xlu0 %510
  %v512 = vrcp.pop %v508
  %v513 = vmul.f32 %v503, %v512
  %v514 = vrcp.pop %v511
  %v515 = vmul.f32 %v505, %v514
  %v516 = vpack.c.bf16 %v515, %v513
  %517 = vrot.lane.b32.xlu0 %v187, 48
  %v518 = vpop.permute.xlu0 %517
  %v521 = vsel %vm243, %v516, 0
  %523 = vmatprep.subr.bf16.mxu0 0
  %524 = vmatpush1.bf16.msra.mxu0 %v518
  %525 = vmatprep.subr.bf16.mxu0 0
  %526 = vmatpush1.bf16.msra.mxu0 0
  %527 = vmatprep.subr.bf16.mxu0 0
  %528 = vmatpush1.bf16.msra.mxu0 0
  %529 = vmatprep.subr.bf16.mxu0 0
  %530 = vmatpush1.bf16.msra.mxu0 0
  %531 = vmatprep.subr.bf16.mxu0 0
  %532 = vmatpush1.bf16.msra.mxu0 0
  %533 = vmatprep.subr.bf16.mxu0 0
  %534 = vmatpush1.bf16.msra.mxu0 0
  %535 = vmatprep.subr.bf16.mxu0 0
  %536 = vmatpush1.bf16.msra.mxu0 0
  %537 = vmatprep.subr.bf16.mxu0 0
  %538 = vmatpush1.bf16.msra.mxu0 0
  %539 = vmatprep.subr.bf16.mxu0 0
  %540 = vmatpush1.bf16.msra.mxu0 0
  %541 = vmatprep.subr.bf16.mxu0 0
  %542 = vmatpush1.bf16.msra.mxu0 0
  %543 = vmatprep.subr.bf16.mxu0 0
  %544 = vmatpush1.bf16.msra.mxu0 0
  %545 = vmatprep.subr.bf16.mxu0 0
  %546 = vmatpush1.bf16.msra.mxu0 0
  %547 = vmatprep.subr.bf16.mxu0 0
  %548 = vmatpush1.bf16.msra.mxu0 0
  %549 = vmatprep.subr.bf16.mxu0 0
  %550 = vmatpush1.bf16.msra.mxu0 0
  %551 = vmatprep.subr.bf16.mxu0 0
  %552 = vmatpush1.bf16.msra.mxu0 0
  %553 = vmatprep.subr.bf16.mxu0 0
  %554 = vmatpush1.bf16.msra.mxu0 0
  %555 = vmatprep.mubr.bf16.mxu0 0
  %556 = vmatmul.mubr.bf16.gmra.mrb[0].mxu0 %v521
  %v557 = vpop.f32.mrb[0].mxu0
  %v558 = vadd.f32 0.0, %v557
  %v559 = vpop.f32.mrb[0].mxu0
  %v560 = vpop.f32.mrb[0].mxu0
  %v561 = vadd.f32 0.0, %v560
  %v562 = vpop.f32.mrb[0].mxu0
  %563 = vdwg.mxu0
  %564 = vrot.lane.b32.xlu0 %v187, 104
  %v565 = vpop.permute.xlu0 %564
  %566 = vrot.lane.b32.xlu0 %v187, 72
  %v567 = vpop.permute.xlu0 %566
  %v569 = vsel %vm191, %v565, 0
  %v572 = vsel %vm191, %v567, 0
  %574 = vmatprep.subr.bf16.mxu0 0
  %575 = vmatpush1.bf16.xpose.msra.mxu0 %v572
  %576 = vmatprep.subr.bf16.mxu0 0
  %577 = vmatpush1.bf16.xpose.msra.mxu0 0
  %578 = vmatprep.subr.bf16.mxu0 0
  %579 = vmatpush1.bf16.xpose.msra.mxu0 0
  %580 = vmatprep.subr.bf16.mxu0 0
  %581 = vmatpush1.bf16.xpose.msra.mxu0 0
  %582 = vmatprep.subr.bf16.mxu0 0
  %583 = vmatpush1.bf16.xpose.msra.mxu0 0
  %584 = vmatprep.subr.bf16.mxu0 0
  %585 = vmatpush1.bf16.xpose.msra.mxu0 0
  %586 = vmatprep.subr.bf16.mxu0 0
  %587 = vmatpush1.bf16.xpose.msra.mxu0 0
  %588 = vmatprep.subr.bf16.mxu0 0
  %589 = vmatpush1.bf16.xpose.msra.mxu0 0
  %590 = vmatprep.subr.bf16.mxu0 0
  %591 = vmatpush1.bf16.xpose.msra.mxu0 0
  %592 = vmatprep.subr.bf16.mxu0 0
  %593 = vmatpush1.bf16.xpose.msra.mxu0 0
  %594 = vmatprep.subr.bf16.mxu0 0
  %595 = vmatpush1.bf16.xpose.msra.mxu0 0
  %596 = vmatprep.subr.bf16.mxu0 0
  %597 = vmatpush1.bf16.xpose.msra.mxu0 0
  %598 = vmatprep.subr.bf16.mxu0 0
  %599 = vmatpush1.bf16.xpose.msra.mxu0 0
  %600 = vmatprep.subr.bf16.mxu0 0
  %601 = vmatpush1.bf16.xpose.msra.mxu0 0
  %602 = vmatprep.subr.bf16.mxu0 0
  %603 = vmatpush1.bf16.xpose.msra.mxu0 0
  %604 = vmatprep.subr.bf16.mxu0 0
  %605 = vmatpush1.bf16.xpose.msra.mxu0 0
  %606 = vmatprep.mubr.bf16.mxu0 0
  %607 = vmatmul.mubr.bf16.gmra.mrb[0].mxu0 %v569
  %v608 = vpop.f32.mrb[0].mxu0
  %v609 = vadd.f32 0.0, %v608
  %v610 = vpop.f32.mrb[0].mxu0
  %v611 = vpop.f32.mrb[0].mxu0
  %v612 = vadd.f32 0.0, %v611
  %v613 = vpop.f32.mrb[0].mxu0
  %614 = vdwg.mxu0
  %v615 = vmul.f32 %v609, 0.35355338
  %v616 = vmul.f32 %v612, 0.35355338
  %v617 = vadd.f32 %v615, %v116
  %v618 = vadd.f32 %v616, %v117
  %v619 = vsel %vm243, %v617, -inf
  %620 = vmax.xlane.f32.xlu0 %v619
  %v621 = vpop.xlane.xlu0 %620
  %v622 = vsel %vm243, %v618, -inf
  %623 = vmax.xlane.f32.xlu0 %v622
  %v624 = vpop.xlane.xlu0 %623
  %v625 = vsub.f32 %v617, %v621
  %v626 = vsub.f32 %v618, %v624
  %v627 = vmul.f32 %v625, 1.442695
  %v628 = vpow.pop %v627
  %v629 = vmul.f32 %v626, 1.442695
  %v630 = vpow.pop %v629
  %v631 = vsel %vm243, %v628, 0.0
  %632 = vadd.xlane.f32.xlu0 %v631
  %v633 = vpop.xlane.xlu0 %632
  %v634 = vsel %vm243, %v630, 0.0
  %635 = vadd.xlane.f32.xlu0 %v634
  %v636 = vpop.xlane.xlu0 %635
  %v637 = vrcp.pop %v633
  %v638 = vmul.f32 %v628, %v637
  %v639 = vrcp.pop %v636
  %v640 = vmul.f32 %v630, %v639
  %v641 = vpack.c.bf16 %v640, %v638
  %642 = vrot.lane.b32.xlu0 %v187, 40
  %v643 = vpop.permute.xlu0 %642
  %v646 = vsel %vm243, %v641, 0
  %648 = vmatprep.subr.bf16.mxu0 0
  %649 = vmatpush1.bf16.msra.mxu0 %v643
  %650 = vmatprep.subr.bf16.mxu0 0
  %651 = vmatpush1.bf16.msra.mxu0 0
  %652 = vmatprep.subr.bf16.mxu0 0
  %653 = vmatpush1.bf16.msra.mxu0 0
  %654 = vmatprep.subr.bf16.mxu0 0
  %655 = vmatpush1.bf16.msra.mxu0 0
  %656 = vmatprep.subr.bf16.mxu0 0
  %657 = vmatpush1.bf16.msra.mxu0 0
  %658 = vmatprep.subr.bf16.mxu0 0
  %659 = vmatpush1.bf16.msra.mxu0 0
  %660 = vmatprep.subr.bf16.mxu0 0
  %661 = vmatpush1.bf16.msra.mxu0 0
  %662 = vmatprep.subr.bf16.mxu0 0
  %663 = vmatpush1.bf16.msra.mxu0 0
  %664 = vmatprep.subr.bf16.mxu0 0
  %665 = vmatpush1.bf16.msra.mxu0 0
  %666 = vmatprep.subr.bf16.mxu0 0
  %667 = vmatpush1.bf16.msra.mxu0 0
  %668 = vmatprep.subr.bf16.mxu0 0
  %669 = vmatpush1.bf16.msra.mxu0 0
  %670 = vmatprep.subr.bf16.mxu0 0
  %671 = vmatpush1.bf16.msra.mxu0 0
  %672 = vmatprep.subr.bf16.mxu0 0
  %673 = vmatpush1.bf16.msra.mxu0 0
  %674 = vmatprep.subr.bf16.mxu0 0
  %675 = vmatpush1.bf16.msra.mxu0 0
  %676 = vmatprep.subr.bf16.mxu0 0
  %677 = vmatpush1.bf16.msra.mxu0 0
  %678 = vmatprep.subr.bf16.mxu0 0
  %679 = vmatpush1.bf16.msra.mxu0 0
  %680 = vmatprep.mubr.bf16.mxu0 0
  %681 = vmatmul.mubr.bf16.gmra.mrb[0].mxu0 %v646
  %v682 = vpop.f32.mrb[0].mxu0
  %v683 = vadd.f32 0.0, %v682
  %v684 = vpop.f32.mrb[0].mxu0
  %v685 = vpop.f32.mrb[0].mxu0
  %v686 = vadd.f32 0.0, %v685
  %v687 = vpop.f32.mrb[0].mxu0
  %688 = vdwg.mxu0
  %691 = vrot.lane.b32.xlu0 %v433, 8
  %v692 = vpop.permute.xlu0 %691
  %693 = vrot.lane.b32.xlu0 %v436, 8
  %v694 = vpop.permute.xlu0 %693
  %699 = vrot.lane.b32.xlu0 %v558, 16
  %v700 = vpop.permute.xlu0 %699
  %701 = vrot.lane.b32.xlu0 %v561, 16
  %v702 = vpop.permute.xlu0 %701
  %707 = vrot.lane.b32.xlu0 %v683, 24
  %v708 = vpop.permute.xlu0 %707
  %709 = vrot.lane.b32.xlu0 %v686, 24
  %v710 = vpop.permute.xlu0 %709
  %v713 = vsel %vm191, %v308, %v692
  %v714 = vsel %vm191, %v311, %v694
  %v715 = vsel %vm243, %v713, %v700
  %v716 = vsel %vm243, %v714, %v702
  %vm717 = vcmask 195584
  %v718 = vsel %vm717, %v715, %v708
  %v719 = vsel %vm717, %v716, %v710
  %v720 = vpack.c.bf16 %v719, %v718
  %v721 = vld [vmem:[%s3] sm:$0xf]
  %v722 = vld [vmem:[%s3 + $0x4] sm:$0xf]
  %v723 = vld [vmem:[%s3 + $0x8] sm:$0xf]
  %v724 = vld [vmem:[%s3 + $0xc] sm:$0xf]
  %v725 = vld [vmem:[%s4] sm:$0x1]
  %v727 = vlaneseq
  %v728 = vshrl.u32 %v727, 7
  %v729 = vsub.s32 0, %v728
  %v730 = vrot.slane %v725, %v729
  %v736 = vunpack.c.l.b16 %v721
  %v737 = vunpack.c.l.b16 %v722
  %v738 = vunpack.c.l.b16 %v723
  %v739 = vunpack.c.l.b16 %v724
  %v740 = vpack.c.b16 %v737, %v736
  %v741 = vpack.c.b16 %v739, %v738
  %v745 = vsel %vm142, %v720, 0
  %747 = vmatprep.subr.bf16.mxu0 0
  %748 = vmatpush1.bf16.msra.mxu0 %v740
  %749 = vmatprep.subr.bf16.mxu0 0
  %750 = vmatpush1.bf16.msra.mxu0 %v741
  %751 = vmatprep.subr.bf16.mxu0 0
  %752 = vmatpush1.bf16.msra.mxu0 0
  %753 = vmatprep.subr.bf16.mxu0 0
  %754 = vmatpush1.bf16.msra.mxu0 0
  %755 = vmatprep.subr.bf16.mxu0 0
  %756 = vmatpush1.bf16.msra.mxu0 0
  %757 = vmatprep.subr.bf16.mxu0 0
  %758 = vmatpush1.bf16.msra.mxu0 0
  %759 = vmatprep.subr.bf16.mxu0 0
  %760 = vmatpush1.bf16.msra.mxu0 0
  %761 = vmatprep.subr.bf16.mxu0 0
  %762 = vmatpush1.bf16.msra.mxu0 0
  %763 = vmatprep.subr.bf16.mxu0 0
  %764 = vmatpush1.bf16.msra.mxu0 0
  %765 = vmatprep.subr.bf16.mxu0 0
  %766 = vmatpush1.bf16.msra.mxu0 0
  %767 = vmatprep.subr.bf16.mxu0 0
  %768 = vmatpush1.bf16.msra.mxu0 0
  %769 = vmatprep.subr.bf16.mxu0 0
  %770 = vmatpush1.bf16.msra.mxu0 0
  %771 = vmatprep.subr.bf16.mxu0 0
  %772 = vmatpush1.bf16.msra.mxu0 0
  %773 = vmatprep.subr.bf16.mxu0 0
  %774 = vmatpush1.bf16.msra.mxu0 0
  %775 = vmatprep.subr.bf16.mxu0 0
  %776 = vmatpush1.bf16.msra.mxu0 0
  %777 = vmatprep.subr.bf16.mxu0 0
  %778 = vmatpush1.bf16.msra.mxu0 0
  %779 = vmatprep.mubr.bf16.mxu0 0
  %780 = vmatmul.mubr.bf16.gmra.mrb[0].mxu0 %v745
  %v781 = vpop.f32.mrb[0].mxu0
  %v782 = vadd.f32 %v730, %v781
  %v783 = vpop.f32.mrb[0].mxu0
  %v784 = vpop.f32.mrb[0].mxu0
  %v785 = vadd.f32 %v730, %v784
  %v786 = vpop.f32.mrb[0].mxu0
  %787 = vdwg.mxu0
  %v788 = vadd.f32 %v71, %v782
  %v789 = vadd.f32 %v72, %v785
  %v790 = vld [vmem:[%s9] sm:$0x1]
  %v791 = vld [vmem:[%s10] sm:$0x1]
  %v792 = vsel %vm142, %v788, 0.0
  %793 = vadd.xlane.f32.xlu0 %v792
  %v794 = vpop.xlane.xlu0 %793
  %v795 = vsel %vm142, %v789, 0.0
  %796 = vadd.xlane.f32.xlu0 %v795
  %v797 = vpop.xlane.xlu0 %796
  %v798 = vrcp.pop 32.0
  %v799 = vmul.f32 %v794, %v798
  %v800 = vmul.f32 %v797, %v798
  %v801 = vsub.f32 %v788, %v799
  %v802 = vsub.f32 %v789, %v800
  %v803 = vmul.f32 %v801, %v801
  %v804 = vmul.f32 %v802, %v802
  %v805 = vsel %vm142, %v803, 0.0
  %806 = vadd.xlane.f32.xlu0 %v805
  %v807 = vpop.xlane.xlu0 %806
  %v808 = vsel %vm142, %v804, 0.0
  %809 = vadd.xlane.f32.xlu0 %v808
  %v810 = vpop.xlane.xlu0 %809
  %v811 = vmul.f32 %v807, %v798
  %v812 = vmul.f32 %v810, %v798
  %v813 = vadd.f32 %v811, 1e-05
  %v814 = vadd.f32 %v812, 1e-05
  %v815 = vrsqrt.pop %v813
  %v816 = vrsqrt.pop %v814
  %v817 = vmul.f32 %v801, %v815
  %v818 = vmul.f32 %v802, %v816
  %v820 = vlaneseq
  %v821 = vshrl.u32 %v820, 7
  %v822 = vsub.s32 0, %v821
  %v823 = vrot.slane %v790, %v822
  %v825 = vmul.f32 %v817, %v823
  %v826 = vmul.f32 %v818, %v823
  %v828 = vlaneseq
  %v829 = vshrl.u32 %v828, 7
  %v830 = vsub.s32 0, %v829
  %v831 = vrot.slane %v791, %v830
  %v833 = vadd.f32 %v825, %v831
  %v834 = vadd.f32 %v826, %v831
  %v835 = vpack.c.bf16 %v834, %v833
  %v836 = vld [vmem:[%s5] sm:$0xf]
  %v837 = vld [vmem:[%s5 + $0x4] sm:$0xf]
  %v838 = vld [vmem:[%s5 + $0x8] sm:$0xf]
  %v839 = vld [vmem:[%s5 + $0xc] sm:$0xf]
  %v840 = vld [vmem:[%s6] sm:$0x1]
  %v842 = vlaneseq
  %v843 = vshrl.u32 %v842, 7
  %v844 = vsub.s32 0, %v843
  %v845 = vrot.slane %v840, %v844
  %v851 = vunpack.c.l.b16 %v836
  %v852 = vunpack.c.l.b16 %v837
  %v853 = vunpack.c.l.b16 %v838
  %v854 = vunpack.c.l.b16 %v839
  %v855 = vpack.c.b16 %v852, %v851
  %v856 = vpack.c.b16 %v854, %v853
  %v860 = vsel %vm142, %v835, 0
  %862 = vmatprep.subr.bf16.mxu0 0
  %863 = vmatpush1.bf16.msra.mxu0 %v855
  %864 = vmatprep.subr.bf16.mxu0 0
  %865 = vmatpush1.bf16.msra.mxu0 %v856
  %866 = vmatprep.subr.bf16.mxu0 0
  %867 = vmatpush1.bf16.msra.mxu0 0
  %868 = vmatprep.subr.bf16.mxu0 0
  %869 = vmatpush1.bf16.msra.mxu0 0
  %870 = vmatprep.subr.bf16.mxu0 0
  %871 = vmatpush1.bf16.msra.mxu0 0
  %872 = vmatprep.subr.bf16.mxu0 0
  %873 = vmatpush1.bf16.msra.mxu0 0
  %874 = vmatprep.subr.bf16.mxu0 0
  %875 = vmatpush1.bf16.msra.mxu0 0
  %876 = vmatprep.subr.bf16.mxu0 0
  %877 = vmatpush1.bf16.msra.mxu0 0
  %878 = vmatprep.subr.bf16.mxu0 0
  %879 = vmatpush1.bf16.msra.mxu0 0
  %880 = vmatprep.subr.bf16.mxu0 0
  %881 = vmatpush1.bf16.msra.mxu0 0
  %882 = vmatprep.subr.bf16.mxu0 0
  %883 = vmatpush1.bf16.msra.mxu0 0
  %884 = vmatprep.subr.bf16.mxu0 0
  %885 = vmatpush1.bf16.msra.mxu0 0
  %886 = vmatprep.subr.bf16.mxu0 0
  %887 = vmatpush1.bf16.msra.mxu0 0
  %888 = vmatprep.subr.bf16.mxu0 0
  %889 = vmatpush1.bf16.msra.mxu0 0
  %890 = vmatprep.subr.bf16.mxu0 0
  %891 = vmatpush1.bf16.msra.mxu0 0
  %892 = vmatprep.subr.bf16.mxu0 0
  %893 = vmatpush1.bf16.msra.mxu0 0
  %894 = vmatprep.mubr.bf16.mxu0 0
  %895 = vmatmul.mubr.bf16.gmra.mrb[0].mxu0 %v860
  %v896 = vpop.f32.mrb[0].mxu0
  %v897 = vadd.f32 %v845, %v896
  %v898 = vpop.f32.mrb[0].mxu0
  %v899 = vpop.f32.mrb[0].mxu0
  %v900 = vadd.f32 %v845, %v899
  %v901 = vpop.f32.mrb[0].mxu0
  %902 = vdwg.mxu0
  %v903 = vmax.f32 %v897, 0.0
  %v904 = vmax.f32 %v900, 0.0
  %v905 = vpack.c.bf16 %v904, %v903
  %v906 = vld [vmem:[%s7] sm:$0xf]
  %v907 = vld [vmem:[%s7 + $0x4] sm:$0xf]
  %v908 = vld [vmem:[%s7 + $0x8] sm:$0xf]
  %v909 = vld [vmem:[%s7 + $0xc] sm:$0xf]
  %v910 = vld [vmem:[%s7 + $0x10] sm:$0xf]
  %v911 = vld [vmem:[%s7 + $0x14] sm:$0xf]
  %v912 = vld [vmem:[%s7 + $0x18] sm:$0xf]
  %v913 = vld [vmem:[%s7 + $0x1c] sm:$0xf]
  %v914 = vld [vmem:[%s8] sm:$0x1]
  %v916 = vlaneseq
  %v917 = vshrl.u32 %v916, 7
  %v918 = vsub.s32 0, %v917
  %v919 = vrot.slane %v914, %v918
  %v929 = vunpack.c.l.b16 %v906
  %v930 = vunpack.c.l.b16 %v907
  %v931 = vunpack.c.l.b16 %v908
  %v932 = vunpack.c.l.b16 %v909
  %v933 = vunpack.c.l.b16 %v910
  %v934 = vunpack.c.l.b16 %v911
  %v935 = vunpack.c.l.b16 %v912
  %v936 = vunpack.c.l.b16 %v913
  %v937 = vpack.c.b16 %v930, %v929
  %v938 = vpack.c.b16 %v932, %v931
  %v939 = vpack.c.b16 %v934, %v933
  %v940 = vpack.c.b16 %v936, %v935
  %vm945 = vcmask 523264
  %v947 = vsel %vm945, %v905, 0
  %949 = vmatprep.subr.bf16.mxu0 0
  %950 = vmatpush1.bf16.msra.mxu0 %v937
  %951 = vmatprep.subr.bf16.mxu0 0
  %952 = vmatpush1.bf16.msra.mxu0 %v938
  %953 = vmatprep.subr.bf16.mxu0 0
  %954 = vmatpush1.bf16.msra.mxu0 %v939
  %955 = vmatprep.subr.bf16.mxu0 0
  %956 = vmatpush1.bf16.msra.mxu0 %v940
  %957 = vmatprep.subr.bf16.mxu0 0
  %958 = vmatpush1.bf16.msra.mxu0 0
  %959 = vmatprep.subr.bf16.mxu0 0
  %960 = vmatpush1.bf16.msra.mxu0 0
  %961 = vmatprep.subr.bf16.mxu0 0
  %962 = vmatpush1.bf16.msra.mxu0 0
  %963 = vmatprep.subr.bf16.mxu0 0
  %964 = vmatpush1.bf16.msra.mxu0 0
  %965 = vmatprep.subr.bf16.mxu0 0
  %966 = vmatpush1.bf16.msra.mxu0 0
  %967 = vmatprep.subr.bf16.mxu0 0
  %968 = vmatpush1.bf16.msra.mxu0 0
  %969 = vmatprep.subr.bf16.mxu0 0
  %970 = vmatpush1.bf16.msra.mxu0 0
  %971 = vmatprep.subr.bf16.mxu0 0
  %972 = vmatpush1.bf16.msra.mxu0 0
  %973 = vmatprep.subr.bf16.mxu0 0
  %974 = vmatpush1.bf16.msra.mxu0 0
  %975 = vmatprep.subr.bf16.mxu0 0
  %976 = vmatpush1.bf16.msra.mxu0 0
  %977 = vmatprep.subr.bf16.mxu0 0
  %978 = vmatpush1.bf16.msra.mxu0 0
  %979 = vmatprep.subr.bf16.mxu0 0
  %980 = vmatpush1.bf16.msra.mxu0 0
  %981 = vmatprep.mubr.bf16.mxu0 0
  %982 = vmatmul.mubr.bf16.gmra.mrb[0].mxu0 %v947
  %v983 = vpop.f32.mrb[0].mxu0
  %v984 = vadd.f32 %v919, %v983
  %v985 = vpop.f32.mrb[0].mxu0
  %v986 = vpop.f32.mrb[0].mxu0
  %v987 = vadd.f32 %v919, %v986
  %v988 = vpop.f32.mrb[0].mxu0
  %989 = vdwg.mxu0
  %v990 = vadd.f32 %v833, %v984
  %v991 = vadd.f32 %v834, %v987
  %v992 = vld [vmem:[%s11] sm:$0x1]
  %v993 = vld [vmem:[%s12] sm:$0x1]
  %v994 = vsel %vm142, %v990, 0.0
  %995 = vadd.xlane.f32.xlu0 %v994
  %v996 = vpop.xlane.xlu0 %995
  %v997 = vsel %vm142, %v991, 0.0
  %998 = vadd.xlane.f32.xlu0 %v997
  %v999 = vpop.xlane.xlu0 %998
  %v1000 = vmul.f32 %v996, %v798
  %v1001 = vmul.f32 %v999, %v798
  %v1002 = vsub.f32 %v990, %v1000
  %v1003 = vsub.f32 %v991, %v1001
  %v1004 = vmul.f32 %v1002, %v1002
  %v1005 = vmul.f32 %v1003, %v1003
  %v1006 = vsel %vm142, %v1004, 0.0
  %1007 = vadd.xlane.f32.xlu0 %v1006
  %v1008 = vpop.xlane.xlu0 %1007
  %v1009 = vsel %vm142, %v1005, 0.0
  %1010 = vadd.xlane.f32.xlu0 %v1009
  %v1011 = vpop.xlane.xlu0 %1010
  %v1012 = vmul.f32 %v1008, %v798
  %v1013 = vmul.f32 %v1011, %v798
  %v1014 = vadd.f32 %v1012, 1e-05
  %v1015 = vadd.f32 %v1013, 1e-05
  %v1016 = vrsqrt.pop %v1014
  %v1017 = vrsqrt.pop %v1015
  %v1018 = vmul.f32 %v1002, %v1016
  %v1019 = vmul.f32 %v1003, %v1017
  %v1021 = vlaneseq
  %v1022 = vshrl.u32 %v1021, 7
  %v1023 = vsub.s32 0, %v1022
  %v1024 = vrot.slane %v992, %v1023
  %v1026 = vmul.f32 %v1018, %v1024
  %v1027 = vmul.f32 %v1019, %v1024
  %v1029 = vlaneseq
  %v1030 = vshrl.u32 %v1029, 7
  %v1031 = vsub.s32 0, %v1030
  %v1032 = vrot.slane %v993, %v1031
  %v1034 = vadd.f32 %v1026, %v1032
  %v1035 = vadd.f32 %v1027, %v1032
  %v1036 = vpack.c.bf16 %v1035, %v1034
  %s1037 = scalar_lea.vmem %s1, 16
  %v1038 = vld [vmem:[%s1037] sm:$0xf]
  %v1039 = vld [vmem:[%s1037 + $0x4] sm:$0xf]
  %v1040 = vld [vmem:[%s1037 + $0x8] sm:$0xf]
  %v1041 = vld [vmem:[%s1037 + $0xc] sm:$0xf]
  %s1042 = scalar_lea.vmem %s2, 1
  %v1043 = vld [vmem:[%s1042] sm:$0x1]
  %v1045 = vlaneseq
  %v1046 = vshrl.u32 %v1045, 7
  %v1047 = vsub.s32 0, %v1046
  %v1048 = vrot.slane %v1043, %v1047
  %v1054 = vunpack.c.l.b16 %v1038
  %v1055 = vunpack.c.l.b16 %v1039
  %v1056 = vunpack.c.l.b16 %v1040
  %v1057 = vunpack.c.l.b16 %v1041
  %v1058 = vpack.c.b16 %v1055, %v1054
  %v1059 = vpack.c.b16 %v1057, %v1056
  %v1063 = vsel %vm142, %v1036, 0
  %1065 = vmatprep.subr.bf16.mxu0 0
  %1066 = vmatpush1.bf16.msra.mxu0 %v1058
  %1067 = vmatprep.subr.bf16.mxu0 0
  %1068 = vmatpush1.bf16.msra.mxu0 %v1059
  %1069 = vmatprep.subr.bf16.mxu0 0
  %1070 = vmatpush1.bf16.msra.mxu0 0
  %1071 = vmatprep.subr.bf16.mxu0 0
  %1072 = vmatpush1.bf16.msra.mxu0 0
  %1073 = vmatprep.subr.bf16.mxu0 0
  %1074 = vmatpush1.bf16.msra.mxu0 0
  %1075 = vmatprep.subr.bf16.mxu0 0
  %1076 = vmatpush1.bf16.msra.mxu0 0
  %1077 = vmatprep.subr.bf16.mxu0 0
  %1078 = vmatpush1.bf16.msra.mxu0 0
  %1079 = vmatprep.subr.bf16.mxu0 0
  %1080 = vmatpush1.bf16.msra.mxu0 0
  %1081 = vmatprep.subr.bf16.mxu0 0
  %1082 = vmatpush1.bf16.msra.mxu0 0
  %1083 = vmatprep.subr.bf16.mxu0 0
  %1084 = vmatpush1.bf16.msra.mxu0 0
  %1085 = vmatprep.subr.bf16.mxu0 0
  %1086 = vmatpush1.bf16.msra.mxu0 0
  %1087 = vmatprep.subr.bf16.mxu0 0
  %1088 = vmatpush1.bf16.msra.mxu0 0
  %1089 = vmatprep.subr.bf16.mxu0 0
  %1090 = vmatpush1.bf16.msra.mxu0 0
  %1091 = vmatprep.subr.bf16.mxu0 0
  %1092 = vmatpush1.bf16.msra.mxu0 0
  %1093 = vmatprep.subr.bf16.mxu0 0
  %1094 = vmatpush1.bf16.msra.mxu0 0
  %1095 = vmatprep.subr.bf16.mxu0 0
  %1096 = vmatpush1.bf16.msra.mxu0 0
  %1097 = vmatprep.mubr.bf16.mxu0 0
  %1098 = vmatmul.mubr.bf16.gmra.mrb[0].mxu0 %v1063
  %v1099 = vpop.f32.mrb[0].mxu0
  %v1100 = vadd.f32 %v1048, %v1099
  %v1101 = vpop.f32.mrb[0].mxu0
  %v1102 = vpop.f32.mrb[0].mxu0
  %v1103 = vadd.f32 %v1048, %v1102
  %v1104 = vpop.f32.mrb[0].mxu0
  %1105 = vdwg.mxu0
  %v1106 = vpack.c.bf16 %v1103, %v1100
  %1108 = vrot.lane.b32.xlu0 %v1106, 96
  %v1109 = vpop.permute.xlu0 %1108
  %v1111 = vsel %vm191, %v1106, 0
  %v1114 = vsel %vm191, %v1109, 0
  %1116 = vmatprep.subr.bf16.mxu0 0
  %1117 = vmatpush1.bf16.xpose.msra.mxu0 %v1114
  %1118 = vmatprep.subr.bf16.mxu0 0
  %1119 = vmatpush1.bf16.xpose.msra.mxu0 0
  %1120 = vmatprep.subr.bf16.mxu0 0
  %1121 = vmatpush1.bf16.xpose.msra.mxu0 0
  %1122 = vmatprep.subr.bf16.mxu0 0
  %1123 = vmatpush1.bf16.xpose.msra.mxu0 0
  %1124 = vmatprep.subr.bf16.mxu0 0
  %1125 = vmatpush1.bf16.xpose.msra.mxu0 0
  %1126 = vmatprep.subr.bf16.mxu0 0
  %1127 = vmatpush1.bf16.xpose.msra.mxu0 0
  %1128 = vmatprep.subr.bf16.mxu0 0
  %1129 = vmatpush1.bf16.xpose.msra.mxu0 0
  %1130 = vmatprep.subr.bf16.mxu0 0
  %1131 = vmatpush1.bf16.xpose.msra.mxu0 0
  %1132 = vmatprep.subr.bf16.mxu0 0
  %1133 = vmatpush1.bf16.xpose.msra.mxu0 0
  %1134 = vmatprep.subr.bf16.mxu0 0
  %1135 = vmatpush1.bf16.xpose.msra.mxu0 0
  %1136 = vmatprep.subr.bf16.mxu0 0
  %1137 = vmatpush1.bf16.xpose.msra.mxu0 0
  %1138 = vmatprep.subr.bf16.mxu0 0
  %1139 = vmatpush1.bf16.xpose.msra.mxu0 0
  %1140 = vmatprep.subr.bf16.mxu0 0
  %1141 = vmatpush1.bf16.xpose.msra.mxu0 0
  %1142 = vmatprep.subr.bf16.mxu0 0
  %1143 = vmatpush1.bf16.xpose.msra.mxu0 0
  %1144 = vmatprep.subr.bf16.mxu0 0
  %1145 = vmatpush1.bf16.xpose.msra.mxu0 0
  %1146 = vmatprep.subr.bf16.mxu0 0
  %1147 = vmatpush1.bf16.xpose.msra.mxu0 0
  %1148 = vmatprep.mubr.bf16.mxu0 0
  %1149 = vmatmul.mubr.bf16.gmra.mrb[0].mxu0 %v1111
  %v1150 = vpop.f32.mrb[0].mxu0
  %v1151 = vadd.f32 0.0, %v1150
  %v1152 = vpop.f32.mrb[0].mxu0
  %v1153 = vpop.f32.mrb[0].mxu0
  %v1154 = vadd.f32 0.0, %v1153
  %v1155 = vpop.f32.mrb[0].mxu0
  %1156 = vdwg.mxu0
  %v1157 = vmul.f32 %v1151, 0.35355338
  %v1158 = vmul.f32 %v1154, 0.35355338
  %v1159 = vadd.f32 %v1157, %v116
  %v1160 = vadd.f32 %v1158, %v117
  %v1161 = vsel %vm243, %v1159, -inf
  %1162 = vmax.xlane.f32.xlu0 %v1161
  %v1163 = vpop.xlane.xlu0 %1162
  %v1164 = vsel %vm243, %v1160, -inf
  %1165 = vmax.xlane.f32.xlu0 %v1164
  %v1166 = vpop.xlane.xlu0 %1165
  %v1167 = vsub.f32 %v1159, %v1163
  %v1168 = vsub.f32 %v1160, %v1166
  %v1169 = vmul.f32 %v1167, 1.442695
  %v1170 = vpow.pop %v1169
  %v1171 = vmul.f32 %v1168, 1.442695
  %v1172 = vpow.pop %v1171
  %v1173 = vsel %vm243, %v1170, 0.0
  %1174 = vadd.xlane.f32.xlu0 %v1173
  %v1175 = vpop.xlane.xlu0 %1174
  %v1176 = vsel %vm243, %v1172, 0.0
  %1177 = vadd.xlane.f32.xlu0 %v1176
  %v1178 = vpop.xlane.xlu0 %1177
  %v1179 = vrcp.pop %v1175
  %v1180 = vmul.f32 %v1170, %v1179
  %v1181 = vrcp.pop %v1178
  %v1182 = vmul.f32 %v1172, %v1181
  %v1183 = vpack.c.bf16 %v1182, %v1180
  %1184 = vrot.lane.b32.xlu0 %v1106, 64
  %v1185 = vpop.permute.xlu0 %1184
  %v1188 = vsel %vm243, %v1183, 0
  %1190 = vmatprep.subr.bf16.mxu0 0
  %1191 = vmatpush1.bf16.msra.mxu0 %v1185
  %1192 = vmatprep.subr.bf16.mxu0 0
  %1193 = vmatpush1.bf16.msra.mxu0 0
  %1194 = vmatprep.subr.bf16.mxu0 0
  %1195 = vmatpush1.bf16.msra.mxu0 0
  %1196 = vmatprep.subr.bf16.mxu0 0
  %1197 = vmatpush1.bf16.msra.mxu0 0
  %1198 = vmatprep.subr.bf16.mxu0 0
  %1199 = vmatpush1.bf16.msra.mxu0 0
  %1200 = vmatprep.subr.bf16.mxu0 0
  %1201 = vmatpush1.bf16.msra.mxu0 0
  %1202 = vmatprep.subr.bf16.mxu0 0
  %1203 = vmatpush1.bf16.msra.mxu0 0
  %1204 = vmatprep.subr.bf16.mxu0 0
  %1205 = vmatpush1.bf16.msra.mxu0 0
  %1206 = vmatprep.subr.bf16.mxu0 0
  %1207 = vmatpush1.bf16.msra.mxu0 0
  %1208 = vmatprep.subr.bf16.mxu0 0
  %1209 = vmatpush1.bf16.msra.mxu0 0
  %1210 = vmatprep.subr.bf16.mxu0 0
  %1211 = vmatpush1.bf16.msra.mxu0 0
  %1212 = vmatprep.subr.bf16.mxu0 0
  %1213 = vmatpush1.bf16.msra.mxu0 0
  %1214 = vmatprep.subr.bf16.mxu0 0
  %1215 = vmatpush1.bf16.msra.mxu0 0
  %1216 = vmatprep.subr.bf16.mxu0 0
  %1217 = vmatpush1.bf16.msra.mxu0 0
  %1218 = vmatprep.subr.bf16.mxu0 0
  %1219 = vmatpush1.bf16.msra.mxu0 0
  %1220 = vmatprep.subr.bf16.mxu0 0
  %1221 = vmatpush1.bf16.msra.mxu0 0
  %1222 = vmatprep.mubr.bf16.mxu0 0
  %1223 = vmatmul.mubr.bf16.gmra.mrb[0].mxu0 %v1188
  %v1224 = vpop.f32.mrb[0].mxu0
  %v1225 = vadd.f32 0.0, %v1224
  %v1226 = vpop.f32.mrb[0].mxu0
  %v1227 = vpop.f32.mrb[0].mxu0
  %v1228 = vadd.f32 0.0, %v1227
  %v1229 = vpop.f32.mrb[0].mxu0
  %1230 = vdwg.mxu0
  %1231 = vrot.lane.b32.xlu0 %v1106, 120
  %v1232 = vpop.permute.xlu0 %1231
  %1233 = vrot.lane.b32.xlu0 %v1106, 88
  %v1234 = vpop.permute.xlu0 %1233
  %v1236 = vsel %vm191, %v1232, 0
  %v1239 = vsel %vm191, %v1234, 0
  %1241 = vmatprep.subr.bf16.mxu0 0
  %1242 = vmatpush1.bf16.xpose.msra.mxu0 %v1239
  %1243 = vmatprep.subr.bf16.mxu0 0
  %1244 = vmatpush1.bf16.xpose.msra.mxu0 0
  %1245 = vmatprep.subr.bf16.mxu0 0
  %1246 = vmatpush1.bf16.xpose.msra.mxu0 0
  %1247 = vmatprep.subr.bf16.mxu0 0
  %1248 = vmatpush1.bf16.xpose.msra.mxu0 0
  %1249 = vmatprep.subr.bf16.mxu0 0
  %1250 = vmatpush1.bf16.xpose.msra.mxu0 0
  %1251 = vmatprep.subr.bf16.mxu0 0
  %1252 = vmatpush1.bf16.xpose.msra.mxu0 0
  %1253 = vmatprep.subr.bf16.mxu0 0
  %1254 = vmatpush1.bf16.xpose.msra.mxu0 0
  %1255 = vmatprep.subr.bf16.mxu0 0
  %1256 = vmatpush1.bf16.xpose.msra.mxu0 0
  %1257 = vmatprep.subr.bf16.mxu0 0
  %1258 = vmatpush1.bf16.xpose.msra.mxu0 0
  %1259 = vmatprep.subr.bf16.mxu0 0
  %1260 = vmatpush1.bf16.xpose.msra.mxu0 0
  %1261 = vmatprep.subr.bf16.mxu0 0
  %1262 = vmatpush1.bf16.xpose.msra.mxu0 0
  %1263 = vmatprep.subr.bf16.mxu0 0
  %1264 = vmatpush1.bf16.xpose.msra.mxu0 0
  %1265 = vmatprep.subr.bf16.mxu0 0
  %1266 = vmatpush1.bf16.xpose.msra.mxu0 0
  %1267 = vmatprep.subr.bf16.mxu0 0
  %1268 = vmatpush1.bf16.xpose.msra.mxu0 0
  %1269 = vmatprep.subr.bf16.mxu0 0
  %1270 = vmatpush1.bf16.xpose.msra.mxu0 0
  %1271 = vmatprep.subr.bf16.mxu0 0
  %1272 = vmatpush1.bf16.xpose.msra.mxu0 0
  %1273 = vmatprep.mubr.bf16.mxu0 0
  %1274 = vmatmul.mubr.bf16.gmra.mrb[0].mxu0 %v1236
  %v1275 = vpop.f32.mrb[0].mxu0
  %v1276 = vadd.f32 0.0, %v1275
  %v1277 = vpop.f32.mrb[0].mxu0
  %v1278 = vpop.f32.mrb[0].mxu0
  %v1279 = vadd.f32 0.0, %v1278
  %v1280 = vpop.f32.mrb[0].mxu0
  %1281 = vdwg.mxu0
  %v1282 = vmul.f32 %v1276, 0.35355338
  %v1283 = vmul.f32 %v1279, 0.35355338
  %v1284 = vadd.f32 %v1282, %v116
  %v1285 = vadd.f32 %v1283, %v117
  %v1286 = vsel %vm243, %v1284, -inf
  %1287 = vmax.xlane.f32.xlu0 %v1286
  %v1288 = vpop.xlane.xlu0 %1287
  %v1289 = vsel %vm243, %v1285, -inf
  %1290 = vmax.xlane.f32.xlu0 %v1289
  %v1291 = vpop.xlane.xlu0 %1290
  %v1292 = vsub.f32 %v1284, %v1288
  %v1293 = vsub.f32 %v1285, %v1291
  %v1294 = vmul.f32 %v1292, 1.442695
  %v1295 = vpow.pop %v1294
  %v1296 = vmul.f32 %v1293, 1.442695
  %v1297 = vpow.pop %v1296
  %v1298 = vsel %vm243, %v1295, 0.0
  %1299 = vadd.xlane.f32.xlu0 %v1298
  %v1300 = vpop.xlane.xlu0 %1299
  %v1301 = vsel %vm243, %v1297, 0.0
  %1302 = vadd.xlane.f32.xlu0 %v1301
  %v1303 = vpop.xlane.xlu0 %1302
  %v1304 = vrcp.pop %v1300
  %v1305 = vmul.f32 %v1295, %v1304
  %v1306 = vrcp.pop %v1303
  %v1307 = vmul.f32 %v1297, %v1306
  %v1308 = vpack.c.bf16 %v1307, %v1305
  %1309 = vrot.lane.b32.xlu0 %v1106, 56
  %v1310 = vpop.permute.xlu0 %1309
  %v1313 = vsel %vm243, %v1308, 0
  %1315 = vmatprep.subr.bf16.mxu0 0
  %1316 = vmatpush1.bf16.msra.mxu0 %v1310
  %1317 = vmatprep.subr.bf16.mxu0 0
  %1318 = vmatpush1.bf16.msra.mxu0 0
  %1319 = vmatprep.subr.bf16.mxu0 0
  %1320 = vmatpush1.bf16.msra.mxu0 0
  %1321 = vmatprep.subr.bf16.mxu0 0
  %1322 = vmatpush1.bf16.msra.mxu0 0
  %1323 = vmatprep.subr.bf16.mxu0 0
  %1324 = vmatpush1.bf16.msra.mxu0 0
  %1325 = vmatprep.subr.bf16.mxu0 0
  %1326 = vmatpush1.bf16.msra.mxu0 0
  %1327 = vmatprep.subr.bf16.mxu0 0
  %1328 = vmatpush1.bf16.msra.mxu0 0
  %1329 = vmatprep.subr.bf16.mxu0 0
  %1330 = vmatpush1.bf16.msra.mxu0 0
  %1331 = vmatprep.subr.bf16.mxu0 0
  %1332 = vmatpush1.bf16.msra.mxu0 0
  %1333 = vmatprep.subr.bf16.mxu0 0
  %1334 = vmatpush1.bf16.msra.mxu0 0
  %1335 = vmatprep.subr.bf16.mxu0 0
  %1336 = vmatpush1.bf16.msra.mxu0 0
  %1337 = vmatprep.subr.bf16.mxu0 0
  %1338 = vmatpush1.bf16.msra.mxu0 0
  %1339 = vmatprep.subr.bf16.mxu0 0
  %1340 = vmatpush1.bf16.msra.mxu0 0
  %1341 = vmatprep.subr.bf16.mxu0 0
  %1342 = vmatpush1.bf16.msra.mxu0 0
  %1343 = vmatprep.subr.bf16.mxu0 0
  %1344 = vmatpush1.bf16.msra.mxu0 0
  %1345 = vmatprep.subr.bf16.mxu0 0
  %1346 = vmatpush1.bf16.msra.mxu0 0
  %1347 = vmatprep.mubr.bf16.mxu0 0
  %1348 = vmatmul.mubr.bf16.gmra.mrb[0].mxu0 %v1313
  %v1349 = vpop.f32.mrb[0].mxu0
  %v1350 = vadd.f32 0.0, %v1349
  %v1351 = vpop.f32.mrb[0].mxu0
  %v1352 = vpop.f32.mrb[0].mxu0
  %v1353 = vadd.f32 0.0, %v1352
  %v1354 = vpop.f32.mrb[0].mxu0
  %1355 = vdwg.mxu0
  %1356 = vrot.lane.b32.xlu0 %v1106, 112
  %v1357 = vpop.permute.xlu0 %1356
  %1358 = vrot.lane.b32.xlu0 %v1106, 80
  %v1359 = vpop.permute.xlu0 %1358
  %v1361 = vsel %vm191, %v1357, 0
  %v1364 = vsel %vm191, %v1359, 0
  %1366 = vmatprep.subr.bf16.mxu0 0
  %1367 = vmatpush1.bf16.xpose.msra.mxu0 %v1364
  %1368 = vmatprep.subr.bf16.mxu0 0
  %1369 = vmatpush1.bf16.xpose.msra.mxu0 0
  %1370 = vmatprep.subr.bf16.mxu0 0
  %1371 = vmatpush1.bf16.xpose.msra.mxu0 0
  %1372 = vmatprep.subr.bf16.mxu0 0
  %1373 = vmatpush1.bf16.xpose.msra.mxu0 0
  %1374 = vmatprep.subr.bf16.mxu0 0
  %1375 = vmatpush1.bf16.xpose.msra.mxu0 0
  %1376 = vmatprep.subr.bf16.mxu0 0
  %1377 = vmatpush1.bf16.xpose.msra.mxu0 0
  %1378 = vmatprep.subr.bf16.mxu0 0
  %1379 = vmatpush1.bf16.xpose.msra.mxu0 0
  %1380 = vmatprep.subr.bf16.mxu0 0
  %1381 = vmatpush1.bf16.xpose.msra.mxu0 0
  %1382 = vmatprep.subr.bf16.mxu0 0
  %1383 = vmatpush1.bf16.xpose.msra.mxu0 0
  %1384 = vmatprep.subr.bf16.mxu0 0
  %1385 = vmatpush1.bf16.xpose.msra.mxu0 0
  %1386 = vmatprep.subr.bf16.mxu0 0
  %1387 = vmatpush1.bf16.xpose.msra.mxu0 0
  %1388 = vmatprep.subr.bf16.mxu0 0
  %1389 = vmatpush1.bf16.xpose.msra.mxu0 0
  %1390 = vmatprep.subr.bf16.mxu0 0
  %1391 = vmatpush1.bf16.xpose.msra.mxu0 0
  %1392 = vmatprep.subr.bf16.mxu0 0
  %1393 = vmatpush1.bf16.xpose.msra.mxu0 0
  %1394 = vmatprep.subr.bf16.mxu0 0
  %1395 = vmatpush1.bf16.xpose.msra.mxu0 0
  %1396 = vmatprep.subr.bf16.mxu0 0
  %1397 = vmatpush1.bf16.xpose.msra.mxu0 0
  %1398 = vmatprep.mubr.bf16.mxu0 0
  %1399 = vmatmul.mubr.bf16.gmra.mrb[0].mxu0 %v1361
  %v1400 = vpop.f32.mrb[0].mxu0
  %v1401 = vadd.f32 0.0, %v1400
  %v1402 = vpop.f32.mrb[0].mxu0
  %v1403 = vpop.f32.mrb[0].mxu0
  %v1404 = vadd.f32 0.0, %v1403
  %v1405 = vpop.f32.mrb[0].mxu0
  %1406 = vdwg.mxu0
  %v1407 = vmul.f32 %v1401, 0.35355338
  %v1408 = vmul.f32 %v1404, 0.35355338
  %v1409 = vadd.f32 %v1407, %v116
  %v1410 = vadd.f32 %v1408, %v117
  %v1411 = vsel %vm243, %v1409, -inf
  %1412 = vmax.xlane.f32.xlu0 %v1411
  %v1413 = vpop.xlane.xlu0 %1412
  %v1414 = vsel %vm243, %v1410, -inf
  %1415 = vmax.xlane.f32.xlu0 %v1414
  %v1416 = vpop.xlane.xlu0 %1415
  %v1417 = vsub.f32 %v1409, %v1413
  %v1418 = vsub.f32 %v1410, %v1416
  %v1419 = vmul.f32 %v1417, 1.442695
  %v1420 = vpow.pop %v1419
  %v1421 = vmul.f32 %v1418, 1.442695
  %v1422 = vpow.pop %v1421
  %v1423 = vsel %vm243, %v1420, 0.0
  %1424 = vadd.xlane.f32.xlu0 %v1423
  %v1425 = vpop.xlane.xlu0 %1424
  %v1426 = vsel %vm243, %v1422, 0.0
  %1427 = vadd.xlane.f32.xlu0 %v1426
  %v1428 = vpop.xlane.xlu0 %1427
  %v1429 = vrcp.pop %v1425
  %v1430 = vmul.f32 %v1420, %v1429
  %v1431 = vrcp.pop %v1428
  %v1432 = vmul.f32 %v1422, %v1431
  %v1433 = vpack.c.bf16 %v1432, %v1430
  %1434 = vrot.lane.b32.xlu0 %v1106, 48
  %v1435 = vpop.permute.xlu0 %1434
  %v1438 = vsel %vm243, %v1433, 0
  %1440 = vmatprep.subr.bf16.mxu0 0
  %1441 = vmatpush1.bf16.msra.mxu0 %v1435
  %1442 = vmatprep.subr.bf16.mxu0 0
  %1443 = vmatpush1.bf16.msra.mxu0 0
  %1444 = vmatprep.subr.bf16.mxu0 0
  %1445 = vmatpush1.bf16.msra.mxu0 0
  %1446 = vmatprep.subr.bf16.mxu0 0
  %1447 = vmatpush1.bf16.msra.mxu0 0
  %1448 = vmatprep.subr.bf16.mxu0 0
  %1449 = vmatpush1.bf16.msra.mxu0 0
  %1450 = vmatprep.subr.bf16.mxu0 0
  %1451 = vmatpush1.bf16.msra.mxu0 0
  %1452 = vmatprep.subr.bf16.mxu0 0
  %1453 = vmatpush1.bf16.msra.mxu0 0
  %1454 = vmatprep.subr.bf16.mxu0 0
  %1455 = vmatpush1.bf16.msra.mxu0 0
  %1456 = vmatprep.subr.bf16.mxu0 0
  %1457 = vmatpush1.bf16.msra.mxu0 0
  %1458 = vmatprep.subr.bf16.mxu0 0
  %1459 = vmatpush1.bf16.msra.mxu0 0
  %1460 = vmatprep.subr.bf16.mxu0 0
  %1461 = vmatpush1.bf16.msra.mxu0 0
  %1462 = vmatprep.subr.bf16.mxu0 0
  %1463 = vmatpush1.bf16.msra.mxu0 0
  %1464 = vmatprep.subr.bf16.mxu0 0
  %1465 = vmatpush1.bf16.msra.mxu0 0
  %1466 = vmatprep.subr.bf16.mxu0 0
  %1467 = vmatpush1.bf16.msra.mxu0 0
  %1468 = vmatprep.subr.bf16.mxu0 0
  %1469 = vmatpush1.bf16.msra.mxu0 0
  %1470 = vmatprep.subr.bf16.mxu0 0
  %1471 = vmatpush1.bf16.msra.mxu0 0
  %1472 = vmatprep.mubr.bf16.mxu0 0
  %1473 = vmatmul.mubr.bf16.gmra.mrb[0].mxu0 %v1438
  %v1474 = vpop.f32.mrb[0].mxu0
  %v1475 = vadd.f32 0.0, %v1474
  %v1476 = vpop.f32.mrb[0].mxu0
  %v1477 = vpop.f32.mrb[0].mxu0
  %v1478 = vadd.f32 0.0, %v1477
  %v1479 = vpop.f32.mrb[0].mxu0
  %1480 = vdwg.mxu0
  %1481 = vrot.lane.b32.xlu0 %v1106, 104
  %v1482 = vpop.permute.xlu0 %1481
  %1483 = vrot.lane.b32.xlu0 %v1106, 72
  %v1484 = vpop.permute.xlu0 %1483
  %v1486 = vsel %vm191, %v1482, 0
  %v1489 = vsel %vm191, %v1484, 0
  %1491 = vmatprep.subr.bf16.mxu0 0
  %1492 = vmatpush1.bf16.xpose.msra.mxu0 %v1489
  %1493 = vmatprep.subr.bf16.mxu0 0
  %1494 = vmatpush1.bf16.xpose.msra.mxu0 0
  %1495 = vmatprep.subr.bf16.mxu0 0
  %1496 = vmatpush1.bf16.xpose.msra.mxu0 0
  %1497 = vmatprep.subr.bf16.mxu0 0
  %1498 = vmatpush1.bf16.xpose.msra.mxu0 0
  %1499 = vmatprep.subr.bf16.mxu0 0
  %1500 = vmatpush1.bf16.xpose.msra.mxu0 0
  %1501 = vmatprep.subr.bf16.mxu0 0
  %1502 = vmatpush1.bf16.xpose.msra.mxu0 0
  %1503 = vmatprep.subr.bf16.mxu0 0
  %1504 = vmatpush1.bf16.xpose.msra.mxu0 0
  %1505 = vmatprep.subr.bf16.mxu0 0
  %1506 = vmatpush1.bf16.xpose.msra.mxu0 0
  %1507 = vmatprep.subr.bf16.mxu0 0
  %1508 = vmatpush1.bf16.xpose.msra.mxu0 0
  %1509 = vmatprep.subr.bf16.mxu0 0
  %1510 = vmatpush1.bf16.xpose.msra.mxu0 0
  %1511 = vmatprep.subr.bf16.mxu0 0
  %1512 = vmatpush1.bf16.xpose.msra.mxu0 0
  %1513 = vmatprep.subr.bf16.mxu0 0
  %1514 = vmatpush1.bf16.xpose.msra.mxu0 0
  %1515 = vmatprep.subr.bf16.mxu0 0
  %1516 = vmatpush1.bf16.xpose.msra.mxu0 0
  %1517 = vmatprep.subr.bf16.mxu0 0
  %1518 = vmatpush1.bf16.xpose.msra.mxu0 0
  %1519 = vmatprep.subr.bf16.mxu0 0
  %1520 = vmatpush1.bf16.xpose.msra.mxu0 0
  %1521 = vmatprep.subr.bf16.mxu0 0
  %1522 = vmatpush1.bf16.xpose.msra.mxu0 0
  %1523 = vmatprep.mubr.bf16.mxu0 0
  %1524 = vmatmul.mubr.bf16.gmra.mrb[0].mxu0 %v1486
  %v1525 = vpop.f32.mrb[0].mxu0
  %v1526 = vadd.f32 0.0, %v1525
  %v1527 = vpop.f32.mrb[0].mxu0
  %v1528 = vpop.f32.mrb[0].mxu0
  %v1529 = vadd.f32 0.0, %v1528
  %v1530 = vpop.f32.mrb[0].mxu0
  %1531 = vdwg.mxu0
  %v1532 = vmul.f32 %v1526, 0.35355338
  %v1533 = vmul.f32 %v1529, 0.35355338
  %v1534 = vadd.f32 %v1532, %v116
  %v1535 = vadd.f32 %v1533, %v117
  %v1536 = vsel %vm243, %v1534, -inf
  %1537 = vmax.xlane.f32.xlu0 %v1536
  %v1538 = vpop.xlane.xlu0 %1537
  %v1539 = vsel %vm243, %v1535, -inf
  %1540 = vmax.xlane.f32.xlu0 %v1539
  %v1541 = vpop.xlane.xlu0 %1540
  %v1542 = vsub.f32 %v1534, %v1538
  %v1543 = vsub.f32 %v1535, %v1541
  %v1544 = vmul.f32 %v1542, 1.442695
  %v1545 = vpow.pop %v1544
  %v1546 = vmul.f32 %v1543, 1.442695
  %v1547 = vpow.pop %v1546
  %v1548 = vsel %vm243, %v1545, 0.0
  %1549 = vadd.xlane.f32.xlu0 %v1548
  %v1550 = vpop.xlane.xlu0 %1549
  %v1551 = vsel %vm243, %v1547, 0.0
  %1552 = vadd.xlane.f32.xlu0 %v1551
  %v1553 = vpop.xlane.xlu0 %1552
  %v1554 = vrcp.pop %v1550
  %v1555 = vmul.f32 %v1545, %v1554
  %v1556 = vrcp.pop %v1553
  %v1557 = vmul.f32 %v1547, %v1556
  %v1558 = vpack.c.bf16 %v1557, %v1555
  %1559 = vrot.lane.b32.xlu0 %v1106, 40
  %v1560 = vpop.permute.xlu0 %1559
  %v1563 = vsel %vm243, %v1558, 0
  %1565 = vmatprep.subr.bf16.mxu0 0
  %1566 = vmatpush1.bf16.msra.mxu0 %v1560
  %1567 = vmatprep.subr.bf16.mxu0 0
  %1568 = vmatpush1.bf16.msra.mxu0 0
  %1569 = vmatprep.subr.bf16.mxu0 0
  %1570 = vmatpush1.bf16.msra.mxu0 0
  %1571 = vmatprep.subr.bf16.mxu0 0
  %1572 = vmatpush1.bf16.msra.mxu0 0
  %1573 = vmatprep.subr.bf16.mxu0 0
  %1574 = vmatpush1.bf16.msra.mxu0 0
  %1575 = vmatprep.subr.bf16.mxu0 0
  %1576 = vmatpush1.bf16.msra.mxu0 0
  %1577 = vmatprep.subr.bf16.mxu0 0
  %1578 = vmatpush1.bf16.msra.mxu0 0
  %1579 = vmatprep.subr.bf16.mxu0 0
  %1580 = vmatpush1.bf16.msra.mxu0 0
  %1581 = vmatprep.subr.bf16.mxu0 0
  %1582 = vmatpush1.bf16.msra.mxu0 0
  %1583 = vmatprep.subr.bf16.mxu0 0
  %1584 = vmatpush1.bf16.msra.mxu0 0
  %1585 = vmatprep.subr.bf16.mxu0 0
  %1586 = vmatpush1.bf16.msra.mxu0 0
  %1587 = vmatprep.subr.bf16.mxu0 0
  %1588 = vmatpush1.bf16.msra.mxu0 0
  %1589 = vmatprep.subr.bf16.mxu0 0
  %1590 = vmatpush1.bf16.msra.mxu0 0
  %1591 = vmatprep.subr.bf16.mxu0 0
  %1592 = vmatpush1.bf16.msra.mxu0 0
  %1593 = vmatprep.subr.bf16.mxu0 0
  %1594 = vmatpush1.bf16.msra.mxu0 0
  %1595 = vmatprep.subr.bf16.mxu0 0
  %1596 = vmatpush1.bf16.msra.mxu0 0
  %1597 = vmatprep.mubr.bf16.mxu0 0
  %1598 = vmatmul.mubr.bf16.gmra.mrb[0].mxu0 %v1563
  %v1599 = vpop.f32.mrb[0].mxu0
  %v1600 = vadd.f32 0.0, %v1599
  %v1601 = vpop.f32.mrb[0].mxu0
  %v1602 = vpop.f32.mrb[0].mxu0
  %v1603 = vadd.f32 0.0, %v1602
  %v1604 = vpop.f32.mrb[0].mxu0
  %1605 = vdwg.mxu0
  %1608 = vrot.lane.b32.xlu0 %v1350, 8
  %v1609 = vpop.permute.xlu0 %1608
  %1610 = vrot.lane.b32.xlu0 %v1353, 8
  %v1611 = vpop.permute.xlu0 %1610
  %1616 = vrot.lane.b32.xlu0 %v1475, 16
  %v1617 = vpop.permute.xlu0 %1616
  %1618 = vrot.lane.b32.xlu0 %v1478, 16
  %v1619 = vpop.permute.xlu0 %1618
  %1624 = vrot.lane.b32.xlu0 %v1600, 24
  %v1625 = vpop.permute.xlu0 %1624
  %1626 = vrot.lane.b32.xlu0 %v1603, 24
  %v1627 = vpop.permute.xlu0 %1626
  %v1630 = vsel %vm191, %v1225, %v1609
  %v1631 = vsel %vm191, %v1228, %v1611
  %v1632 = vsel %vm243, %v1630, %v1617
  %v1633 = vsel %vm243, %v1631, %v1619
  %v1634 = vsel %vm717, %v1632, %v1625
  %v1635 = vsel %vm717, %v1633, %v1627
  %v1636 = vpack.c.bf16 %v1635, %v1634
  %s1637 = scalar_lea.vmem %s3, 16
  %v1638 = vld [vmem:[%s1637] sm:$0xf]
  %v1639 = vld [vmem:[%s1637 + $0x4] sm:$0xf]
  %v1640 = vld [vmem:[%s1637 + $0x8] sm:$0xf]
  %v1641 = vld [vmem:[%s1637 + $0xc] sm:$0xf]
  %s1642 = scalar_lea.vmem %s4, 1
  %v1643 = vld [vmem:[%s1642] sm:$0x1]
  %v1645 = vlaneseq
  %v1646 = vshrl.u32 %v1645, 7
  %v1647 = vsub.s32 0, %v1646
  %v1648 = vrot.slane %v1643, %v1647
  %v1654 = vunpack.c.l.b16 %v1638
  %v1655 = vunpack.c.l.b16 %v1639
  %v1656 = vunpack.c.l.b16 %v1640
  %v1657 = vunpack.c.l.b16 %v1641
  %v1658 = vpack.c.b16 %v1655, %v1654
  %v1659 = vpack.c.b16 %v1657, %v1656
  %v1663 = vsel %vm142, %v1636, 0
  %1665 = vmatprep.subr.bf16.mxu0 0
  %1666 = vmatpush1.bf16.msra.mxu0 %v1658
  %1667 = vmatprep.subr.bf16.mxu0 0
  %1668 = vmatpush1.bf16.msra.mxu0 %v1659
  %1669 = vmatprep.subr.bf16.mxu0 0
  %1670 = vmatpush1.bf16.msra.mxu0 0
  %1671 = vmatprep.subr.bf16.mxu0 0
  %1672 = vmatpush1.bf16.msra.mxu0 0
  %1673 = vmatprep.subr.bf16.mxu0 0
  %1674 = vmatpush1.bf16.msra.mxu0 0
  %1675 = vmatprep.subr.bf16.mxu0 0
  %1676 = vmatpush1.bf16.msra.mxu0 0
  %1677 = vmatprep.subr.bf16.mxu0 0
  %1678 = vmatpush1.bf16.msra.mxu0 0
  %1679 = vmatprep.subr.bf16.mxu0 0
  %1680 = vmatpush1.bf16.msra.mxu0 0
  %1681 = vmatprep.subr.bf16.mxu0 0
  %1682 = vmatpush1.bf16.msra.mxu0 0
  %1683 = vmatprep.subr.bf16.mxu0 0
  %1684 = vmatpush1.bf16.msra.mxu0 0
  %1685 = vmatprep.subr.bf16.mxu0 0
  %1686 = vmatpush1.bf16.msra.mxu0 0
  %1687 = vmatprep.subr.bf16.mxu0 0
  %1688 = vmatpush1.bf16.msra.mxu0 0
  %1689 = vmatprep.subr.bf16.mxu0 0
  %1690 = vmatpush1.bf16.msra.mxu0 0
  %1691 = vmatprep.subr.bf16.mxu0 0
  %1692 = vmatpush1.bf16.msra.mxu0 0
  %1693 = vmatprep.subr.bf16.mxu0 0
  %1694 = vmatpush1.bf16.msra.mxu0 0
  %1695 = vmatprep.subr.bf16.mxu0 0
  %1696 = vmatpush1.bf16.msra.mxu0 0
  %1697 = vmatprep.mubr.bf16.mxu0 0
  %1698 = vmatmul.mubr.bf16.gmra.mrb[0].mxu0 %v1663
  %v1699 = vpop.f32.mrb[0].mxu0
  %v1700 = vadd.f32 %v1648, %v1699
  %v1701 = vpop.f32.mrb[0].mxu0
  %v1702 = vpop.f32.mrb[0].mxu0
  %v1703 = vadd.f32 %v1648, %v1702
  %v1704 = vpop.f32.mrb[0].mxu0
  %1705 = vdwg.mxu0
  %v1706 = vadd.f32 %v1034, %v1700
  %v1707 = vadd.f32 %v1035, %v1703
  %s1708 = scalar_lea.vmem %s9, 1
  %v1709 = vld [vmem:[%s1708] sm:$0x1]
  %s1710 = scalar_lea.vmem %s10, 1
  %v1711 = vld [vmem:[%s1710] sm:$0x1]
  %v1712 = vsel %vm142, %v1706, 0.0
  %1713 = vadd.xlane.f32.xlu0 %v1712
  %v1714 = vpop.xlane.xlu0 %1713
  %v1715 = vsel %vm142, %v1707, 0.0
  %1716 = vadd.xlane.f32.xlu0 %v1715
  %v1717 = vpop.xlane.xlu0 %1716
  %v1718 = vmul.f32 %v1714, %v798
  %v1719 = vmul.f32 %v1717, %v798
  %v1720 = vsub.f32 %v1706, %v1718
  %v1721 = vsub.f32 %v1707, %v1719
  %v1722 = vmul.f32 %v1720, %v1720
  %v1723 = vmul.f32 %v1721, %v1721
  %v1724 = vsel %vm142, %v1722, 0.0
  %1725 = vadd.xlane.f32.xlu0 %v1724
  %v1726 = vpop.xlane.xlu0 %1725
  %v1727 = vsel %vm142, %v1723, 0.0
  %1728 = vadd.xlane.f32.xlu0 %v1727
  %v1729 = vpop.xlane.xlu0 %1728
  %v1730 = vmul.f32 %v1726, %v798
  %v1731 = vmul.f32 %v1729, %v798
  %v1732 = vadd.f32 %v1730, 1e-05
  %v1733 = vadd.f32 %v1731, 1e-05
  %v1734 = vrsqrt.pop %v1732
  %v1735 = vrsqrt.pop %v1733
  %v1736 = vmul.f32 %v1720, %v1734
  %v1737 = vmul.f32 %v1721, %v1735
  %v1739 = vlaneseq
  %v1740 = vshrl.u32 %v1739, 7
  %v1741 = vsub.s32 0, %v1740
  %v1742 = vrot.slane %v1709, %v1741
  %v1744 = vmul.f32 %v1736, %v1742
  %v1745 = vmul.f32 %v1737, %v1742
  %v1747 = vlaneseq
  %v1748 = vshrl.u32 %v1747, 7
  %v1749 = vsub.s32 0, %v1748
  %v1750 = vrot.slane %v1711, %v1749
  %v1752 = vadd.f32 %v1744, %v1750
  %v1753 = vadd.f32 %v1745, %v1750
  %v1754 = vpack.c.bf16 %v1753, %v1752
  %s1755 = scalar_lea.vmem %s5, 16
  %v1756 = vld [vmem:[%s1755] sm:$0xf]
  %v1757 = vld [vmem:[%s1755 + $0x4] sm:$0xf]
  %v1758 = vld [vmem:[%s1755 + $0x8] sm:$0xf]
  %v1759 = vld [vmem:[%s1755 + $0xc] sm:$0xf]
  %s1760 = scalar_lea.vmem %s6, 1
  %v1761 = vld [vmem:[%s1760] sm:$0x1]
  %v1763 = vlaneseq
  %v1764 = vshrl.u32 %v1763, 7
  %v1765 = vsub.s32 0, %v1764
  %v1766 = vrot.slane %v1761, %v1765
  %v1772 = vunpack.c.l.b16 %v1756
  %v1773 = vunpack.c.l.b16 %v1757
  %v1774 = vunpack.c.l.b16 %v1758
  %v1775 = vunpack.c.l.b16 %v1759
  %v1776 = vpack.c.b16 %v1773, %v1772
  %v1777 = vpack.c.b16 %v1775, %v1774
  %v1781 = vsel %vm142, %v1754, 0
  %1783 = vmatprep.subr.bf16.mxu0 0
  %1784 = vmatpush1.bf16.msra.mxu0 %v1776
  %1785 = vmatprep.subr.bf16.mxu0 0
  %1786 = vmatpush1.bf16.msra.mxu0 %v1777
  %1787 = vmatprep.subr.bf16.mxu0 0
  %1788 = vmatpush1.bf16.msra.mxu0 0
  %1789 = vmatprep.subr.bf16.mxu0 0
  %1790 = vmatpush1.bf16.msra.mxu0 0
  %1791 = vmatprep.subr.bf16.mxu0 0
  %1792 = vmatpush1.bf16.msra.mxu0 0
  %1793 = vmatprep.subr.bf16.mxu0 0
  %1794 = vmatpush1.bf16.msra.mxu0 0
  %1795 = vmatprep.subr.bf16.mxu0 0
  %1796 = vmatpush1.bf16.msra.mxu0 0
  %1797 = vmatprep.subr.bf16.mxu0 0
  %1798 = vmatpush1.bf16.msra.mxu0 0
  %1799 = vmatprep.subr.bf16.mxu0 0
  %1800 = vmatpush1.bf16.msra.mxu0 0
  %1801 = vmatprep.subr.bf16.mxu0 0
  %1802 = vmatpush1.bf16.msra.mxu0 0
  %1803 = vmatprep.subr.bf16.mxu0 0
  %1804 = vmatpush1.bf16.msra.mxu0 0
  %1805 = vmatprep.subr.bf16.mxu0 0
  %1806 = vmatpush1.bf16.msra.mxu0 0
  %1807 = vmatprep.subr.bf16.mxu0 0
  %1808 = vmatpush1.bf16.msra.mxu0 0
  %1809 = vmatprep.subr.bf16.mxu0 0
  %1810 = vmatpush1.bf16.msra.mxu0 0
  %1811 = vmatprep.subr.bf16.mxu0 0
  %1812 = vmatpush1.bf16.msra.mxu0 0
  %1813 = vmatprep.subr.bf16.mxu0 0
  %1814 = vmatpush1.bf16.msra.mxu0 0
  %1815 = vmatprep.mubr.bf16.mxu0 0
  %1816 = vmatmul.mubr.bf16.gmra.mrb[0].mxu0 %v1781
  %v1817 = vpop.f32.mrb[0].mxu0
  %v1818 = vadd.f32 %v1766, %v1817
  %v1819 = vpop.f32.mrb[0].mxu0
  %v1820 = vpop.f32.mrb[0].mxu0
  %v1821 = vadd.f32 %v1766, %v1820
  %v1822 = vpop.f32.mrb[0].mxu0
  %1823 = vdwg.mxu0
  %v1824 = vmax.f32 %v1818, 0.0
  %v1825 = vmax.f32 %v1821, 0.0
  %v1826 = vpack.c.bf16 %v1825, %v1824
  %s1827 = scalar_lea.vmem %s7, 32
  %v1828 = vld [vmem:[%s1827] sm:$0xf]
  %v1829 = vld [vmem:[%s1827 + $0x4] sm:$0xf]
  %v1830 = vld [vmem:[%s1827 + $0x8] sm:$0xf]
  %v1831 = vld [vmem:[%s1827 + $0xc] sm:$0xf]
  %v1832 = vld [vmem:[%s1827 + $0x10] sm:$0xf]
  %v1833 = vld [vmem:[%s1827 + $0x14] sm:$0xf]
  %v1834 = vld [vmem:[%s1827 + $0x18] sm:$0xf]
  %v1835 = vld [vmem:[%s1827 + $0x1c] sm:$0xf]
  %s1836 = scalar_lea.vmem %s8, 1
  %v1837 = vld [vmem:[%s1836] sm:$0x1]
  %v1839 = vlaneseq
  %v1840 = vshrl.u32 %v1839, 7
  %v1841 = vsub.s32 0, %v1840
  %v1842 = vrot.slane %v1837, %v1841
  %v1852 = vunpack.c.l.b16 %v1828
  %v1853 = vunpack.c.l.b16 %v1829
  %v1854 = vunpack.c.l.b16 %v1830
  %v1855 = vunpack.c.l.b16 %v1831
  %v1856 = vunpack.c.l.b16 %v1832
  %v1857 = vunpack.c.l.b16 %v1833
  %v1858 = vunpack.c.l.b16 %v1834
  %v1859 = vunpack.c.l.b16 %v1835
  %v1860 = vpack.c.b16 %v1853, %v1852
  %v1861 = vpack.c.b16 %v1855, %v1854
  %v1862 = vpack.c.b16 %v1857, %v1856
  %v1863 = vpack.c.b16 %v1859, %v1858
  %v1869 = vsel %vm945, %v1826, 0
  %1871 = vmatprep.subr.bf16.mxu0 0
  %1872 = vmatpush1.bf16.msra.mxu0 %v1860
  %1873 = vmatprep.subr.bf16.mxu0 0
  %1874 = vmatpush1.bf16.msra.mxu0 %v1861
  %1875 = vmatprep.subr.bf16.mxu0 0
  %1876 = vmatpush1.bf16.msra.mxu0 %v1862
  %1877 = vmatprep.subr.bf16.mxu0 0
  %1878 = vmatpush1.bf16.msra.mxu0 %v1863
  %1879 = vmatprep.subr.bf16.mxu0 0
  %1880 = vmatpush1.bf16.msra.mxu0 0
  %1881 = vmatprep.subr.bf16.mxu0 0
  %1882 = vmatpush1.bf16.msra.mxu0 0
  %1883 = vmatprep.subr.bf16.mxu0 0
  %1884 = vmatpush1.bf16.msra.mxu0 0
  %1885 = vmatprep.subr.bf16.mxu0 0
  %1886 = vmatpush1.bf16.msra.mxu0 0
  %1887 = vmatprep.subr.bf16.mxu0 0
  %1888 = vmatpush1.bf16.msra.mxu0 0
  %1889 = vmatprep.subr.bf16.mxu0 0
  %1890 = vmatpush1.bf16.msra.mxu0 0
  %1891 = vmatprep.subr.bf16.mxu0 0
  %1892 = vmatpush1.bf16.msra.mxu0 0
  %1893 = vmatprep.subr.bf16.mxu0 0
  %1894 = vmatpush1.bf16.msra.mxu0 0
  %1895 = vmatprep.subr.bf16.mxu0 0
  %1896 = vmatpush1.bf16.msra.mxu0 0
  %1897 = vmatprep.subr.bf16.mxu0 0
  %1898 = vmatpush1.bf16.msra.mxu0 0
  %1899 = vmatprep.subr.bf16.mxu0 0
  %1900 = vmatpush1.bf16.msra.mxu0 0
  %1901 = vmatprep.subr.bf16.mxu0 0
  %1902 = vmatpush1.bf16.msra.mxu0 0
  %1903 = vmatprep.mubr.bf16.mxu0 0
  %1904 = vmatmul.mubr.bf16.gmra.mrb[0].mxu0 %v1869
  %v1905 = vpop.f32.mrb[0].mxu0
  %v1906 = vadd.f32 %v1842, %v1905
  %v1907 = vpop.f32.mrb[0].mxu0
  %v1908 = vpop.f32.mrb[0].mxu0
  %v1909 = vadd.f32 %v1842, %v1908
  %v1910 = vpop.f32.mrb[0].mxu0
  %1911 = vdwg.mxu0
  %v1912 = vadd.f32 %v1752, %v1906
  %v1913 = vadd.f32 %v1753, %v1909
  %s1914 = scalar_lea.vmem %s11, 1
  %v1915 = vld [vmem:[%s1914] sm:$0x1]
  %s1916 = scalar_lea.vmem %s12, 1
  %v1917 = vld [vmem:[%s1916] sm:$0x1]
  %v1918 = vsel %vm142, %v1912, 0.0
  %1919 = vadd.xlane.f32.xlu0 %v1918
  %v1920 = vpop.xlane.xlu0 %1919
  %v1921 = vsel %vm142, %v1913, 0.0
  %1922 = vadd.xlane.f32.xlu0 %v1921
  %v1923 = vpop.xlane.xlu0 %1922
  %v1924 = vmul.f32 %v1920, %v798
  %v1925 = vmul.f32 %v1923, %v798
  %v1926 = vsub.f32 %v1912, %v1924
  %v1927 = vsub.f32 %v1913, %v1925
  %v1928 = vmul.f32 %v1926, %v1926
  %v1929 = vmul.f32 %v1927, %v1927
  %v1930 = vsel %vm142, %v1928, 0.0
  %1931 = vadd.xlane.f32.xlu0 %v1930
  %v1932 = vpop.xlane.xlu0 %1931
  %v1933 = vsel %vm142, %v1929, 0.0
  %1934 = vadd.xlane.f32.xlu0 %v1933
  %v1935 = vpop.xlane.xlu0 %1934
  %v1936 = vmul.f32 %v1932, %v798
  %v1937 = vmul.f32 %v1935, %v798
  %v1938 = vadd.f32 %v1936, 1e-05
  %v1939 = vadd.f32 %v1937, 1e-05
  %v1940 = vrsqrt.pop %v1938
  %v1941 = vrsqrt.pop %v1939
  %v1942 = vmul.f32 %v1926, %v1940
  %v1943 = vmul.f32 %v1927, %v1941
  %v1945 = vlaneseq
  %v1946 = vshrl.u32 %v1945, 7
  %v1947 = vsub.s32 0, %v1946
  %v1948 = vrot.slane %v1915, %v1947
  %v1950 = vmul.f32 %v1942, %v1948
  %v1951 = vmul.f32 %v1943, %v1948
  %v1953 = vlaneseq
  %v1954 = vshrl.u32 %v1953, 7
  %v1955 = vsub.s32 0, %v1954
  %v1956 = vrot.slane %v1917, %v1955
  %v1958 = vadd.f32 %v1950, %v1956
  %v1959 = vadd.f32 %v1951, %v1956
  %v1960 = vld [vmem:[%s13] sm:$0x1]
  %v1961 = vld [vmem:[%s14] sm:$0x1]
  %v1962 = vsel %vm142, %v1958, 0.0
  %1963 = vadd.xlane.f32.xlu0 %v1962
  %v1964 = vpop.xlane.xlu0 %1963
  %v1965 = vsel %vm142, %v1959, 0.0
  %1966 = vadd.xlane.f32.xlu0 %v1965
  %v1967 = vpop.xlane.xlu0 %1966
  %v1968 = vmul.f32 %v1964, %v798
  %v1969 = vmul.f32 %v1967, %v798
  %v1970 = vsub.f32 %v1958, %v1968
  %v1971 = vsub.f32 %v1959, %v1969
  %v1972 = vmul.f32 %v1970, %v1970
  %v1973 = vmul.f32 %v1971, %v1971
  %v1974 = vsel %vm142, %v1972, 0.0
  %1975 = vadd.xlane.f32.xlu0 %v1974
  %v1976 = vpop.xlane.xlu0 %1975
  %v1977 = vsel %vm142, %v1973, 0.0
  %1978 = vadd.xlane.f32.xlu0 %v1977
  %v1979 = vpop.xlane.xlu0 %1978
  %v1980 = vmul.f32 %v1976, %v798
  %v1981 = vmul.f32 %v1979, %v798
  %v1982 = vadd.f32 %v1980, 1e-05
  %v1983 = vadd.f32 %v1981, 1e-05
  %v1984 = vrsqrt.pop %v1982
  %v1985 = vrsqrt.pop %v1983
  %v1986 = vmul.f32 %v1970, %v1984
  %v1987 = vmul.f32 %v1971, %v1985
  %v1989 = vlaneseq
  %v1990 = vshrl.u32 %v1989, 7
  %v1991 = vsub.s32 0, %v1990
  %v1992 = vrot.slane %v1960, %v1991
  %v1994 = vmul.f32 %v1986, %v1992
  %v1995 = vmul.f32 %v1987, %v1992
  %v1997 = vlaneseq
  %v1998 = vshrl.u32 %v1997, 7
  %v1999 = vsub.s32 0, %v1998
  %v2000 = vrot.slane %v1961, %v1999
  %v2002 = vadd.f32 %v1994, %v2000
  %v2003 = vadd.f32 %v1995, %v2000
  %v2004 = vpack.c.bf16 %v2003, %v2002
  %v2005 = vld [vmem:[%s19] sm:$0xf]
  %v2006 = vld [vmem:[%s19 + $0x4] sm:$0xf]
  %v2007 = vld [vmem:[%s19 + $0x8] sm:$0xf]
  %v2008 = vld [vmem:[%s19 + $0xc] sm:$0xf]
  %v2009 = vld [vmem:[%s15] sm:$0xf]
  %v2010 = vld [vmem:[%s15 + $0x4] sm:$0xf]
  %v2011 = vld [vmem:[%s15 + $0x8] sm:$0xf]
  %v2012 = vld [vmem:[%s15 + $0xc] sm:$0xf]
  %v2013 = vld [vmem:[%s15 + $0x10] sm:$0xf]
  %v2014 = vld [vmem:[%s15 + $0x14] sm:$0xf]
  %v2015 = vld [vmem:[%s15 + $0x18] sm:$0xf]
  %v2016 = vld [vmem:[%s15 + $0x1c] sm:$0xf]
  %v2017 = vld [vmem:[%s15 + $0x20] sm:$0xf]
  %v2018 = vld [vmem:[%s15 + $0x24] sm:$0xf]
  %v2019 = vld [vmem:[%s15 + $0x28] sm:$0xf]
  %v2020 = vld [vmem:[%s15 + $0x2c] sm:$0xf]
  %v2022 = vrot.slane %v2004, 1
  %v2027 = vunpack.c.l.b16 %v2013
  %v2028 = vunpack.c.l.b16 %v2014
  %v2029 = vunpack.c.l.b16 %v2015
  %v2030 = vunpack.c.l.b16 %v2016
  %v2031 = vpack.c.b16 %v2028, %v2027
  %v2032 = vpack.c.b16 %v2030, %v2029
  %v2036 = vsel %vm142, %v2022, 0
  %2038 = vmatprep.subr.bf16.mxu0 0
  %2039 = vmatpush1.bf16.msra.mxu0 %v2031
  %2040 = vmatprep.subr.bf16.mxu0 0
  %2041 = vmatpush1.bf16.msra.mxu0 %v2032
  %2042 = vmatprep.subr.bf16.mxu0 0
  %2043 = vmatpush1.bf16.msra.mxu0 0
  %2044 = vmatprep.subr.bf16.mxu0 0
  %2045 = vmatpush1.bf16.msra.mxu0 0
  %2046 = vmatprep.subr.bf16.mxu0 0
  %2047 = vmatpush1.bf16.msra.mxu0 0
  %2048 = vmatprep.subr.bf16.mxu0 0
  %2049 = vmatpush1.bf16.msra.mxu0 0
  %2050 = vmatprep.subr.bf16.mxu0 0
  %2051 = vmatpush1.bf16.msra.mxu0 0
  %2052 = vmatprep.subr.bf16.mxu0 0
  %2053 = vmatpush1.bf16.msra.mxu0 0
  %2054 = vmatprep.subr.bf16.mxu0 0
  %2055 = vmatpush1.bf16.msra.mxu0 0
  %2056 = vmatprep.subr.bf16.mxu0 0
  %2057 = vmatpush1.bf16.msra.mxu0 0
  %2058 = vmatprep.subr.bf16.mxu0 0
  %2059 = vmatpush1.bf16.msra.mxu0 0
  %2060 = vmatprep.subr.bf16.mxu0 0
  %2061 = vmatpush1.bf16.msra.mxu0 0
  %2062 = vmatprep.subr.bf16.mxu0 0
  %2063 = vmatpush1.bf16.msra.mxu0 0
  %2064 = vmatprep.subr.bf16.mxu0 0
  %2065 = vmatpush1.bf16.msra.mxu0 0
  %2066 = vmatprep.subr.bf16.mxu0 0
  %2067 = vmatpush1.bf16.msra.mxu0 0
  %2068 = vmatprep.subr.bf16.mxu0 0
  %2069 = vmatpush1.bf16.msra.mxu0 0
  %2070 = vmatprep.mubr.bf16.mxu0 0
  %2071 = vmatmul.mubr.bf16.gmra.mrb[0].mxu0 %v2036
  %v2072 = vpop.f32.mrb[0].mxu0
  %v2073 = vadd.f32 0.0, %v2072
  %v2074 = vpop.f32.mrb[0].mxu0
  %v2075 = vpop.f32.mrb[0].mxu0
  %v2076 = vadd.f32 0.0, %v2075
  %v2077 = vpop.f32.mrb[0].mxu0
  %2078 = vdwg.mxu0
  %v2083 = vunpack.c.l.b16 %v2009
  %v2084 = vunpack.c.l.b16 %v2010
  %v2085 = vunpack.c.l.b16 %v2011
  %v2086 = vunpack.c.l.b16 %v2012
  %v2087 = vpack.c.b16 %v2084, %v2083
  %v2088 = vpack.c.b16 %v2086, %v2085
  %v2092 = vsel %vm142, %v2004, 0
  %2094 = vmatprep.subr.bf16.mxu0 0
  %2095 = vmatpush1.bf16.msra.mxu0 %v2087
  %2096 = vmatprep.subr.bf16.mxu0 0
  %2097 = vmatpush1.bf16.msra.mxu0 %v2088
  %2098 = vmatprep.subr.bf16.mxu0 0
  %2099 = vmatpush1.bf16.msra.mxu0 0
  %2100 = vmatprep.subr.bf16.mxu0 0
  %2101 = vmatpush1.bf16.msra.mxu0 0
  %2102 = vmatprep.subr.bf16.mxu0 0
  %2103 = vmatpush1.bf16.msra.mxu0 0
  %2104 = vmatprep.subr.bf16.mxu0 0
  %2105 = vmatpush1.bf16.msra.mxu0 0
  %2106 = vmatprep.subr.bf16.mxu0 0
  %2107 = vmatpush1.bf16.msra.mxu0 0
  %2108 = vmatprep.subr.bf16.mxu0 0
  %2109 = vmatpush1.bf16.msra.mxu0 0
  %2110 = vmatprep.subr.bf16.mxu0 0
  %2111 = vmatpush1.bf16.msra.mxu0 0
  %2112 = vmatprep.subr.bf16.mxu0 0
  %2113 = vmatpush1.bf16.msra.mxu0 0
  %2114 = vmatprep.subr.bf16.mxu0 0
  %2115 = vmatpush1.bf16.msra.mxu0 0
  %2116 = vmatprep.subr.bf16.mxu0 0
  %2117 = vmatpush1.bf16.msra.mxu0 0
  %2118 = vmatprep.subr.bf16.mxu0 0
  %2119 = vmatpush1.bf16.msra.mxu0 0
  %2120 = vmatprep.subr.bf16.mxu0 0
  %2121 = vmatpush1.bf16.msra.mxu0 0
  %2122 = vmatprep.subr.bf16.mxu0 0
  %2123 = vmatpush1.bf16.msra.mxu0 0
  %2124 = vmatprep.subr.bf16.mxu0 0
  %2125 = vmatpush1.bf16.msra.mxu0 0
  %2126 = vmatprep.mubr.bf16.mxu0 0
  %2127 = vmatmul.mubr.bf16.gmra.mrb[0].mxu0 %v2092
  %v2128 = vpop.f32.mrb[0].mxu0
  %v2129 = vadd.f32 %v2073, %v2128
  %v2130 = vpop.f32.mrb[0].mxu0
  %v2131 = vpop.f32.mrb[0].mxu0
  %v2132 = vadd.f32 %v2076, %v2131
  %v2133 = vpop.f32.mrb[0].mxu0
  %2134 = vdwg.mxu0
  %v2135 = vrot.slane %v2004, 2
  %v2140 = vunpack.c.l.b16 %v2017
  %v2141 = vunpack.c.l.b16 %v2018
  %v2142 = vunpack.c.l.b16 %v2019
  %v2143 = vunpack.c.l.b16 %v2020
  %v2144 = vpack.c.b16 %v2141, %v2140
  %v2145 = vpack.c.b16 %v2143, %v2142
  %v2149 = vsel %vm142, %v2135, 0
  %2151 = vmatprep.subr.bf16.mxu0 0
  %2152 = vmatpush1.bf16.msra.mxu0 %v2144
  %2153 = vmatprep.subr.bf16.mxu0 0
  %2154 = vmatpush1.bf16.msra.mxu0 %v2145
  %2155 = vmatprep.subr.bf16.mxu0 0
  %2156 = vmatpush1.bf16.msra.mxu0 0
  %2157 = vmatprep.subr.bf16.mxu0 0
  %2158 = vmatpush1.bf16.msra.mxu0 0
  %2159 = vmatprep.subr.bf16.mxu0 0
  %2160 = vmatpush1.bf16.msra.mxu0 0
  %2161 = vmatprep.subr.bf16.mxu0 0
  %2162 = vmatpush1.bf16.msra.mxu0 0
  %2163 = vmatprep.subr.bf16.mxu0 0
  %2164 = vmatpush1.bf16.msra.mxu0 0
  %2165 = vmatprep.subr.bf16.mxu0 0
  %2166 = vmatpush1.bf16.msra.mxu0 0
  %2167 = vmatprep.subr.bf16.mxu0 0
  %2168 = vmatpush1.bf16.msra.mxu0 0
  %2169 = vmatprep.subr.bf16.mxu0 0
  %2170 = vmatpush1.bf16.msra.mxu0 0
  %2171 = vmatprep.subr.bf16.mxu0 0
  %2172 = vmatpush1.bf16.msra.mxu0 0
  %2173 = vmatprep.subr.bf16.mxu0 0
  %2174 = vmatpush1.bf16.msra.mxu0 0
  %2175 = vmatprep.subr.bf16.mxu0 0
  %2176 = vmatpush1.bf16.msra.mxu0 0
  %2177 = vmatprep.subr.bf16.mxu0 0
  %2178 = vmatpush1.bf16.msra.mxu0 0
  %2179 = vmatprep.subr.bf16.mxu0 0
  %2180 = vmatpush1.bf16.msra.mxu0 0
  %2181 = vmatprep.subr.bf16.mxu0 0
  %2182 = vmatpush1.bf16.msra.mxu0 0
  %2183 = vmatprep.mubr.bf16.mxu0 0
  %2184 = vmatmul.mubr.bf16.gmra.mrb[0].mxu0 %v2149
  %v2185 = vpop.f32.mrb[0].mxu0
  %v2186 = vadd.f32 0.0, %v2185
  %v2187 = vpop.f32.mrb[0].mxu0
  %v2188 = vpop.f32.mrb[0].mxu0
  %v2189 = vadd.f32 0.0, %v2188
  %v2190 = vpop.f32.mrb[0].mxu0
  %2191 = vdwg.mxu0
  %v2192 = vadd.f32 %v2129, %v2186
  %v2193 = vadd.f32 %v2132, %v2189
  %v2194 = vld [vmem:[%s17] sm:$0x1]
  %v2196 = vlaneseq
  %v2197 = vshrl.u32 %v2196, 7
  %v2198 = vsub.s32 0, %v2197
  %v2199 = vrot.slane %v2194, %v2198
  %v2201 = vadd.f32 %v2192, %v2199
  %v2202 = vadd.f32 %v2193, %v2199
  %v2203 = vmax.f32 %v2201, 0.0
  %v2204 = vmax.f32 %v2202, 0.0
  %v2206 = vrot.slane %v2203, 2
  %v2208 = vmax.f32 %v2203, %v2206
  %v2209 = vrot.slane %v2203, 4
  %v2211 = vmax.f32 %v2208, %v2209
  %v2212 = vrot.slane %v2203, 6
  %v2214 = vmax.f32 %v2211, %v2212
  %v2215 = vmax.f32 %v2214, %v2204
  %v2217 = vrot.slane %v2204, 2
  %v2219 = vmax.f32 %v2215, %v2217
  %v2220 = vmul.f32 %v2219, 0.70710677
  %vm2221 = vcmp.lt.f32.partialorder %v2220, 0.0
  %v2222 = vsel %vm2221, -1.0, 1.0
  %v2223 = vand.u32 2147483647, %v2220
  %v2224 = vmul.f32 %v2223, 0.3275911
  %v2225 = vadd.f32 %v2224, 1.0
  %v2226 = vrcp.pop %v2225
  %v2227 = vmul.f32 1.0, %v2226
  %v2228 = vmul.f32 %v2227, 1.0614054
  %v2229 = vsub.f32 %v2228, 1.4531521
  %v2230 = vmul.f32 %v2229, %v2227
  %v2231 = vadd.f32 %v2230, 1.4214138
  %v2232 = vmul.f32 %v2231, %v2227
  %v2233 = vsub.f32 %v2232, 0.28449672
  %v2234 = vmul.f32 %v2233, %v2227
  %v2235 = vadd.f32 %v2234, 0.2548296
  %v2236 = vmul.f32 %v2235, %v2227
  %v2237 = vsub.f32 0.0, %v2223
  %v2238 = vmul.f32 %v2237, %v2223
  %v2239 = vmul.f32 %v2238, 1.442695
  %v2240 = vpow.pop %v2239
  %v2241 = vmul.f32 %v2236, %v2240
  %v2242 = vsub.f32 1.0, %v2241
  %v2243 = vmul.f32 %v2222, %v2242
  %v2244 = vmul.f32 %v2219, 0.5
  %v2245 = vadd.f32 %v2243, 1.0
  %v2246 = vmul.f32 %v2244, %v2245
  %v2247 = vpack.c.bf16 %v2246, %v2246
  %v2248 = vld [vmem:[%s16] sm:$0xf]
  %v2249 = vld [vmem:[%s16 + $0x4] sm:$0xf]
  %v2250 = vld [vmem:[%s16 + $0x8] sm:$0xf]
  %v2251 = vld [vmem:[%s16 + $0xc] sm:$0xf]
  %v2252 = vld [vmem:[%s16 + $0x10] sm:$0xf]
  %v2253 = vld [vmem:[%s16 + $0x14] sm:$0xf]
  %v2254 = vld [vmem:[%s16 + $0x18] sm:$0xf]
  %v2255 = vld [vmem:[%s16 + $0x1c] sm:$0xf]
  %v2256 = vld [vmem:[%s16 + $0x20] sm:$0xf]
  %v2257 = vld [vmem:[%s16 + $0x24] sm:$0xf]
  %v2258 = vld [vmem:[%s16 + $0x28] sm:$0xf]
  %v2259 = vld [vmem:[%s16 + $0x2c] sm:$0xf]
  %v2264 = vunpack.c.l.b16 %v2252
  %v2265 = vunpack.c.l.b16 %v2253
  %v2266 = vunpack.c.l.b16 %v2254
  %v2267 = vunpack.c.l.b16 %v2255
  %v2268 = vpack.c.b16 %v2265, %v2264
  %v2269 = vpack.c.b16 %v2267, %v2266
  %2272 = vmatprep.subr.bf16.mxu0 0
  %2273 = vmatpush1.bf16.msra.mxu0 %v2268
  %2274 = vmatprep.subr.bf16.mxu0 0
  %2275 = vmatpush1.bf16.msra.mxu0 %v2269
  %2276 = vmatprep.subr.bf16.mxu0 0
  %2277 = vmatpush1.bf16.msra.mxu0 0
  %2278 = vmatprep.subr.bf16.mxu0 0
  %2279 = vmatpush1.bf16.msra.mxu0 0
  %2280 = vmatprep.subr.bf16.mxu0 0
  %2281 = vmatpush1.bf16.msra.mxu0 0
  %2282 = vmatprep.subr.bf16.mxu0 0
  %2283 = vmatpush1.bf16.msra.mxu0 0
  %2284 = vmatprep.subr.bf16.mxu0 0
  %2285 = vmatpush1.bf16.msra.mxu0 0
  %2286 = vmatprep.subr.bf16.mxu0 0
  %2287 = vmatpush1.bf16.msra.mxu0 0
  %2288 = vmatprep.subr.bf16.mxu0 0
  %2289 = vmatpush1.bf16.msra.mxu0 0
  %2290 = vmatprep.subr.bf16.mxu0 0
  %2291 = vmatpush1.bf16.msra.mxu0 0
  %2292 = vmatprep.subr.bf16.mxu0 0
  %2293 = vmatpush1.bf16.msra.mxu0 0
  %2294 = vmatprep.subr.bf16.mxu0 0
  %2295 = vmatpush1.bf16.msra.mxu0 0
  %2296 = vmatprep.subr.bf16.mxu0 0
  %2297 = vmatpush1.bf16.msra.mxu0 0
  %2298 = vmatprep.subr.bf16.mxu0 0
  %2299 = vmatpush1.bf16.msra.mxu0 0
  %2300 = vmatprep.subr.bf16.mxu0 0
  %2301 = vmatpush1.bf16.msra.mxu0 0
  %2302 = vmatprep.subr.bf16.mxu0 0
  %2303 = vmatpush1.bf16.msra.mxu0 0
  %2304 = vmatprep.mubr.bf16.mxu0 0
  %2305 = vmatmul.mubr.bf16.gmra.mrb[0].mxu0 %v2036
  %v2306 = vpop.f32.mrb[0].mxu0
  %v2307 = vadd.f32 0.0, %v2306
  %v2308 = vpop.f32.mrb[0].mxu0
  %v2309 = vpop.f32.mrb[0].mxu0
  %v2310 = vadd.f32 0.0, %v2309
  %v2311 = vpop.f32.mrb[0].mxu0
  %2312 = vdwg.mxu0
  %v2317 = vunpack.c.l.b16 %v2248
  %v2318 = vunpack.c.l.b16 %v2249
  %v2319 = vunpack.c.l.b16 %v2250
  %v2320 = vunpack.c.l.b16 %v2251
  %v2321 = vpack.c.b16 %v2318, %v2317
  %v2322 = vpack.c.b16 %v2320, %v2319
  %2325 = vmatprep.subr.bf16.mxu0 0
  %2326 = vmatpush1.bf16.msra.mxu0 %v2321
  %2327 = vmatprep.subr.bf16.mxu0 0
  %2328 = vmatpush1.bf16.msra.mxu0 %v2322
  %2329 = vmatprep.subr.bf16.mxu0 0
  %2330 = vmatpush1.bf16.msra.mxu0 0
  %2331 = vmatprep.subr.bf16.mxu0 0
  %2332 = vmatpush1.bf16.msra.mxu0 0
  %2333 = vmatprep.subr.bf16.mxu0 0
  %2334 = vmatpush1.bf16.msra.mxu0 0
  %2335 = vmatprep.subr.bf16.mxu0 0
  %2336 = vmatpush1.bf16.msra.mxu0 0
  %2337 = vmatprep.subr.bf16.mxu0 0
  %2338 = vmatpush1.bf16.msra.mxu0 0
  %2339 = vmatprep.subr.bf16.mxu0 0
  %2340 = vmatpush1.bf16.msra.mxu0 0
  %2341 = vmatprep.subr.bf16.mxu0 0
  %2342 = vmatpush1.bf16.msra.mxu0 0
  %2343 = vmatprep.subr.bf16.mxu0 0
  %2344 = vmatpush1.bf16.msra.mxu0 0
  %2345 = vmatprep.subr.bf16.mxu0 0
  %2346 = vmatpush1.bf16.msra.mxu0 0
  %2347 = vmatprep.subr.bf16.mxu0 0
  %2348 = vmatpush1.bf16.msra.mxu0 0
  %2349 = vmatprep.subr.bf16.mxu0 0
  %2350 = vmatpush1.bf16.msra.mxu0 0
  %2351 = vmatprep.subr.bf16.mxu0 0
  %2352 = vmatpush1.bf16.msra.mxu0 0
  %2353 = vmatprep.subr.bf16.mxu0 0
  %2354 = vmatpush1.bf16.msra.mxu0 0
  %2355 = vmatprep.subr.bf16.mxu0 0
  %2356 = vmatpush1.bf16.msra.mxu0 0
  %2357 = vmatprep.mubr.bf16.mxu0 0
  %2358 = vmatmul.mubr.bf16.gmra.mrb[0].mxu0 %v2092
  %v2359 = vpop.f32.mrb[0].mxu0
  %v2360 = vadd.f32 %v2307, %v2359
  %v2361 = vpop.f32.mrb[0].mxu0
  %v2362 = vpop.f32.mrb[0].mxu0
  %v2363 = vadd.f32 %v2310, %v2362
  %v2364 = vpop.f32.mrb[0].mxu0
  %2365 = vdwg.mxu0
  %v2370 = vunpack.c.l.b16 %v2256
  %v2371 = vunpack.c.l.b16 %v2257
  %v2372 = vunpack.c.l.b16 %v2258
  %v2373 = vunpack.c.l.b16 %v2259
  %v2374 = vpack.c.b16 %v2371, %v2370
  %v2375 = vpack.c.b16 %v2373, %v2372
  %2378 = vmatprep.subr.bf16.mxu0 0
  %2379 = vmatpush1.bf16.msra.mxu0 %v2374
  %2380 = vmatprep.subr.bf16.mxu0 0
  %2381 = vmatpush1.bf16.msra.mxu0 %v2375
  %2382 = vmatprep.subr.bf16.mxu0 0
  %2383 = vmatpush1.bf16.msra.mxu0 0
  %2384 = vmatprep.subr.bf16.mxu0 0
  %2385 = vmatpush1.bf16.msra.mxu0 0
  %2386 = vmatprep.subr.bf16.mxu0 0
  %2387 = vmatpush1.bf16.msra.mxu0 0
  %2388 = vmatprep.subr.bf16.mxu0 0
  %2389 = vmatpush1.bf16.msra.mxu0 0
  %2390 = vmatprep.subr.bf16.mxu0 0
  %2391 = vmatpush1.bf16.msra.mxu0 0
  %2392 = vmatprep.subr.bf16.mxu0 0
  %2393 = vmatpush1.bf16.msra.mxu0 0
  %2394 = vmatprep.subr.bf16.mxu0 0
  %2395 = vmatpush1.bf16.msra.mxu0 0
  %2396 = vmatprep.subr.bf16.mxu0 0
  %2397 = vmatpush1.bf16.msra.mxu0 0
  %2398 = vmatprep.subr.bf16.mxu0 0
  %2399 = vmatpush1.bf16.msra.mxu0 0
  %2400 = vmatprep.subr.bf16.mxu0 0
  %2401 = vmatpush1.bf16.msra.mxu0 0
  %2402 = vmatprep.subr.bf16.mxu0 0
  %2403 = vmatpush1.bf16.msra.mxu0 0
  %2404 = vmatprep.subr.bf16.mxu0 0
  %2405 = vmatpush1.bf16.msra.mxu0 0
  %2406 = vmatprep.subr.bf16.mxu0 0
  %2407 = vmatpush1.bf16.msra.mxu0 0
  %2408 = vmatprep.subr.bf16.mxu0 0
  %2409 = vmatpush1.bf16.msra.mxu0 0
  %2410 = vmatprep.mubr.bf16.mxu0 0
  %2411 = vmatmul.mubr.bf16.gmra.mrb[0].mxu0 %v2149
  %v2412 = vpop.f32.mrb[0].mxu0
  %v2413 = vadd.f32 0.0, %v2412
  %v2414 = vpop.f32.mrb[0].mxu0
  %v2415 = vpop.f32.mrb[0].mxu0
  %v2416 = vadd.f32 0.0, %v2415
  %v2417 = vpop.f32.mrb[0].mxu0
  %2418 = vdwg.mxu0
  %v2419 = vadd.f32 %v2360, %v2413
  %v2420 = vadd.f32 %v2363, %v2416
  %v2421 = vld [vmem:[%s18] sm:$0x1]
  %v2423 = vlaneseq
  %v2424 = vshrl.u32 %v2423, 7
  %v2425 = vsub.s32 0, %v2424
  %v2426 = vrot.slane %v2421, %v2425
  %v2428 = vadd.f32 %v2419, %v2426
  %v2429 = vadd.f32 %v2420, %v2426
  %v2430 = vmax.f32 %v2428, 0.0
  %v2431 = vmax.f32 %v2429, 0.0
  %v2433 = vrot.slane %v2430, 2
  %v2435 = vmax.f32 %v2430, %v2433
  %v2436 = vrot.slane %v2430, 4
  %v2438 = vmax.f32 %v2435, %v2436
  %v2439 = vrot.slane %v2430, 6
  %v2441 = vmax.f32 %v2438, %v2439
  %v2442 = vmax.f32 %v2441, %v2431
  %v2444 = vrot.slane %v2431, 2
  %v2446 = vmax.f32 %v2442, %v2444
  %v2447 = vmul.f32 %v2446, 0.70710677
  %vm2448 = vcmp.lt.f32.partialorder %v2447, 0.0
  %v2449 = vsel %vm2448, -1.0, 1.0
  %v2450 = vand.u32 2147483647, %v2447
  %v2451 = vmul.f32 %v2450, 0.3275911
  %v2452 = vadd.f32 %v2451, 1.0
  %v2453 = vrcp.pop %v2452
  %v2454 = vmul.f32 1.0, %v2453
  %v2455 = vmul.f32 %v2454, 1.0614054
  %v2456 = vsub.f32 %v2455, 1.4531521
  %v2457 = vmul.f32 %v2456, %v2454
  %v2458 = vadd.f32 %v2457, 1.4214138
  %v2459 = vmul.f32 %v2458, %v2454
  %v2460 = vsub.f32 %v2459, 0.28449672
  %v2461 = vmul.f32 %v2460, %v2454
  %v2462 = vadd.f32 %v2461, 0.2548296
  %v2463 = vmul.f32 %v2462, %v2454
  %v2464 = vsub.f32 0.0, %v2450
  %v2465 = vmul.f32 %v2464, %v2450
  %v2466 = vmul.f32 %v2465, 1.442695
  %v2467 = vpow.pop %v2466
  %v2468 = vmul.f32 %v2463, %v2467
  %v2469 = vsub.f32 1.0, %v2468
  %v2470 = vmul.f32 %v2449, %v2469
  %v2471 = vmul.f32 %v2446, 0.5
  %v2472 = vadd.f32 %v2470, 1.0
  %v2473 = vmul.f32 %v2471, %v2472
  %v2474 = vpack.c.bf16 %v2473, %v2473
  %v2477 = vunpack.c.l.b16 %v2007
  %v2478 = vunpack.c.l.b16 %v2008
  %v2479 = vpack.c.b16 %v2478, %v2477
  %v2482 = vsel %vm243, %v2474, 0
  %2484 = vmatprep.subr.bf16.mxu0 0
  %2485 = vmatpush1.bf16.msra.mxu0 %v2479
  %2486 = vmatprep.subr.bf16.mxu0 0
  %2487 = vmatpush1.bf16.msra.mxu0 0
  %2488 = vmatprep.subr.bf16.mxu0 0
  %2489 = vmatpush1.bf16.msra.mxu0 0
  %2490 = vmatprep.subr.bf16.mxu0 0
  %2491 = vmatpush1.bf16.msra.mxu0 0
  %2492 = vmatprep.subr.bf16.mxu0 0
  %2493 = vmatpush1.bf16.msra.mxu0 0
  %2494 = vmatprep.subr.bf16.mxu0 0
  %2495 = vmatpush1.bf16.msra.mxu0 0
  %2496 = vmatprep.subr.bf16.mxu0 0
  %2497 = vmatpush1.bf16.msra.mxu0 0
  %2498 = vmatprep.subr.bf16.mxu0 0
  %2499 = vmatpush1.bf16.msra.mxu0 0
  %2500 = vmatprep.subr.bf16.mxu0 0
  %2501 = vmatpush1.bf16.msra.mxu0 0
  %2502 = vmatprep.subr.bf16.mxu0 0
  %2503 = vmatpush1.bf16.msra.mxu0 0
  %2504 = vmatprep.subr.bf16.mxu0 0
  %2505 = vmatpush1.bf16.msra.mxu0 0
  %2506 = vmatprep.subr.bf16.mxu0 0
  %2507 = vmatpush1.bf16.msra.mxu0 0
  %2508 = vmatprep.subr.bf16.mxu0 0
  %2509 = vmatpush1.bf16.msra.mxu0 0
  %2510 = vmatprep.subr.bf16.mxu0 0
  %2511 = vmatpush1.bf16.msra.mxu0 0
  %2512 = vmatprep.subr.bf16.mxu0 0
  %2513 = vmatpush1.bf16.msra.mxu0 0
  %2514 = vmatprep.subr.bf16.mxu0 0
  %2515 = vmatpush1.bf16.msra.mxu0 0
  %2516 = vmatprep.mubr.bf16.mxu0 0
  %2517 = vmatmul.mubr.bf16.gmra.mrb[0].mxu0 %v2482
  %v2518 = vpop.f32.mrb[0].mxu0
  %v2519 = vadd.f32 0.0, %v2518
  %v2520 = vpop.f32.mrb[0].mxu0
  %v2521 = vpop.f32.mrb[0].mxu0
  %v2522 = vpop.f32.mrb[0].mxu0
  %2523 = vdwg.mxu0
  %v2526 = vunpack.c.l.b16 %v2005
  %v2527 = vunpack.c.l.b16 %v2006
  %v2528 = vpack.c.b16 %v2527, %v2526
  %v2531 = vsel %vm243, %v2247, 0
  %2533 = vmatprep.subr.bf16.mxu0 0
  %2534 = vmatpush1.bf16.msra.mxu0 %v2528
  %2535 = vmatprep.subr.bf16.mxu0 0
  %2536 = vmatpush1.bf16.msra.mxu0 0
  %2537 = vmatprep.subr.bf16.mxu0 0
  %2538 = vmatpush1.bf16.msra.mxu0 0
  %2539 = vmatprep.subr.bf16.mxu0 0
  %2540 = vmatpush1.bf16.msra.mxu0 0
  %2541 = vmatprep.subr.bf16.mxu0 0
  %2542 = vmatpush1.bf16.msra.mxu0 0
  %2543 = vmatprep.subr.bf16.mxu0 0
  %2544 = vmatpush1.bf16.msra.mxu0 0
  %2545 = vmatprep.subr.bf16.mxu0 0
  %2546 = vmatpush1.bf16.msra.mxu0 0
  %2547 = vmatprep.subr.bf16.mxu0 0
  %2548 = vmatpush1.bf16.msra.mxu0 0
  %2549 = vmatprep.subr.bf16.mxu0 0
  %2550 = vmatpush1.bf16.msra.mxu0 0
  %2551 = vmatprep.subr.bf16.mxu0 0
  %2552 = vmatpush1.bf16.msra.mxu0 0
  %2553 = vmatprep.subr.bf16.mxu0 0
  %2554 = vmatpush1.bf16.msra.mxu0 0
  %2555 = vmatprep.subr.bf16.mxu0 0
  %2556 = vmatpush1.bf16.msra.mxu0 0
  %2557 = vmatprep.subr.bf16.mxu0 0
  %2558 = vmatpush1.bf16.msra.mxu0 0
  %2559 = vmatprep.subr.bf16.mxu0 0
  %2560 = vmatpush1.bf16.msra.mxu0 0
  %2561 = vmatprep.subr.bf16.mxu0 0
  %2562 = vmatpush1.bf16.msra.mxu0 0
  %2563 = vmatprep.subr.bf16.mxu0 0
  %2564 = vmatpush1.bf16.msra.mxu0 0
  %2565 = vmatprep.mubr.bf16.mxu0 0
  %2566 = vmatmul.mubr.bf16.gmra.mrb[0].mxu0 %v2531
  %v2567 = vpop.f32.mrb[0].mxu0
  %v2568 = vadd.f32 %v2519, %v2567
  %v2569 = vpop.f32.mrb[0].mxu0
  %v2570 = vpop.f32.mrb[0].mxu0
  %v2571 = vpop.f32.mrb[0].mxu0
  %2572 = vdwg.mxu0
  %v2573 = vld [vmem:[#allocation2] sm:$0x1]
  %v2575 = vlaneseq
  %v2576 = vshrl.u32 %v2575, 7
  %v2577 = vsub.s32 0, %v2576
  %v2578 = vrot.slane %v2573, %v2577
  %v2580 = vadd.f32 %v2568, %v2578
  %vm2581 = vcmask 1024
  %2582 = vst.msk [vmem:[%s21] sm:$0x3] %vm2581, %v2580
  // Predicated region
  $region86: #{kl_model_plus_forward.1} parent=0 // pred_check
    _
  $region87: #{kl_model_plus_forward.1} parent=0 // pred_check_branch
    %2584 = sbr.rel (0) target = $region89
  $region88: #{kl_model_plus_forward.1} parent=0 // pred_region
    _
  $region89: #{kl_model_plus_forward.1} parent=0 // pred_fallthru
    _
  // Predicated region
  $region90: #{kl_model_plus_forward.1} parent=0 // pred_check
    _
  $region91: #{kl_model_plus_forward.1} parent=0 // pred_check_branch
    %2586 = sbr.rel (0) target = $region93
  $region92: #{kl_model_plus_forward.1} parent=0 // pred_region
    _
  $region93: #{kl_model_plus_forward.1} parent=0 // pred_fallthru
    _

</llo_original>
